<compile_context>
chip_gen: v5e
topology: v5e:2x2
jax: 0.10.0
libtpu: 0.0.40
codegen_flags: <defaults>
</compile_context>

<pallas_src>
import jax
import jax.numpy as jnp
from jax import lax
from jax.experimental import pallas as pl
from jax.experimental.pallas import tpu as pltpu

D_IN = 768
H = 128
G4 = 4 * H


def _choose_time_tile(t_total, cap=64):
    """Pick a time-tile TT (multiple of 8, <= cap), trading padded (wasted)
    recurrence steps against per-grid-step overhead. Never returns a
    non-multiple-of-8 tile or a whole-sequence block."""
    best = None
    for tt in range(8, cap + 1, 8):
        n_tiles = -(-t_total // tt)          # ceil div
        waste = n_tiles * tt - t_total
        score = (waste + 3 * n_tiles, -tt)   # ~3 wasted steps per grid step
        if best is None or score < best[0]:
            best = (score, tt, n_tiles)
    return best[1], best[2]


def _make_fused_kernel(B, TT, T, num_tiles):
    rem = T - (num_tiles - 1) * TT           # valid steps in the last tile

    def kernel(x_ref, w1_ref, b1_ref, wih_ref, bl_ref, whh_ref,
               wout_ref, bout_ref, o_ref, gx_sc, h_sc, c_sc, m_sc):
        t = pl.program_id(0)

        @pl.when(t == 0)
        def _init():
            h_sc[...] = jnp.zeros_like(h_sc)
            c_sc[...] = jnp.zeros_like(c_sc)
            m_sc[...] = jnp.full(m_sc.shape, -jnp.inf, dtype=m_sc.dtype)

        # ---- fused Linear(768->128) + ReLU + LSTM input projection ----
        # bf16 MXU operands, f32 accumulation.
        x2 = x_ref[...].reshape(B * TT, D_IN).astype(jnp.bfloat16)
        h1 = jnp.dot(x2, w1_ref[...], preferred_element_type=jnp.float32)
        h1 = jnp.maximum(h1 + b1_ref[...], 0.0).astype(jnp.bfloat16)
        gx = jnp.dot(h1, wih_ref[...], preferred_element_type=jnp.float32)
        gx = gx + bl_ref[...]
        gx_sc[...] = gx.reshape(B, TT, G4)

        # ---- serial LSTM recurrence over this tile (f32) + running max ----
        h = h_sc[...]
        c = c_sc[...]
        m = m_sc[...]
        whh = whh_ref[...]

        if num_tiles > 1 and rem < TT:
            # padded tail steps only exist in the last tile
            pad_bias = jnp.where(t < num_tiles - 1, 0.0, jnp.float32(-1e30))

        for s in range(TT):
            gates = gx_sc[:, s, :] + jnp.dot(
                h, whh, preferred_element_type=jnp.float32)
            i_g = jax.nn.sigmoid(gates[:, 0 * H:1 * H])
            f_g = jax.nn.sigmoid(gates[:, 1 * H:2 * H])
            g_g = jnp.tanh(gates[:, 2 * H:3 * H])
            o_g = jax.nn.sigmoid(gates[:, 3 * H:4 * H])
            c = f_g * c + i_g * g_g
            h = o_g * jnp.tanh(c)
            # Padded timesteps must not contribute to the max; stale h/c
            # after them is never read again, so only the max is guarded.
            if s < rem:
                m = jnp.maximum(m, h)
            elif num_tiles > 1:
                m = jnp.maximum(m, h + pad_bias)
            # else: statically padded tail of a single-tile grid -> skip

        h_sc[...] = h
        c_sc[...] = c
        m_sc[...] = m

        @pl.when(t == num_tiles - 1)
        def _finalize():
            # output head: (B,H) * (1,H) -> sum over H -> (B,1) -> sigmoid
            logits = jnp.sum(m_sc[...] * wout_ref[...], axis=-1,
                             keepdims=True)
            logits = logits + bout_ref[...]
            o_ref[...] = jax.nn.sigmoid(logits)

    return kernel


def approach1_forward(x, params):
    B, T, d_in = x.shape
    assert d_in == D_IN
    assert T >= 1, "T must be >= 1"
    x = x.astype(jnp.float32)

    TT, num_tiles = _choose_time_tile(T, cap=64)
    T_pad = TT * num_tiles
    if T_pad != T:
        x = jnp.pad(x, ((0, 0), (0, T_pad - T), (0, 0)))

    # bf16 weights for the MXU-heavy projection path (halves their DMA too);
    # recurrence weights stay f32.
    w1_bf = params["w1"].astype(jnp.bfloat16)
    wih_bf = params["wih"].astype(jnp.bfloat16)

    kernel = _make_fused_kernel(B, TT, T, num_tiles)

    out = pl.pallas_call(
        kernel,
        out_shape=jax.ShapeDtypeStruct((B, 1), jnp.float32),
        grid=(num_tiles,),
        in_specs=[
            pl.BlockSpec((B, TT, D_IN), lambda t: (0, t, 0)),   # x tile
            pl.BlockSpec((D_IN, H), lambda t: (0, 0)),          # w1 (bf16)
            pl.BlockSpec((1, H), lambda t: (0, 0)),             # b1
            pl.BlockSpec((H, G4), lambda t: (0, 0)),            # wih (bf16)
            pl.BlockSpec((1, G4), lambda t: (0, 0)),            # b_lstm
            pl.BlockSpec((H, G4), lambda t: (0, 0)),            # whh
            pl.BlockSpec((1, H), lambda t: (0, 0)),             # wout
            pl.BlockSpec((1, 1), lambda t: (0, 0)),             # bout
        ],
        out_specs=pl.BlockSpec((B, 1), lambda t: (0, 0)),
        scratch_shapes=[
            pltpu.VMEM((B, TT, G4), jnp.float32),   # per-tile gates (no HBM)
            pltpu.VMEM((B, H), jnp.float32),        # h
            pltpu.VMEM((B, H), jnp.float32),        # c
            pltpu.VMEM((B, H), jnp.float32),        # running max of h
        ],
        compiler_params=pltpu.CompilerParams(
            dimension_semantics=("arbitrary",),
            vmem_limit_bytes=32 * 1024 * 1024),
    )(x, w1_bf, params["b1"], wih_bf, params["b_lstm"],
      params["whh"], params["wout"], params["bout"])
    return out


# ---------------------------------------------------------------------------
# Pure-JAX reference (same math, incl. bf16 projection operands) for checking.
# ---------------------------------------------------------------------------
def reference_forward(x, params):
    x = x.astype(jnp.float32)
    B = x.shape[0]
    w1_bf = params["w1"].astype(jnp.bfloat16)
    wih_bf = params["wih"].astype(jnp.bfloat16)

    h1 = jnp.dot(x.astype(jnp.bfloat16), w1_bf,
                 preferred_element_type=jnp.float32) + params["b1"]
    h1 = jnp.maximum(h1, 0.0)                                   # (B, T, H)
    gx = jnp.dot(h1.astype(jnp.bfloat16), wih_bf,
                 preferred_element_type=jnp.float32) + params["b_lstm"]

    def step(carry, g_t):
        h, c = carry
        gates = g_t + h @ params["whh"]
        i_g = jax.nn.sigmoid(gates[:, 0 * H:1 * H])
        f_g = jax.nn.sigmoid(gates[:, 1 * H:2 * H])
        g_g = jnp.tanh(gates[:, 2 * H:3 * H])
        o_g = jax.nn.sigmoid(gates[:, 3 * H:4 * H])
        c = f_g * c + i_g * g_g
        h = o_g * jnp.tanh(c)
        return (h, c), h

    h0 = jnp.zeros((B, H), jnp.float32)
    c0 = jnp.zeros((B, H), jnp.float32)
    _, hs = lax.scan(step, (h0, c0), jnp.swapaxes(gx, 0, 1))    # (T, B, H)
    hmax = jnp.max(hs, axis=0)                                  # (B, H)
    logits = jnp.sum(hmax * params["wout"], axis=-1, keepdims=True) \
        + params["bout"]
    return jax.nn.sigmoid(logits)


def init_params(key):
    ks = jax.random.split(key, 8)
    scale1 = 1.0 / jnp.sqrt(D_IN)
    scaleh = 1.0 / jnp.sqrt(H)
    return {
        # Linear(768, 128): stored as (in, out) so the kernel does x @ w
        "w1": jax.random.uniform(ks[0], (D_IN, H), jnp.float32,
                                 -scale1, scale1),
        "b1": jax.random.uniform(ks[1], (1, H), jnp.float32, -scale1, scale1),
        # LSTM weights, stored transposed: (H, 4H), gate order [i|f|g|o]
        "wih": jax.random.uniform(ks[2], (H, G4), jnp.float32,
                                  -scaleh, scaleh),
        "whh": jax.random.uniform(ks[3], (H, G4), jnp.float32,
                                  -scaleh, scaleh),
        # b_ih + b_hh fused
        "b_lstm": (jax.random.uniform(ks[4], (1, G4), jnp.float32,
                                      -scaleh, scaleh)
                   + jax.random.uniform(ks[5], (1, G4), jnp.float32,
                                        -scaleh, scaleh)),
        # Linear(128, 1): stored as a (1, H) row
        "wout": jax.random.uniform(ks[6], (1, H), jnp.float32,
                                   -scaleh, scaleh),
        "bout": jax.random.uniform(ks[7], (1, 1), jnp.float32,
                                   -scaleh, scaleh),
    }


if __name__ == "__main__":
    key = jax.random.PRNGKey(0)
    kx, kp = jax.random.split(key)
    params = init_params(kp)

    # Primary small case (exact single tile) + a multi-tile case with time
    # padding (exercises the grid-carried recurrence and the padded-tail
    # masking path).
    for B, T in ((2, 8), (2, 90)):
        x = jax.random.normal(jax.random.fold_in(kx, T), (B, T, D_IN),
                              jnp.float32)
        out = jax.block_until_ready(approach1_forward(x, params))
        ref = reference_forward(x, params)
        assert out.shape == (B, 1)
        assert jnp.allclose(out, ref, atol=1e-3, rtol=1e-3), (T, out, ref)

    print("KERNEL_OK")
</pallas_src>

<mosaic_0001>
module attributes {stable_mosaic.version = 11 : i64} {
  func.func @kernel(%arg0: i32, %arg1: memref<2x8x768xf32, #tpu.memory_space<vmem>>, %arg2: memref<768x128xbf16, #tpu.memory_space<vmem>>, %arg3: memref<1x128xf32, #tpu.memory_space<vmem>>, %arg4: memref<128x512xbf16, #tpu.memory_space<vmem>>, %arg5: memref<1x512xf32, #tpu.memory_space<vmem>>, %arg6: memref<128x512xf32, #tpu.memory_space<vmem>>, %arg7: memref<1x128xf32, #tpu.memory_space<vmem>>, %arg8: memref<1x1xf32, #tpu.memory_space<vmem>>, %arg9: memref<2x1xf32, #tpu.memory_space<vmem>>, %arg10: memref<2x8x512xf32, #tpu.memory_space<vmem>>, %arg11: memref<2x128xf32, #tpu.memory_space<vmem>>, %arg12: memref<2x128xf32, #tpu.memory_space<vmem>>, %arg13: memref<2x128xf32, #tpu.memory_space<vmem>>) attributes {dimension_semantics = [#tpu.dimension_semantics<arbitrary>], iteration_bounds = array<i64: 1>, scalar_prefetch = 0 : i64, scratch_operands = 4 : i64, tpu.core_type = #tpu.core_type<tc>, window_params = [{transform_indices = @transform_0, window_bounds = array<i64: 2, 8, 768>}, {pipeline_mode = #tpu.pipeline_mode<synchronous>, transform_indices = @transform_1, window_bounds = array<i64: 768, 128>}, {pipeline_mode = #tpu.pipeline_mode<synchronous>, transform_indices = @transform_2, window_bounds = array<i64: 1, 128>}, {pipeline_mode = #tpu.pipeline_mode<synchronous>, transform_indices = @transform_3, window_bounds = array<i64: 128, 512>}, {pipeline_mode = #tpu.pipeline_mode<synchronous>, transform_indices = @transform_4, window_bounds = array<i64: 1, 512>}, {pipeline_mode = #tpu.pipeline_mode<synchronous>, transform_indices = @transform_5, window_bounds = array<i64: 128, 512>}, {pipeline_mode = #tpu.pipeline_mode<synchronous>, transform_indices = @transform_6, window_bounds = array<i64: 1, 128>}, {pipeline_mode = #tpu.pipeline_mode<synchronous>, transform_indices = @transform_7, window_bounds = array<i64: 1, 1>}, {pipeline_mode = #tpu.pipeline_mode<synchronous>, transform_indices = @transform_8, window_bounds = array<i64: 2, 1>}]} {
    %c0_i32 = arith.constant 0 : i32
    %0 = arith.cmpi eq, %arg0, %c0_i32 : i32
    %1 = arith.extui %0 : i1 to i32
    %c0_i32_0 = arith.constant 0 : i32
    %2 = arith.cmpi ne, %1, %c0_i32_0 : i32
    scf.if %2 {
      %cst_81 = arith.constant 0.000000e+00 : f32
      %271 = vector.broadcast %cst_81 : f32 to vector<2x128xf32>
      %c0_82 = arith.constant 0 : index
      %c0_83 = arith.constant 0 : index
      %272 = vector.load %arg11[%c0_82, %c0_83] : memref<2x128xf32, #tpu.memory_space<vmem>>, vector<2x128xf32>
      tpu.vector_store %arg11[%c0_82, %c0_83], %271 {strides = array<i32>} : memref<2x128xf32, #tpu.memory_space<vmem>>, vector<2x128xf32>,
      %cst_84 = arith.constant 0.000000e+00 : f32
      %273 = vector.broadcast %cst_84 : f32 to vector<2x128xf32>
      %c0_85 = arith.constant 0 : index
      %c0_86 = arith.constant 0 : index
      %274 = vector.load %arg12[%c0_85, %c0_86] : memref<2x128xf32, #tpu.memory_space<vmem>>, vector<2x128xf32>
      tpu.vector_store %arg12[%c0_85, %c0_86], %273 {strides = array<i32>} : memref<2x128xf32, #tpu.memory_space<vmem>>, vector<2x128xf32>,
      %cst_87 = arith.constant 0xFF800000 : f32
      %275 = vector.broadcast %cst_87 : f32 to vector<2x128xf32>
      %c0_88 = arith.constant 0 : index
      %c0_89 = arith.constant 0 : index
      %276 = vector.load %arg13[%c0_88, %c0_89] : memref<2x128xf32, #tpu.memory_space<vmem>>, vector<2x128xf32>
      tpu.vector_store %arg13[%c0_88, %c0_89], %275 {strides = array<i32>} : memref<2x128xf32, #tpu.memory_space<vmem>>, vector<2x128xf32>,
    } else {
    }
    %c0 = arith.constant 0 : index
    %c0_1 = arith.constant 0 : index
    %c0_2 = arith.constant 0 : index
    %3 = vector.load %arg1[%c0, %c0_1, %c0_2] : memref<2x8x768xf32, #tpu.memory_space<vmem>>, vector<2x8x768xf32>
    %4 = vector.shape_cast %3 : vector<2x8x768xf32> to vector<16x768xf32>
    %5 = arith.truncf %4 : vector<16x768xf32> to vector<16x768xbf16>
    %c0_3 = arith.constant 0 : index
    %c0_4 = arith.constant 0 : index
    %6 = vector.load %arg2[%c0_3, %c0_4] : memref<768x128xbf16, #tpu.memory_space<vmem>>, vector<768x128xbf16>
    %cst = arith.constant dense<0.000000e+00> : vector<16x128xf32>
    %7 = tpu.matmul %5, %6, %cst {dimension_numbers = #tpu.dot_dimension_numbers<[1], [0], [0], [1], [0, 0, 1, 1], [], []>} : vector<16x768xbf16>, vector<768x128xbf16>, vector<16x128xf32> -> vector<16x128xf32>
    %c0_5 = arith.constant 0 : index
    %c0_6 = arith.constant 0 : index
    %8 = vector.load %arg3[%c0_5, %c0_6] : memref<1x128xf32, #tpu.memory_space<vmem>>, vector<1x128xf32>
    %9 = vector.broadcast %8 : vector<1x128xf32> to vector<16x128xf32>
    %10 = arith.addf %7, %9 : vector<16x128xf32>
    %cst_7 = arith.constant 0.000000e+00 : f32
    %11 = vector.broadcast %cst_7 : f32 to vector<16x128xf32>
    %12 = arith.maximumf %10, %11 : vector<16x128xf32>
    %13 = arith.truncf %12 : vector<16x128xf32> to vector<16x128xbf16>
    %c0_8 = arith.constant 0 : index
    %c0_9 = arith.constant 0 : index
    %14 = vector.load %arg4[%c0_8, %c0_9] : memref<128x512xbf16, #tpu.memory_space<vmem>>, vector<128x512xbf16>
    %cst_10 = arith.constant dense<0.000000e+00> : vector<16x512xf32>
    %15 = tpu.matmul %13, %14, %cst_10 {dimension_numbers = #tpu.dot_dimension_numbers<[1], [0], [0], [1], [0, 0, 1, 1], [], []>} : vector<16x128xbf16>, vector<128x512xbf16>, vector<16x512xf32> -> vector<16x512xf32>
    %c0_11 = arith.constant 0 : index
    %c0_12 = arith.constant 0 : index
    %16 = vector.load %arg5[%c0_11, %c0_12] : memref<1x512xf32, #tpu.memory_space<vmem>>, vector<1x512xf32>
    %17 = vector.broadcast %16 : vector<1x512xf32> to vector<16x512xf32>
    %18 = arith.addf %15, %17 : vector<16x512xf32>
    %19 = vector.shape_cast %18 : vector<16x512xf32> to vector<2x8x512xf32>
    %c0_13 = arith.constant 0 : index
    %c0_14 = arith.constant 0 : index
    %c0_15 = arith.constant 0 : index
    %20 = vector.load %arg10[%c0_13, %c0_14, %c0_15] : memref<2x8x512xf32, #tpu.memory_space<vmem>>, vector<2x8x512xf32>
    tpu.vector_store %arg10[%c0_13, %c0_14, %c0_15], %19 {strides = array<i32>} : memref<2x8x512xf32, #tpu.memory_space<vmem>>, vector<2x8x512xf32>,
    %c0_16 = arith.constant 0 : index
    %c0_17 = arith.constant 0 : index
    %21 = vector.load %arg11[%c0_16, %c0_17] : memref<2x128xf32, #tpu.memory_space<vmem>>, vector<2x128xf32>
    %c0_18 = arith.constant 0 : index
    %c0_19 = arith.constant 0 : index
    %22 = vector.load %arg12[%c0_18, %c0_19] : memref<2x128xf32, #tpu.memory_space<vmem>>, vector<2x128xf32>
    %c0_20 = arith.constant 0 : index
    %c0_21 = arith.constant 0 : index
    %23 = vector.load %arg13[%c0_20, %c0_21] : memref<2x128xf32, #tpu.memory_space<vmem>>, vector<2x128xf32>
    %c0_22 = arith.constant 0 : index
    %c0_23 = arith.constant 0 : index
    %24 = vector.load %arg6[%c0_22, %c0_23] : memref<128x512xf32, #tpu.memory_space<vmem>>, vector<128x512xf32>
    %c0_24 = arith.constant 0 : index
    %c0_25 = arith.constant 0 : index
    %c0_26 = arith.constant 0 : index
    %25 = vector.load %arg10[%c0_24, %c0_25, %c0_26] : memref<2x8x512xf32, #tpu.memory_space<vmem>>, vector<2x1x512xf32>
    %26 = vector.shape_cast %25 : vector<2x1x512xf32> to vector<2x512xf32>
    %cst_27 = arith.constant dense<0.000000e+00> : vector<2x512xf32>
    %27 = tpu.matmul %21, %24, %cst_27 {dimension_numbers = #tpu.dot_dimension_numbers<[1], [0], [0], [1], [0, 0, 1, 1], [], []>} : vector<2x128xf32>, vector<128x512xf32>, vector<2x512xf32> -> vector<2x512xf32>
    %28 = arith.addf %26, %27 : vector<2x512xf32>
    %29 = vector.extract_strided_slice %28 {offsets = [0, 0], sizes = [2, 128], strides = [1, 1]} : vector<2x512xf32> to vector<2x128xf32>
    %30 = arith.negf %29 : vector<2x128xf32>
    %31 = math.exp %30 : vector<2x128xf32>
    %cst_28 = arith.constant 1.000000e+00 : f32
    %32 = vector.broadcast %cst_28 : f32 to vector<2x128xf32>
    %33 = arith.addf %32, %31 : vector<2x128xf32>
    %34 = arith.divf %32, %33 : vector<2x128xf32>
    %35 = vector.extract_strided_slice %28 {offsets = [0, 128], sizes = [2, 128], strides = [1, 1]} : vector<2x512xf32> to vector<2x128xf32>
    %36 = arith.negf %35 : vector<2x128xf32>
    %37 = math.exp %36 : vector<2x128xf32>
    %cst_29 = arith.constant 1.000000e+00 : f32
    %38 = vector.broadcast %cst_29 : f32 to vector<2x128xf32>
    %39 = arith.addf %38, %37 : vector<2x128xf32>
    %40 = arith.divf %38, %39 : vector<2x128xf32>
    %41 = vector.extract_strided_slice %28 {offsets = [0, 256], sizes = [2, 128], strides = [1, 1]} : vector<2x512xf32> to vector<2x128xf32>
    %42 = math.tanh %41 : vector<2x128xf32>
    %43 = vector.extract_strided_slice %28 {offsets = [0, 384], sizes = [2, 128], strides = [1, 1]} : vector<2x512xf32> to vector<2x128xf32>
    %44 = arith.negf %43 : vector<2x128xf32>
    %45 = math.exp %44 : vector<2x128xf32>
    %cst_30 = arith.constant 1.000000e+00 : f32
    %46 = vector.broadcast %cst_30 : f32 to vector<2x128xf32>
    %47 = arith.addf %46, %45 : vector<2x128xf32>
    %48 = arith.divf %46, %47 : vector<2x128xf32>
    %49 = arith.mulf %40, %22 : vector<2x128xf32>
    %50 = arith.mulf %34, %42 : vector<2x128xf32>
    %51 = arith.addf %49, %50 : vector<2x128xf32>
    %52 = math.tanh %51 : vector<2x128xf32>
    %53 = arith.mulf %48, %52 : vector<2x128xf32>
    %54 = arith.maximumf %23, %53 : vector<2x128xf32>
    %c0_31 = arith.constant 0 : index
    %c1 = arith.constant 1 : index
    %c0_32 = arith.constant 0 : index
    %55 = vector.load %arg10[%c0_31, %c1, %c0_32] : memref<2x8x512xf32, #tpu.memory_space<vmem>>, vector<2x1x512xf32>
    %56 = vector.shape_cast %55 : vector<2x1x512xf32> to vector<2x512xf32>
    %cst_33 = arith.constant dense<0.000000e+00> : vector<2x512xf32>
    %57 = tpu.matmul %53, %24, %cst_33 {dimension_numbers = #tpu.dot_dimension_numbers<[1], [0], [0], [1], [0, 0, 1, 1], [], []>} : vector<2x128xf32>, vector<128x512xf32>, vector<2x512xf32> -> vector<2x512xf32>
    %58 = arith.addf %56, %57 : vector<2x512xf32>
    %59 = vector.extract_strided_slice %58 {offsets = [0, 0], sizes = [2, 128], strides = [1, 1]} : vector<2x512xf32> to vector<2x128xf32>
    %60 = arith.negf %59 : vector<2x128xf32>
    %61 = math.exp %60 : vector<2x128xf32>
    %cst_34 = arith.constant 1.000000e+00 : f32
    %62 = vector.broadcast %cst_34 : f32 to vector<2x128xf32>
    %63 = arith.addf %62, %61 : vector<2x128xf32>
    %64 = arith.divf %62, %63 : vector<2x128xf32>
    %65 = vector.extract_strided_slice %58 {offsets = [0, 128], sizes = [2, 128], strides = [1, 1]} : vector<2x512xf32> to vector<2x128xf32>
    %66 = arith.negf %65 : vector<2x128xf32>
    %67 = math.exp %66 : vector<2x128xf32>
    %cst_35 = arith.constant 1.000000e+00 : f32
    %68 = vector.broadcast %cst_35 : f32 to vector<2x128xf32>
    %69 = arith.addf %68, %67 : vector<2x128xf32>
    %70 = arith.divf %68, %69 : vector<2x128xf32>
    %71 = vector.extract_strided_slice %58 {offsets = [0, 256], sizes = [2, 128], strides = [1, 1]} : vector<2x512xf32> to vector<2x128xf32>
    %72 = math.tanh %71 : vector<2x128xf32>
    %73 = vector.extract_strided_slice %58 {offsets = [0, 384], sizes = [2, 128], strides = [1, 1]} : vector<2x512xf32> to vector<2x128xf32>
    %74 = arith.negf %73 : vector<2x128xf32>
    %75 = math.exp %74 : vector<2x128xf32>
    %cst_36 = arith.constant 1.000000e+00 : f32
    %76 = vector.broadcast %cst_36 : f32 to vector<2x128xf32>
    %77 = arith.addf %76, %75 : vector<2x128xf32>
    %78 = arith.divf %76, %77 : vector<2x128xf32>
    %79 = arith.mulf %70, %51 : vector<2x128xf32>
    %80 = arith.mulf %64, %72 : vector<2x128xf32>
    %81 = arith.addf %79, %80 : vector<2x128xf32>
    %82 = math.tanh %81 : vector<2x128xf32>
    %83 = arith.mulf %78, %82 : vector<2x128xf32>
    %84 = arith.maximumf %54, %83 : vector<2x128xf32>
    %c0_37 = arith.constant 0 : index
    %c2 = arith.constant 2 : index
    %c0_38 = arith.constant 0 : index
    %85 = vector.load %arg10[%c0_37, %c2, %c0_38] : memref<2x8x512xf32, #tpu.memory_space<vmem>>, vector<2x1x512xf32>
    %86 = vector.shape_cast %85 : vector<2x1x512xf32> to vector<2x512xf32>
    %cst_39 = arith.constant dense<0.000000e+00> : vector<2x512xf32>
    %87 = tpu.matmul %83, %24, %cst_39 {dimension_numbers = #tpu.dot_dimension_numbers<[1], [0], [0], [1], [0, 0, 1, 1], [], []>} : vector<2x128xf32>, vector<128x512xf32>, vector<2x512xf32> -> vector<2x512xf32>
    %88 = arith.addf %86, %87 : vector<2x512xf32>
    %89 = vector.extract_strided_slice %88 {offsets = [0, 0], sizes = [2, 128], strides = [1, 1]} : vector<2x512xf32> to vector<2x128xf32>
    %90 = arith.negf %89 : vector<2x128xf32>
    %91 = math.exp %90 : vector<2x128xf32>
    %cst_40 = arith.constant 1.000000e+00 : f32
    %92 = vector.broadcast %cst_40 : f32 to vector<2x128xf32>
    %93 = arith.addf %92, %91 : vector<2x128xf32>
    %94 = arith.divf %92, %93 : vector<2x128xf32>
    %95 = vector.extract_strided_slice %88 {offsets = [0, 128], sizes = [2, 128], strides = [1, 1]} : vector<2x512xf32> to vector<2x128xf32>
    %96 = arith.negf %95 : vector<2x128xf32>
    %97 = math.exp %96 : vector<2x128xf32>
    %cst_41 = arith.constant 1.000000e+00 : f32
    %98 = vector.broadcast %cst_41 : f32 to vector<2x128xf32>
    %99 = arith.addf %98, %97 : vector<2x128xf32>
    %100 = arith.divf %98, %99 : vector<2x128xf32>
    %101 = vector.extract_strided_slice %88 {offsets = [0, 256], sizes = [2, 128], strides = [1, 1]} : vector<2x512xf32> to vector<2x128xf32>
    %102 = math.tanh %101 : vector<2x128xf32>
    %103 = vector.extract_strided_slice %88 {offsets = [0, 384], sizes = [2, 128], strides = [1, 1]} : vector<2x512xf32> to vector<2x128xf32>
    %104 = arith.negf %103 : vector<2x128xf32>
    %105 = math.exp %104 : vector<2x128xf32>
    %cst_42 = arith.constant 1.000000e+00 : f32
    %106 = vector.broadcast %cst_42 : f32 to vector<2x128xf32>
    %107 = arith.addf %106, %105 : vector<2x128xf32>
    %108 = arith.divf %106, %107 : vector<2x128xf32>
    %109 = arith.mulf %100, %81 : vector<2x128xf32>
    %110 = arith.mulf %94, %102 : vector<2x128xf32>
    %111 = arith.addf %109, %110 : vector<2x128xf32>
    %112 = math.tanh %111 : vector<2x128xf32>
    %113 = arith.mulf %108, %112 : vector<2x128xf32>
    %114 = arith.maximumf %84, %113 : vector<2x128xf32>
    %c0_43 = arith.constant 0 : index
    %c3 = arith.constant 3 : index
    %c0_44 = arith.constant 0 : index
    %115 = vector.load %arg10[%c0_43, %c3, %c0_44] : memref<2x8x512xf32, #tpu.memory_space<vmem>>, vector<2x1x512xf32>
    %116 = vector.shape_cast %115 : vector<2x1x512xf32> to vector<2x512xf32>
    %cst_45 = arith.constant dense<0.000000e+00> : vector<2x512xf32>
    %117 = tpu.matmul %113, %24, %cst_45 {dimension_numbers = #tpu.dot_dimension_numbers<[1], [0], [0], [1], [0, 0, 1, 1], [], []>} : vector<2x128xf32>, vector<128x512xf32>, vector<2x512xf32> -> vector<2x512xf32>
    %118 = arith.addf %116, %117 : vector<2x512xf32>
    %119 = vector.extract_strided_slice %118 {offsets = [0, 0], sizes = [2, 128], strides = [1, 1]} : vector<2x512xf32> to vector<2x128xf32>
    %120 = arith.negf %119 : vector<2x128xf32>
    %121 = math.exp %120 : vector<2x128xf32>
    %cst_46 = arith.constant 1.000000e+00 : f32
    %122 = vector.broadcast %cst_46 : f32 to vector<2x128xf32>
    %123 = arith.addf %122, %121 : vector<2x128xf32>
    %124 = arith.divf %122, %123 : vector<2x128xf32>
    %125 = vector.extract_strided_slice %118 {offsets = [0, 128], sizes = [2, 128], strides = [1, 1]} : vector<2x512xf32> to vector<2x128xf32>
    %126 = arith.negf %125 : vector<2x128xf32>
    %127 = math.exp %126 : vector<2x128xf32>
    %cst_47 = arith.constant 1.000000e+00 : f32
    %128 = vector.broadcast %cst_47 : f32 to vector<2x128xf32>
    %129 = arith.addf %128, %127 : vector<2x128xf32>
    %130 = arith.divf %128, %129 : vector<2x128xf32>
    %131 = vector.extract_strided_slice %118 {offsets = [0, 256], sizes = [2, 128], strides = [1, 1]} : vector<2x512xf32> to vector<2x128xf32>
    %132 = math.tanh %131 : vector<2x128xf32>
    %133 = vector.extract_strided_slice %118 {offsets = [0, 384], sizes = [2, 128], strides = [1, 1]} : vector<2x512xf32> to vector<2x128xf32>
    %134 = arith.negf %133 : vector<2x128xf32>
    %135 = math.exp %134 : vector<2x128xf32>
    %cst_48 = arith.constant 1.000000e+00 : f32
    %136 = vector.broadcast %cst_48 : f32 to vector<2x128xf32>
    %137 = arith.addf %136, %135 : vector<2x128xf32>
    %138 = arith.divf %136, %137 : vector<2x128xf32>
    %139 = arith.mulf %130, %111 : vector<2x128xf32>
    %140 = arith.mulf %124, %132 : vector<2x128xf32>
    %141 = arith.addf %139, %140 : vector<2x128xf32>
    %142 = math.tanh %141 : vector<2x128xf32>
    %143 = arith.mulf %138, %142 : vector<2x128xf32>
    %144 = arith.maximumf %114, %143 : vector<2x128xf32>
    %c0_49 = arith.constant 0 : index
    %c4 = arith.constant 4 : index
    %c0_50 = arith.constant 0 : index
    %145 = vector.load %arg10[%c0_49, %c4, %c0_50] : memref<2x8x512xf32, #tpu.memory_space<vmem>>, vector<2x1x512xf32>
    %146 = vector.shape_cast %145 : vector<2x1x512xf32> to vector<2x512xf32>
    %cst_51 = arith.constant dense<0.000000e+00> : vector<2x512xf32>
    %147 = tpu.matmul %143, %24, %cst_51 {dimension_numbers = #tpu.dot_dimension_numbers<[1], [0], [0], [1], [0, 0, 1, 1], [], []>} : vector<2x128xf32>, vector<128x512xf32>, vector<2x512xf32> -> vector<2x512xf32>
    %148 = arith.addf %146, %147 : vector<2x512xf32>
    %149 = vector.extract_strided_slice %148 {offsets = [0, 0], sizes = [2, 128], strides = [1, 1]} : vector<2x512xf32> to vector<2x128xf32>
    %150 = arith.negf %149 : vector<2x128xf32>
    %151 = math.exp %150 : vector<2x128xf32>
    %cst_52 = arith.constant 1.000000e+00 : f32
    %152 = vector.broadcast %cst_52 : f32 to vector<2x128xf32>
    %153 = arith.addf %152, %151 : vector<2x128xf32>
    %154 = arith.divf %152, %153 : vector<2x128xf32>
    %155 = vector.extract_strided_slice %148 {offsets = [0, 128], sizes = [2, 128], strides = [1, 1]} : vector<2x512xf32> to vector<2x128xf32>
    %156 = arith.negf %155 : vector<2x128xf32>
    %157 = math.exp %156 : vector<2x128xf32>
    %cst_53 = arith.constant 1.000000e+00 : f32
    %158 = vector.broadcast %cst_53 : f32 to vector<2x128xf32>
    %159 = arith.addf %158, %157 : vector<2x128xf32>
    %160 = arith.divf %158, %159 : vector<2x128xf32>
    %161 = vector.extract_strided_slice %148 {offsets = [0, 256], sizes = [2, 128], strides = [1, 1]} : vector<2x512xf32> to vector<2x128xf32>
    %162 = math.tanh %161 : vector<2x128xf32>
    %163 = vector.extract_strided_slice %148 {offsets = [0, 384], sizes = [2, 128], strides = [1, 1]} : vector<2x512xf32> to vector<2x128xf32>
    %164 = arith.negf %163 : vector<2x128xf32>
    %165 = math.exp %164 : vector<2x128xf32>
    %cst_54 = arith.constant 1.000000e+00 : f32
    %166 = vector.broadcast %cst_54 : f32 to vector<2x128xf32>
    %167 = arith.addf %166, %165 : vector<2x128xf32>
    %168 = arith.divf %166, %167 : vector<2x128xf32>
    %169 = arith.mulf %160, %141 : vector<2x128xf32>
    %170 = arith.mulf %154, %162 : vector<2x128xf32>
    %171 = arith.addf %169, %170 : vector<2x128xf32>
    %172 = math.tanh %171 : vector<2x128xf32>
    %173 = arith.mulf %168, %172 : vector<2x128xf32>
    %174 = arith.maximumf %144, %173 : vector<2x128xf32>
    %c0_55 = arith.constant 0 : index
    %c5 = arith.constant 5 : index
    %c0_56 = arith.constant 0 : index
    %175 = vector.load %arg10[%c0_55, %c5, %c0_56] : memref<2x8x512xf32, #tpu.memory_space<vmem>>, vector<2x1x512xf32>
    %176 = vector.shape_cast %175 : vector<2x1x512xf32> to vector<2x512xf32>
    %cst_57 = arith.constant dense<0.000000e+00> : vector<2x512xf32>
    %177 = tpu.matmul %173, %24, %cst_57 {dimension_numbers = #tpu.dot_dimension_numbers<[1], [0], [0], [1], [0, 0, 1, 1], [], []>} : vector<2x128xf32>, vector<128x512xf32>, vector<2x512xf32> -> vector<2x512xf32>
    %178 = arith.addf %176, %177 : vector<2x512xf32>
    %179 = vector.extract_strided_slice %178 {offsets = [0, 0], sizes = [2, 128], strides = [1, 1]} : vector<2x512xf32> to vector<2x128xf32>
    %180 = arith.negf %179 : vector<2x128xf32>
    %181 = math.exp %180 : vector<2x128xf32>
    %cst_58 = arith.constant 1.000000e+00 : f32
    %182 = vector.broadcast %cst_58 : f32 to vector<2x128xf32>
    %183 = arith.addf %182, %181 : vector<2x128xf32>
    %184 = arith.divf %182, %183 : vector<2x128xf32>
    %185 = vector.extract_strided_slice %178 {offsets = [0, 128], sizes = [2, 128], strides = [1, 1]} : vector<2x512xf32> to vector<2x128xf32>
    %186 = arith.negf %185 : vector<2x128xf32>
    %187 = math.exp %186 : vector<2x128xf32>
    %cst_59 = arith.constant 1.000000e+00 : f32
    %188 = vector.broadcast %cst_59 : f32 to vector<2x128xf32>
    %189 = arith.addf %188, %187 : vector<2x128xf32>
    %190 = arith.divf %188, %189 : vector<2x128xf32>
    %191 = vector.extract_strided_slice %178 {offsets = [0, 256], sizes = [2, 128], strides = [1, 1]} : vector<2x512xf32> to vector<2x128xf32>
    %192 = math.tanh %191 : vector<2x128xf32>
    %193 = vector.extract_strided_slice %178 {offsets = [0, 384], sizes = [2, 128], strides = [1, 1]} : vector<2x512xf32> to vector<2x128xf32>
    %194 = arith.negf %193 : vector<2x128xf32>
    %195 = math.exp %194 : vector<2x128xf32>
    %cst_60 = arith.constant 1.000000e+00 : f32
    %196 = vector.broadcast %cst_60 : f32 to vector<2x128xf32>
    %197 = arith.addf %196, %195 : vector<2x128xf32>
    %198 = arith.divf %196, %197 : vector<2x128xf32>
    %199 = arith.mulf %190, %171 : vector<2x128xf32>
    %200 = arith.mulf %184, %192 : vector<2x128xf32>
    %201 = arith.addf %199, %200 : vector<2x128xf32>
    %202 = math.tanh %201 : vector<2x128xf32>
    %203 = arith.mulf %198, %202 : vector<2x128xf32>
    %204 = arith.maximumf %174, %203 : vector<2x128xf32>
    %c0_61 = arith.constant 0 : index
    %c6 = arith.constant 6 : index
    %c0_62 = arith.constant 0 : index
    %205 = vector.load %arg10[%c0_61, %c6, %c0_62] : memref<2x8x512xf32, #tpu.memory_space<vmem>>, vector<2x1x512xf32>
    %206 = vector.shape_cast %205 : vector<2x1x512xf32> to vector<2x512xf32>
    %cst_63 = arith.constant dense<0.000000e+00> : vector<2x512xf32>
    %207 = tpu.matmul %203, %24, %cst_63 {dimension_numbers = #tpu.dot_dimension_numbers<[1], [0], [0], [1], [0, 0, 1, 1], [], []>} : vector<2x128xf32>, vector<128x512xf32>, vector<2x512xf32> -> vector<2x512xf32>
    %208 = arith.addf %206, %207 : vector<2x512xf32>
    %209 = vector.extract_strided_slice %208 {offsets = [0, 0], sizes = [2, 128], strides = [1, 1]} : vector<2x512xf32> to vector<2x128xf32>
    %210 = arith.negf %209 : vector<2x128xf32>
    %211 = math.exp %210 : vector<2x128xf32>
    %cst_64 = arith.constant 1.000000e+00 : f32
    %212 = vector.broadcast %cst_64 : f32 to vector<2x128xf32>
    %213 = arith.addf %212, %211 : vector<2x128xf32>
    %214 = arith.divf %212, %213 : vector<2x128xf32>
    %215 = vector.extract_strided_slice %208 {offsets = [0, 128], sizes = [2, 128], strides = [1, 1]} : vector<2x512xf32> to vector<2x128xf32>
    %216 = arith.negf %215 : vector<2x128xf32>
    %217 = math.exp %216 : vector<2x128xf32>
    %cst_65 = arith.constant 1.000000e+00 : f32
    %218 = vector.broadcast %cst_65 : f32 to vector<2x128xf32>
    %219 = arith.addf %218, %217 : vector<2x128xf32>
    %220 = arith.divf %218, %219 : vector<2x128xf32>
    %221 = vector.extract_strided_slice %208 {offsets = [0, 256], sizes = [2, 128], strides = [1, 1]} : vector<2x512xf32> to vector<2x128xf32>
    %222 = math.tanh %221 : vector<2x128xf32>
    %223 = vector.extract_strided_slice %208 {offsets = [0, 384], sizes = [2, 128], strides = [1, 1]} : vector<2x512xf32> to vector<2x128xf32>
    %224 = arith.negf %223 : vector<2x128xf32>
    %225 = math.exp %224 : vector<2x128xf32>
    %cst_66 = arith.constant 1.000000e+00 : f32
    %226 = vector.broadcast %cst_66 : f32 to vector<2x128xf32>
    %227 = arith.addf %226, %225 : vector<2x128xf32>
    %228 = arith.divf %226, %227 : vector<2x128xf32>
    %229 = arith.mulf %220, %201 : vector<2x128xf32>
    %230 = arith.mulf %214, %222 : vector<2x128xf32>
    %231 = arith.addf %229, %230 : vector<2x128xf32>
    %232 = math.tanh %231 : vector<2x128xf32>
    %233 = arith.mulf %228, %232 : vector<2x128xf32>
    %234 = arith.maximumf %204, %233 : vector<2x128xf32>
    %c0_67 = arith.constant 0 : index
    %c7 = arith.constant 7 : index
    %c0_68 = arith.constant 0 : index
    %235 = vector.load %arg10[%c0_67, %c7, %c0_68] : memref<2x8x512xf32, #tpu.memory_space<vmem>>, vector<2x1x512xf32>
    %236 = vector.shape_cast %235 : vector<2x1x512xf32> to vector<2x512xf32>
    %cst_69 = arith.constant dense<0.000000e+00> : vector<2x512xf32>
    %237 = tpu.matmul %233, %24, %cst_69 {dimension_numbers = #tpu.dot_dimension_numbers<[1], [0], [0], [1], [0, 0, 1, 1], [], []>} : vector<2x128xf32>, vector<128x512xf32>, vector<2x512xf32> -> vector<2x512xf32>
    %238 = arith.addf %236, %237 : vector<2x512xf32>
    %239 = vector.extract_strided_slice %238 {offsets = [0, 0], sizes = [2, 128], strides = [1, 1]} : vector<2x512xf32> to vector<2x128xf32>
    %240 = arith.negf %239 : vector<2x128xf32>
    %241 = math.exp %240 : vector<2x128xf32>
    %cst_70 = arith.constant 1.000000e+00 : f32
    %242 = vector.broadcast %cst_70 : f32 to vector<2x128xf32>
    %243 = arith.addf %242, %241 : vector<2x128xf32>
    %244 = arith.divf %242, %243 : vector<2x128xf32>
    %245 = vector.extract_strided_slice %238 {offsets = [0, 128], sizes = [2, 128], strides = [1, 1]} : vector<2x512xf32> to vector<2x128xf32>
    %246 = arith.negf %245 : vector<2x128xf32>
    %247 = math.exp %246 : vector<2x128xf32>
    %cst_71 = arith.constant 1.000000e+00 : f32
    %248 = vector.broadcast %cst_71 : f32 to vector<2x128xf32>
    %249 = arith.addf %248, %247 : vector<2x128xf32>
    %250 = arith.divf %248, %249 : vector<2x128xf32>
    %251 = vector.extract_strided_slice %238 {offsets = [0, 256], sizes = [2, 128], strides = [1, 1]} : vector<2x512xf32> to vector<2x128xf32>
    %252 = math.tanh %251 : vector<2x128xf32>
    %253 = vector.extract_strided_slice %238 {offsets = [0, 384], sizes = [2, 128], strides = [1, 1]} : vector<2x512xf32> to vector<2x128xf32>
    %254 = arith.negf %253 : vector<2x128xf32>
    %255 = math.exp %254 : vector<2x128xf32>
    %cst_72 = arith.constant 1.000000e+00 : f32
    %256 = vector.broadcast %cst_72 : f32 to vector<2x128xf32>
    %257 = arith.addf %256, %255 : vector<2x128xf32>
    %258 = arith.divf %256, %257 : vector<2x128xf32>
    %259 = arith.mulf %250, %231 : vector<2x128xf32>
    %260 = arith.mulf %244, %252 : vector<2x128xf32>
    %261 = arith.addf %259, %260 : vector<2x128xf32>
    %262 = math.tanh %261 : vector<2x128xf32>
    %263 = arith.mulf %258, %262 : vector<2x128xf32>
    %264 = arith.maximumf %234, %263 : vector<2x128xf32>
    %c0_73 = arith.constant 0 : index
    %c0_74 = arith.constant 0 : index
    %265 = vector.load %arg11[%c0_73, %c0_74] : memref<2x128xf32, #tpu.memory_space<vmem>>, vector<2x128xf32>
    tpu.vector_store %arg11[%c0_73, %c0_74], %263 {strides = array<i32>} : memref<2x128xf32, #tpu.memory_space<vmem>>, vector<2x128xf32>,
    %c0_75 = arith.constant 0 : index
    %c0_76 = arith.constant 0 : index
    %266 = vector.load %arg12[%c0_75, %c0_76] : memref<2x128xf32, #tpu.memory_space<vmem>>, vector<2x128xf32>
    tpu.vector_store %arg12[%c0_75, %c0_76], %261 {strides = array<i32>} : memref<2x128xf32, #tpu.memory_space<vmem>>, vector<2x128xf32>,
    %c0_77 = arith.constant 0 : index
    %c0_78 = arith.constant 0 : index
    %267 = vector.load %arg13[%c0_77, %c0_78] : memref<2x128xf32, #tpu.memory_space<vmem>>, vector<2x128xf32>
    tpu.vector_store %arg13[%c0_77, %c0_78], %264 {strides = array<i32>} : memref<2x128xf32, #tpu.memory_space<vmem>>, vector<2x128xf32>,
    %c0_i32_79 = arith.constant 0 : i32
    %268 = arith.cmpi eq, %arg0, %c0_i32_79 : i32
    %269 = arith.extui %268 : i1 to i32
    %c0_i32_80 = arith.constant 0 : i32
    %270 = arith.cmpi ne, %269, %c0_i32_80 : i32
    scf.if %270 {
      %c0_81 = arith.constant 0 : index
      %c0_82 = arith.constant 0 : index
      %271 = vector.load %arg13[%c0_81, %c0_82] : memref<2x128xf32, #tpu.memory_space<vmem>>, vector<2x128xf32>
      %c0_83 = arith.constant 0 : index
      %c0_84 = arith.constant 0 : index
      %272 = vector.load %arg7[%c0_83, %c0_84] : memref<1x128xf32, #tpu.memory_space<vmem>>, vector<1x128xf32>
      %273 = vector.broadcast %272 : vector<1x128xf32> to vector<2x128xf32>
      %274 = arith.mulf %271, %273 : vector<2x128xf32>
      %cst_85 = arith.constant dense<0.000000e+00> : vector<2xf32>
      %275 = vector.multi_reduction <add>, %274, %cst_85 [1] : vector<2x128xf32> to vector<2xf32>
      %276 = vector.shape_cast %275 : vector<2xf32> to vector<2x1xf32>
      %c0_86 = arith.constant 0 : index
      %c0_87 = arith.constant 0 : index
      %277 = vector.load %arg8[%c0_86, %c0_87] : memref<1x1xf32, #tpu.memory_space<vmem>>, vector<1x1xf32>
      %278 = vector.broadcast %277 : vector<1x1xf32> to vector<2x1xf32>
      %279 = arith.addf %276, %278 : vector<2x1xf32>
      %280 = arith.negf %279 : vector<2x1xf32>
      %281 = math.exp %280 : vector<2x1xf32>
      %cst_88 = arith.constant 1.000000e+00 : f32
      %282 = vector.broadcast %cst_88 : f32 to vector<2x1xf32>
      %283 = arith.addf %282, %281 : vector<2x1xf32>
      %284 = arith.divf %282, %283 : vector<2x1xf32>
      %c0_89 = arith.constant 0 : index
      %c0_90 = arith.constant 0 : index
      %285 = vector.load %arg9[%c0_89, %c0_90] : memref<2x1xf32, #tpu.memory_space<vmem>>, vector<2x1xf32>
      tpu.vector_store %arg9[%c0_89, %c0_90], %284 {strides = array<i32>} : memref<2x1xf32, #tpu.memory_space<vmem>>, vector<2x1xf32>,
    } else {
    }
    return
  }
  func.func @transform_0(%arg0: i32) -> (i32, i32, i32) {
    %c0_i32 = arith.constant 0 : i32
    %c0_i32_0 = arith.constant 0 : i32
    %c0_i32_1 = arith.constant 0 : i32
    return %c0_i32, %arg0, %c0_i32_0 : i32, i32, i32
  }
  func.func @transform_1(%arg0: i32) -> (i32, i32) {
    %c0_i32 = arith.constant 0 : i32
    %c0_i32_0 = arith.constant 0 : i32
    %c0_i32_1 = arith.constant 0 : i32
    return %c0_i32, %c0_i32_0 : i32, i32
  }
  func.func @transform_2(%arg0: i32) -> (i32, i32) {
    %c0_i32 = arith.constant 0 : i32
    %c0_i32_0 = arith.constant 0 : i32
    %c0_i32_1 = arith.constant 0 : i32
    return %c0_i32, %c0_i32_0 : i32, i32
  }
  func.func @transform_3(%arg0: i32) -> (i32, i32) {
    %c0_i32 = arith.constant 0 : i32
    %c0_i32_0 = arith.constant 0 : i32
    %c0_i32_1 = arith.constant 0 : i32
    return %c0_i32, %c0_i32_0 : i32, i32
  }
  func.func @transform_4(%arg0: i32) -> (i32, i32) {
    %c0_i32 = arith.constant 0 : i32
    %c0_i32_0 = arith.constant 0 : i32
    %c0_i32_1 = arith.constant 0 : i32
    return %c0_i32, %c0_i32_0 : i32, i32
  }
  func.func @transform_5(%arg0: i32) -> (i32, i32) {
    %c0_i32 = arith.constant 0 : i32
    %c0_i32_0 = arith.constant 0 : i32
    %c0_i32_1 = arith.constant 0 : i32
    return %c0_i32, %c0_i32_0 : i32, i32
  }
  func.func @transform_6(%arg0: i32) -> (i32, i32) {
    %c0_i32 = arith.constant 0 : i32
    %c0_i32_0 = arith.constant 0 : i32
    %c0_i32_1 = arith.constant 0 : i32
    return %c0_i32, %c0_i32_0 : i32, i32
  }
  func.func @transform_7(%arg0: i32) -> (i32, i32) {
    %c0_i32 = arith.constant 0 : i32
    %c0_i32_0 = arith.constant 0 : i32
    %c0_i32_1 = arith.constant 0 : i32
    return %c0_i32, %c0_i32_0 : i32, i32
  }
  func.func @transform_8(%arg0: i32) -> (i32, i32) {
    %c0_i32 = arith.constant 0 : i32
    %c0_i32_0 = arith.constant 0 : i32
    %c0_i32_1 = arith.constant 0 : i32
    return %c0_i32, %c0_i32_0 : i32, i32
  }
}

</mosaic_0001>

<llo_original>
// kernel: tpu_custom_call.1
$region0: #{tpu_custom_call.1}
  #allocation0 [shape = 'u32[]', space=smem, size = 0x4, offset = 0x4, fixed_abs, tag = 'smem constant byte address 0x4 - core index']
  #allocation1 [shape = 'u32[72,128]{1,0:T(1,128)}', space=vmem, size = 0x9000, scoped, tag = 'internal scratch']
  #allocation2 [shape = 'f32[2,8,512]{2,1,0:T(8,128)}', space=vmem, size = 0x8000, scoped, tag = 'scratch operand']
  #allocation3 [shape = 'f32[2,128]{1,0:T(2,128)}', space=vmem, size = 0x400, scoped, tag = 'scratch operand']
  #allocation4 [shape = 'f32[2,128]{1,0:T(2,128)}', space=vmem, size = 0x400, scoped, tag = 'scratch operand']
  #allocation5 [shape = 'f32[2,128]{1,0:T(2,128)}', space=vmem, size = 0x400, scoped, tag = 'scratch operand']
  #allocation6 [shape = 'f32[1,1]{1,0:T(1,128)S(1)}', space=vmem, size = 0x200, scoped, tag = 'scoped memory for tpu_custom_call.1']
  %s0 = inlined_call_operand.hbm [shape: f32[2,8,768], index: 0, kind: input, shape index: {}]
  %s1 = inlined_call_operand.hbm [shape: bf16[768,128], index: 1, kind: input, shape index: {}]
  %s2 = inlined_call_operand.vmem [shape: f32[1,128], index: 2, kind: input, shape index: {}]
  %s3 = inlined_call_operand.hbm [shape: bf16[128,512], index: 3, kind: input, shape index: {}]
  %s4 = inlined_call_operand.vmem [shape: f32[1,512], index: 4, kind: input, shape index: {}]
  %s5 = inlined_call_operand.hbm [shape: f32[128,512], index: 5, kind: input, shape index: {}]
  %s6 = inlined_call_operand.vmem [shape: f32[1,128], index: 6, kind: input, shape index: {}]
  %s7 = inlined_call_operand.<no memory space> [shape: f32[1,1], index: 7, kind: input, shape index: {}]
  %s8 = inlined_call_operand.vmem [shape: f32[2,1], index: 8, kind: output, shape index: {}]
  %s9 = sld [smem:[#allocation0]]
  $region66: #{tpu_custom_call.1} parent=0
    _
  %s11 = ssub.s32 1, %s9
  %s12 = scalar_select 0, %s11, %s9
  %v13 = vstv %s7
  %14 = vst [vmem:[#allocation6] sm:$0x1] %v13
  $region1: #{tpu_custom_call.1} parent=0
    #allocation7 [shape = 'u8[49152]{0}', space=vmem, size = 0xc000, scoped, tag = 'input window, operand 0, single buffered']
    #allocation8 [shape = 's32[1]{0}', space=sflag, size = 0x4, scoped, tag = 'scoped memory for tpu_custom_call.1']
    #allocation9 [shape = 'u8[196608]{0}', space=vmem, size = 0x30000, scoped, tag = 'input window, operand 1, single buffered']
    #allocation10 [shape = 's32[1]{0}', space=sflag, size = 0x4, scoped, tag = 'scoped memory for tpu_custom_call.1']
    #allocation11 [shape = 'u8[131072]{0}', space=vmem, size = 0x20000, scoped, tag = 'input window, operand 3, single buffered']
    #allocation12 [shape = 'u8[262144]{0}', space=vmem, size = 0x40000, scoped, tag = 'input window, operand 5, single buffered']
    #allocation13 [shape = 's32[1]{0}', space=sflag, size = 0x4, scoped, tag = 'scoped memory for tpu_custom_call.1']
    %15 = vsyncpa [#allocation8], 0
    %16 = vsyncpa [#allocation10], 0
    %17 = vsyncpa [#allocation13], 0
    // Predicated region
    $region2: #{tpu_custom_call.1} parent=1 // pred_check
      _
    $region3: #{tpu_custom_call.1} parent=1 // pred_check_branch
      %19 = sbr.rel (0) target = $region5
    $region4: #{tpu_custom_call.1} parent=1 // pred_region
      %21 = vsyncadd [#allocation8], 0
      %s22 = sshll.u32 %s0, 4
      %s23 = int_to_ptr.hbm [resolvable:$true] %s22
      %s24 = sshll.u32 [#allocation7], 4
      %s25 = int_to_ptr.vmem [resolvable:$true] %s24
      %30 = dma.hbm_to_vmem [thread:$0]  %s23, 1536, %s25, [#allocation8], 768, 768, 48
    $region5: #{tpu_custom_call.1} parent=1 // pred_fallthru
      _
    // Predicated region
    $region6: #{tpu_custom_call.1} parent=1 // pred_check
      _
    $region7: #{tpu_custom_call.1} parent=1 // pred_check_branch
      %32 = sbr.rel (0) target = $region9
    $region8: #{tpu_custom_call.1} parent=1 // pred_region
      %34 = vsyncadd [#allocation10], 0
      %s35 = sshll.u32 %s1, 4
      %s36 = int_to_ptr.hbm [resolvable:$true] %s35
      %s37 = sshll.u32 [#allocation9], 4
      %s38 = int_to_ptr.vmem [resolvable:$true] %s37
      %43 = dma.hbm_to_vmem [thread:$0]  %s36, 6144, %s38, [#allocation10], 64, 64, 4
    $region9: #{tpu_custom_call.1} parent=1 // pred_fallthru
      _
    // Predicated region
    $region10: #{tpu_custom_call.1} parent=1 // pred_check
      _
    $region11: #{tpu_custom_call.1} parent=1 // pred_check_branch
      %45 = sbr.rel (0) target = $region13
    $region12: #{tpu_custom_call.1} parent=1 // pred_region
      _
    $region13: #{tpu_custom_call.1} parent=1 // pred_fallthru
      _
    // Predicated region
    $region14: #{tpu_custom_call.1} parent=1 // pred_check
      _
    $region15: #{tpu_custom_call.1} parent=1 // pred_check_branch
      %47 = sbr.rel (0) target = $region17
    $region16: #{tpu_custom_call.1} parent=1 // pred_region
      %49 = vsyncadd [#allocation10], 0
      %s50 = sshll.u32 %s3, 4
      %s51 = int_to_ptr.hbm [resolvable:$true] %s50
      %s52 = sshll.u32 [#allocation11], 4
      %s53 = int_to_ptr.vmem [resolvable:$true] %s52
      %58 = dma.hbm_to_vmem [thread:$0]  %s51, 4096, %s53, [#allocation10], 256, 256, 16
    $region17: #{tpu_custom_call.1} parent=1 // pred_fallthru
      _
    // Predicated region
    $region18: #{tpu_custom_call.1} parent=1 // pred_check
      _
    $region19: #{tpu_custom_call.1} parent=1 // pred_check_branch
      %60 = sbr.rel (0) target = $region21
    $region20: #{tpu_custom_call.1} parent=1 // pred_region
      _
    $region21: #{tpu_custom_call.1} parent=1 // pred_fallthru
      _
    // Predicated region
    $region22: #{tpu_custom_call.1} parent=1 // pred_check
      _
    $region23: #{tpu_custom_call.1} parent=1 // pred_check_branch
      %62 = sbr.rel (0) target = $region25
    $region24: #{tpu_custom_call.1} parent=1 // pred_region
      %64 = vsyncadd [#allocation13], 0
      %s65 = sshll.u32 %s5, 4
      %s66 = int_to_ptr.hbm [resolvable:$true] %s65
      %s67 = sshll.u32 [#allocation12], 4
      %s68 = int_to_ptr.vmem [resolvable:$true] %s67
      %73 = dma.hbm_to_vmem [thread:$0]  %s66, 8192, %s68, [#allocation13], 512, 512, 32
    $region25: #{tpu_custom_call.1} parent=1 // pred_fallthru
      _
    // Predicated region
    $region26: #{tpu_custom_call.1} parent=1 // pred_check
      _
    $region27: #{tpu_custom_call.1} parent=1 // pred_check_branch
      %75 = sbr.rel (0) target = $region29
    $region28: #{tpu_custom_call.1} parent=1 // pred_region
      _
    $region29: #{tpu_custom_call.1} parent=1 // pred_fallthru
      _
    // Predicated region
    $region30: #{tpu_custom_call.1} parent=1 // pred_check
      _
    $region31: #{tpu_custom_call.1} parent=1 // pred_check_branch
      %77 = sbr.rel (0) target = $region33
    $region32: #{tpu_custom_call.1} parent=1 // pred_region
      _
    $region33: #{tpu_custom_call.1} parent=1 // pred_fallthru
      _
    // Predicated region
    $region34: #{tpu_custom_call.1} parent=1 // pred_check
      _
    $region35: #{tpu_custom_call.1} parent=1 // pred_check_branch
      %79 = sbr.rel (0) target = $region37
    $region36: #{tpu_custom_call.1} parent=1 // pred_region
      %81 = dma.done [#allocation8], 1536
    $region37: #{tpu_custom_call.1} parent=1 // pred_fallthru
      _
    // Predicated region
    $region38: #{tpu_custom_call.1} parent=1 // pred_check
      _
    $region39: #{tpu_custom_call.1} parent=1 // pred_check_branch
      %83 = sbr.rel (0) target = $region41
    $region40: #{tpu_custom_call.1} parent=1 // pred_region
      %85 = dma.done [#allocation10], 6144
    $region41: #{tpu_custom_call.1} parent=1 // pred_fallthru
      _
    // Predicated region
    $region42: #{tpu_custom_call.1} parent=1 // pred_check
      _
    $region43: #{tpu_custom_call.1} parent=1 // pred_check_branch
      %87 = sbr.rel (0) target = $region45
    $region44: #{tpu_custom_call.1} parent=1 // pred_region
      %89 = dma.done [#allocation10], 4096
    $region45: #{tpu_custom_call.1} parent=1 // pred_fallthru
      _
    // Predicated region
    $region46: #{tpu_custom_call.1} parent=1 // pred_check
      _
    $region47: #{tpu_custom_call.1} parent=1 // pred_check_branch
      %91 = sbr.rel (0) target = $region49
    $region48: #{tpu_custom_call.1} parent=1 // pred_region
      %93 = dma.done [#allocation13], 8192
    $region49: #{tpu_custom_call.1} parent=1 // pred_fallthru
      _
    %p94 = scmp.eq.s32.totalorder 0, 0
    // Predicated region
    $region50: #{tpu_custom_call.1} parent=1 // pred_check
      %p95 = pneg %p94
    $region51: #{tpu_custom_call.1} parent=1 // pred_check_branch
      %97 = sbr.rel (%p95) target = $region53
    $region52: #{tpu_custom_call.1} parent=1 // pred_region
      %98 = vst [vmem:[#allocation3] sm:$0x3] 0.0
      %99 = vst [vmem:[#allocation4] sm:$0x3] 0.0
      %100 = vst [vmem:[#allocation5] sm:$0x3] -inf
    $region53: #{tpu_custom_call.1} parent=1 // pred_fallthru
      _
    %v101 = vld [vmem:[#allocation7] sm:$0xff]
    %v102 = vld [vmem:[#allocation7 + $0x8] sm:$0xff]
    %v103 = vld [vmem:[#allocation7 + $0x10] sm:$0xff]
    %v104 = vld [vmem:[#allocation7 + $0x18] sm:$0xff]
    %v105 = vld [vmem:[#allocation7 + $0x20] sm:$0xff]
    %v106 = vld [vmem:[#allocation7 + $0x28] sm:$0xff]
    %v107 = vld [vmem:[#allocation7 + $0x30] sm:$0xff]
    %v108 = vld [vmem:[#allocation7 + $0x38] sm:$0xff]
    %v109 = vld [vmem:[#allocation7 + $0x40] sm:$0xff]
    %v110 = vld [vmem:[#allocation7 + $0x48] sm:$0xff]
    %v111 = vld [vmem:[#allocation7 + $0x50] sm:$0xff]
    %v112 = vld [vmem:[#allocation7 + $0x58] sm:$0xff]
    %v113 = vpack.c.bf16 %v107, %v101
    %v114 = vpack.c.bf16 %v108, %v102
    %v115 = vpack.c.bf16 %v109, %v103
    %v116 = vpack.c.bf16 %v110, %v104
    %v117 = vpack.c.bf16 %v111, %v105
    %v118 = vpack.c.bf16 %v112, %v106
    %v119 = vld [vmem:[#allocation9] sm:$0xf]
    %v120 = vld [vmem:[#allocation9 + $0x4] sm:$0xf]
    %v121 = vld [vmem:[#allocation9 + $0x8] sm:$0xf]
    %v122 = vld [vmem:[#allocation9 + $0xc] sm:$0xf]
    %v123 = vld [vmem:[#allocation9 + $0x10] sm:$0xf]
    %v124 = vld [vmem:[#allocation9 + $0x14] sm:$0xf]
    %v125 = vld [vmem:[#allocation9 + $0x18] sm:$0xf]
    %v126 = vld [vmem:[#allocation9 + $0x1c] sm:$0xf]
    %v127 = vld [vmem:[#allocation9 + $0x20] sm:$0xf]
    %v128 = vld [vmem:[#allocation9 + $0x24] sm:$0xf]
    %v129 = vld [vmem:[#allocation9 + $0x28] sm:$0xf]
    %v130 = vld [vmem:[#allocation9 + $0x2c] sm:$0xf]
    %v131 = vld [vmem:[#allocation9 + $0x30] sm:$0xf]
    %v132 = vld [vmem:[#allocation9 + $0x34] sm:$0xf]
    %v133 = vld [vmem:[#allocation9 + $0x38] sm:$0xf]
    %v134 = vld [vmem:[#allocation9 + $0x3c] sm:$0xf]
    %v135 = vld [vmem:[#allocation9 + $0x40] sm:$0xf]
    %v136 = vld [vmem:[#allocation9 + $0x44] sm:$0xf]
    %v137 = vld [vmem:[#allocation9 + $0x48] sm:$0xf]
    %v138 = vld [vmem:[#allocation9 + $0x4c] sm:$0xf]
    %v139 = vld [vmem:[#allocation9 + $0x50] sm:$0xf]
    %v140 = vld [vmem:[#allocation9 + $0x54] sm:$0xf]
    %v141 = vld [vmem:[#allocation9 + $0x58] sm:$0xf]
    %v142 = vld [vmem:[#allocation9 + $0x5c] sm:$0xf]
    %v143 = vld [vmem:[#allocation9 + $0x60] sm:$0xf]
    %v144 = vld [vmem:[#allocation9 + $0x64] sm:$0xf]
    %v145 = vld [vmem:[#allocation9 + $0x68] sm:$0xf]
    %v146 = vld [vmem:[#allocation9 + $0x6c] sm:$0xf]
    %v147 = vld [vmem:[#allocation9 + $0x70] sm:$0xf]
    %v148 = vld [vmem:[#allocation9 + $0x74] sm:$0xf]
    %v149 = vld [vmem:[#allocation9 + $0x78] sm:$0xf]
    %v150 = vld [vmem:[#allocation9 + $0x7c] sm:$0xf]
    %v151 = vld [vmem:[#allocation9 + $0x80] sm:$0xf]
    %v152 = vld [vmem:[#allocation9 + $0x84] sm:$0xf]
    %v153 = vld [vmem:[#allocation9 + $0x88] sm:$0xf]
    %v154 = vld [vmem:[#allocation9 + $0x8c] sm:$0xf]
    %v155 = vld [vmem:[#allocation9 + $0x90] sm:$0xf]
    %v156 = vld [vmem:[#allocation9 + $0x94] sm:$0xf]
    %v157 = vld [vmem:[#allocation9 + $0x98] sm:$0xf]
    %v158 = vld [vmem:[#allocation9 + $0x9c] sm:$0xf]
    %v159 = vld [vmem:[#allocation9 + $0xa0] sm:$0xf]
    %v160 = vld [vmem:[#allocation9 + $0xa4] sm:$0xf]
    %v161 = vld [vmem:[#allocation9 + $0xa8] sm:$0xf]
    %v162 = vld [vmem:[#allocation9 + $0xac] sm:$0xf]
    %v163 = vld [vmem:[#allocation9 + $0xb0] sm:$0xf]
    %v164 = vld [vmem:[#allocation9 + $0xb4] sm:$0xf]
    %v165 = vld [vmem:[#allocation9 + $0xb8] sm:$0xf]
    %v166 = vld [vmem:[#allocation9 + $0xbc] sm:$0xf]
    %v167 = vld [vmem:[#allocation9 + $0xc0] sm:$0xf]
    %v168 = vld [vmem:[#allocation9 + $0xc4] sm:$0xf]
    %v169 = vld [vmem:[#allocation9 + $0xc8] sm:$0xf]
    %v170 = vld [vmem:[#allocation9 + $0xcc] sm:$0xf]
    %v171 = vld [vmem:[#allocation9 + $0xd0] sm:$0xf]
    %v172 = vld [vmem:[#allocation9 + $0xd4] sm:$0xf]
    %v173 = vld [vmem:[#allocation9 + $0xd8] sm:$0xf]
    %v174 = vld [vmem:[#allocation9 + $0xdc] sm:$0xf]
    %v175 = vld [vmem:[#allocation9 + $0xe0] sm:$0xf]
    %v176 = vld [vmem:[#allocation9 + $0xe4] sm:$0xf]
    %v177 = vld [vmem:[#allocation9 + $0xe8] sm:$0xf]
    %v178 = vld [vmem:[#allocation9 + $0xec] sm:$0xf]
    %v179 = vld [vmem:[#allocation9 + $0xf0] sm:$0xf]
    %v180 = vld [vmem:[#allocation9 + $0xf4] sm:$0xf]
    %v181 = vld [vmem:[#allocation9 + $0xf8] sm:$0xf]
    %v182 = vld [vmem:[#allocation9 + $0xfc] sm:$0xf]
    %v183 = vld [vmem:[#allocation9 + $0x100] sm:$0xf]
    %v184 = vld [vmem:[#allocation9 + $0x104] sm:$0xf]
    %v185 = vld [vmem:[#allocation9 + $0x108] sm:$0xf]
    %v186 = vld [vmem:[#allocation9 + $0x10c] sm:$0xf]
    %v187 = vld [vmem:[#allocation9 + $0x110] sm:$0xf]
    %v188 = vld [vmem:[#allocation9 + $0x114] sm:$0xf]
    %v189 = vld [vmem:[#allocation9 + $0x118] sm:$0xf]
    %v190 = vld [vmem:[#allocation9 + $0x11c] sm:$0xf]
    %v191 = vld [vmem:[#allocation9 + $0x120] sm:$0xf]
    %v192 = vld [vmem:[#allocation9 + $0x124] sm:$0xf]
    %v193 = vld [vmem:[#allocation9 + $0x128] sm:$0xf]
    %v194 = vld [vmem:[#allocation9 + $0x12c] sm:$0xf]
    %v195 = vld [vmem:[#allocation9 + $0x130] sm:$0xf]
    %v196 = vld [vmem:[#allocation9 + $0x134] sm:$0xf]
    %v197 = vld [vmem:[#allocation9 + $0x138] sm:$0xf]
    %v198 = vld [vmem:[#allocation9 + $0x13c] sm:$0xf]
    %v199 = vld [vmem:[#allocation9 + $0x140] sm:$0xf]
    %v200 = vld [vmem:[#allocation9 + $0x144] sm:$0xf]
    %v201 = vld [vmem:[#allocation9 + $0x148] sm:$0xf]
    %v202 = vld [vmem:[#allocation9 + $0x14c] sm:$0xf]
    %v203 = vld [vmem:[#allocation9 + $0x150] sm:$0xf]
    %v204 = vld [vmem:[#allocation9 + $0x154] sm:$0xf]
    %v205 = vld [vmem:[#allocation9 + $0x158] sm:$0xf]
    %v206 = vld [vmem:[#allocation9 + $0x15c] sm:$0xf]
    %v207 = vld [vmem:[#allocation9 + $0x160] sm:$0xf]
    %v208 = vld [vmem:[#allocation9 + $0x164] sm:$0xf]
    %v209 = vld [vmem:[#allocation9 + $0x168] sm:$0xf]
    %v210 = vld [vmem:[#allocation9 + $0x16c] sm:$0xf]
    %v211 = vld [vmem:[#allocation9 + $0x170] sm:$0xf]
    %v212 = vld [vmem:[#allocation9 + $0x174] sm:$0xf]
    %v213 = vld [vmem:[#allocation9 + $0x178] sm:$0xf]
    %v214 = vld [vmem:[#allocation9 + $0x17c] sm:$0xf]
    %v215 = vld [vmem:[%s2] sm:$0x1]
    %v217 = vperm.slane %v215, 0
    %v315 = vunpack.c.l.b16 %v119
    %v316 = vunpack.c.l.b16 %v120
    %v317 = vunpack.c.l.b16 %v121
    %v318 = vunpack.c.l.b16 %v122
    %v319 = vunpack.c.l.b16 %v123
    %v320 = vunpack.c.l.b16 %v124
    %v321 = vunpack.c.l.b16 %v125
    %v322 = vunpack.c.l.b16 %v126
    %v323 = vunpack.c.l.b16 %v127
    %v324 = vunpack.c.l.b16 %v128
    %v325 = vunpack.c.l.b16 %v129
    %v326 = vunpack.c.l.b16 %v130
    %v327 = vunpack.c.l.b16 %v131
    %v328 = vunpack.c.l.b16 %v132
    %v329 = vunpack.c.l.b16 %v133
    %v330 = vunpack.c.l.b16 %v134
    %v331 = vunpack.c.l.b16 %v135
    %v332 = vunpack.c.l.b16 %v136
    %v333 = vunpack.c.l.b16 %v137
    %v334 = vunpack.c.l.b16 %v138
    %v335 = vunpack.c.l.b16 %v139
    %v336 = vunpack.c.l.b16 %v140
    %v337 = vunpack.c.l.b16 %v141
    %v338 = vunpack.c.l.b16 %v142
    %v339 = vunpack.c.l.b16 %v143
    %v340 = vunpack.c.l.b16 %v144
    %v341 = vunpack.c.l.b16 %v145
    %v342 = vunpack.c.l.b16 %v146
    %v343 = vunpack.c.l.b16 %v147
    %v344 = vunpack.c.l.b16 %v148
    %v345 = vunpack.c.l.b16 %v149
    %v346 = vunpack.c.l.b16 %v150
    %v347 = vunpack.c.l.b16 %v151
    %v348 = vunpack.c.l.b16 %v152
    %v349 = vunpack.c.l.b16 %v153
    %v350 = vunpack.c.l.b16 %v154
    %v351 = vunpack.c.l.b16 %v155
    %v352 = vunpack.c.l.b16 %v156
    %v353 = vunpack.c.l.b16 %v157
    %v354 = vunpack.c.l.b16 %v158
    %v355 = vunpack.c.l.b16 %v159
    %v356 = vunpack.c.l.b16 %v160
    %v357 = vunpack.c.l.b16 %v161
    %v358 = vunpack.c.l.b16 %v162
    %v359 = vunpack.c.l.b16 %v163
    %v360 = vunpack.c.l.b16 %v164
    %v361 = vunpack.c.l.b16 %v165
    %v362 = vunpack.c.l.b16 %v166
    %v363 = vunpack.c.l.b16 %v167
    %v364 = vunpack.c.l.b16 %v168
    %v365 = vunpack.c.l.b16 %v169
    %v366 = vunpack.c.l.b16 %v170
    %v367 = vunpack.c.l.b16 %v171
    %v368 = vunpack.c.l.b16 %v172
    %v369 = vunpack.c.l.b16 %v173
    %v370 = vunpack.c.l.b16 %v174
    %v371 = vunpack.c.l.b16 %v175
    %v372 = vunpack.c.l.b16 %v176
    %v373 = vunpack.c.l.b16 %v177
    %v374 = vunpack.c.l.b16 %v178
    %v375 = vunpack.c.l.b16 %v179
    %v376 = vunpack.c.l.b16 %v180
    %v377 = vunpack.c.l.b16 %v181
    %v378 = vunpack.c.l.b16 %v182
    %v379 = vunpack.c.l.b16 %v183
    %v380 = vunpack.c.l.b16 %v184
    %v381 = vunpack.c.l.b16 %v185
    %v382 = vunpack.c.l.b16 %v186
    %v383 = vunpack.c.l.b16 %v187
    %v384 = vunpack.c.l.b16 %v188
    %v385 = vunpack.c.l.b16 %v189
    %v386 = vunpack.c.l.b16 %v190
    %v387 = vunpack.c.l.b16 %v191
    %v388 = vunpack.c.l.b16 %v192
    %v389 = vunpack.c.l.b16 %v193
    %v390 = vunpack.c.l.b16 %v194
    %v391 = vunpack.c.l.b16 %v195
    %v392 = vunpack.c.l.b16 %v196
    %v393 = vunpack.c.l.b16 %v197
    %v394 = vunpack.c.l.b16 %v198
    %v395 = vunpack.c.l.b16 %v199
    %v396 = vunpack.c.l.b16 %v200
    %v397 = vunpack.c.l.b16 %v201
    %v398 = vunpack.c.l.b16 %v202
    %v399 = vunpack.c.l.b16 %v203
    %v400 = vunpack.c.l.b16 %v204
    %v401 = vunpack.c.l.b16 %v205
    %v402 = vunpack.c.l.b16 %v206
    %v403 = vunpack.c.l.b16 %v207
    %v404 = vunpack.c.l.b16 %v208
    %v405 = vunpack.c.l.b16 %v209
    %v406 = vunpack.c.l.b16 %v210
    %v407 = vunpack.c.l.b16 %v211
    %v408 = vunpack.c.l.b16 %v212
    %v409 = vunpack.c.l.b16 %v213
    %v410 = vunpack.c.l.b16 %v214
    %v411 = vpack.c.b16 %v316, %v315
    %v412 = vpack.c.b16 %v318, %v317
    %v413 = vpack.c.b16 %v320, %v319
    %v414 = vpack.c.b16 %v322, %v321
    %v415 = vpack.c.b16 %v324, %v323
    %v416 = vpack.c.b16 %v326, %v325
    %v417 = vpack.c.b16 %v328, %v327
    %v418 = vpack.c.b16 %v330, %v329
    %v419 = vpack.c.b16 %v332, %v331
    %v420 = vpack.c.b16 %v334, %v333
    %v421 = vpack.c.b16 %v336, %v335
    %v422 = vpack.c.b16 %v338, %v337
    %v423 = vpack.c.b16 %v340, %v339
    %v424 = vpack.c.b16 %v342, %v341
    %v425 = vpack.c.b16 %v344, %v343
    %v426 = vpack.c.b16 %v346, %v345
    %v427 = vpack.c.b16 %v348, %v347
    %v428 = vpack.c.b16 %v350, %v349
    %v429 = vpack.c.b16 %v352, %v351
    %v430 = vpack.c.b16 %v354, %v353
    %v431 = vpack.c.b16 %v356, %v355
    %v432 = vpack.c.b16 %v358, %v357
    %v433 = vpack.c.b16 %v360, %v359
    %v434 = vpack.c.b16 %v362, %v361
    %v435 = vpack.c.b16 %v364, %v363
    %v436 = vpack.c.b16 %v366, %v365
    %v437 = vpack.c.b16 %v368, %v367
    %v438 = vpack.c.b16 %v370, %v369
    %v439 = vpack.c.b16 %v372, %v371
    %v440 = vpack.c.b16 %v374, %v373
    %v441 = vpack.c.b16 %v376, %v375
    %v442 = vpack.c.b16 %v378, %v377
    %v443 = vpack.c.b16 %v380, %v379
    %v444 = vpack.c.b16 %v382, %v381
    %v445 = vpack.c.b16 %v384, %v383
    %v446 = vpack.c.b16 %v386, %v385
    %v447 = vpack.c.b16 %v388, %v387
    %v448 = vpack.c.b16 %v390, %v389
    %v449 = vpack.c.b16 %v392, %v391
    %v450 = vpack.c.b16 %v394, %v393
    %v451 = vpack.c.b16 %v396, %v395
    %v452 = vpack.c.b16 %v398, %v397
    %v453 = vpack.c.b16 %v400, %v399
    %v454 = vpack.c.b16 %v402, %v401
    %v455 = vpack.c.b16 %v404, %v403
    %v456 = vpack.c.b16 %v406, %v405
    %v457 = vpack.c.b16 %v408, %v407
    %v458 = vpack.c.b16 %v410, %v409
    %507 = vmatpush.bf16.msra.mxu0 %v418
    %508 = vmatpush.bf16.msra.mxu0 %v417
    %509 = vmatpush.bf16.msra.mxu0 %v416
    %510 = vmatpush.bf16.msra.mxu0 %v415
    %511 = vmatpush.bf16.msra.mxu0 %v414
    %512 = vmatpush.bf16.msra.mxu0 %v413
    %513 = vmatpush.bf16.msra.mxu0 %v412
    %514 = vmatpush.bf16.msra.mxu0 %v411
    %515 = vmatmul.bf16.gmra.mxu0 %v113
    %v516 = vpop.f32.mrf.mxu0
    %v517 = vadd.f32 %v217, %v516
    %v518 = vpop.f32.mrf.mxu0
    %v519 = vadd.f32 %v217, %v518
    %520 = vdwg.mxu0
    %521 = vmatpush.bf16.msra.mxu0 %v426
    %522 = vmatpush.bf16.msra.mxu0 %v425
    %523 = vmatpush.bf16.msra.mxu0 %v424
    %524 = vmatpush.bf16.msra.mxu0 %v423
    %525 = vmatpush.bf16.msra.mxu0 %v422
    %526 = vmatpush.bf16.msra.mxu0 %v421
    %527 = vmatpush.bf16.msra.mxu0 %v420
    %528 = vmatpush.bf16.msra.mxu0 %v419
    %529 = vmatmul.bf16.gmra.mxu0 %v114
    %v530 = vpop.f32.mrf.mxu0
    %v531 = vadd.f32 %v517, %v530
    %v532 = vpop.f32.mrf.mxu0
    %v533 = vadd.f32 %v519, %v532
    %534 = vdwg.mxu0
    %535 = vmatpush.bf16.msra.mxu0 %v434
    %536 = vmatpush.bf16.msra.mxu0 %v433
    %537 = vmatpush.bf16.msra.mxu0 %v432
    %538 = vmatpush.bf16.msra.mxu0 %v431
    %539 = vmatpush.bf16.msra.mxu0 %v430
    %540 = vmatpush.bf16.msra.mxu0 %v429
    %541 = vmatpush.bf16.msra.mxu0 %v428
    %542 = vmatpush.bf16.msra.mxu0 %v427
    %543 = vmatmul.bf16.gmra.mxu0 %v115
    %v544 = vpop.f32.mrf.mxu0
    %v545 = vadd.f32 %v531, %v544
    %v546 = vpop.f32.mrf.mxu0
    %v547 = vadd.f32 %v533, %v546
    %548 = vdwg.mxu0
    %549 = vmatpush.bf16.msra.mxu0 %v442
    %550 = vmatpush.bf16.msra.mxu0 %v441
    %551 = vmatpush.bf16.msra.mxu0 %v440
    %552 = vmatpush.bf16.msra.mxu0 %v439
    %553 = vmatpush.bf16.msra.mxu0 %v438
    %554 = vmatpush.bf16.msra.mxu0 %v437
    %555 = vmatpush.bf16.msra.mxu0 %v436
    %556 = vmatpush.bf16.msra.mxu0 %v435
    %557 = vmatmul.bf16.gmra.mxu0 %v116
    %v558 = vpop.f32.mrf.mxu0
    %v559 = vadd.f32 %v545, %v558
    %v560 = vpop.f32.mrf.mxu0
    %v561 = vadd.f32 %v547, %v560
    %562 = vdwg.mxu0
    %563 = vmatpush.bf16.msra.mxu0 %v450
    %564 = vmatpush.bf16.msra.mxu0 %v449
    %565 = vmatpush.bf16.msra.mxu0 %v448
    %566 = vmatpush.bf16.msra.mxu0 %v447
    %567 = vmatpush.bf16.msra.mxu0 %v446
    %568 = vmatpush.bf16.msra.mxu0 %v445
    %569 = vmatpush.bf16.msra.mxu0 %v444
    %570 = vmatpush.bf16.msra.mxu0 %v443
    %571 = vmatmul.bf16.gmra.mxu0 %v117
    %v572 = vpop.f32.mrf.mxu0
    %v573 = vadd.f32 %v559, %v572
    %v574 = vpop.f32.mrf.mxu0
    %v575 = vadd.f32 %v561, %v574
    %576 = vdwg.mxu0
    %577 = vmatpush.bf16.msra.mxu0 %v458
    %578 = vmatpush.bf16.msra.mxu0 %v457
    %579 = vmatpush.bf16.msra.mxu0 %v456
    %580 = vmatpush.bf16.msra.mxu0 %v455
    %581 = vmatpush.bf16.msra.mxu0 %v454
    %582 = vmatpush.bf16.msra.mxu0 %v453
    %583 = vmatpush.bf16.msra.mxu0 %v452
    %584 = vmatpush.bf16.msra.mxu0 %v451
    %585 = vmatmul.bf16.gmra.mxu0 %v118
    %v586 = vpop.f32.mrf.mxu0
    %v587 = vadd.f32 %v573, %v586
    %v588 = vpop.f32.mrf.mxu0
    %v589 = vadd.f32 %v575, %v588
    %590 = vdwg.mxu0
    %v591 = vmax.f32 %v587, 0.0
    %v592 = vmax.f32 %v589, 0.0
    %v593 = vpack.c.bf16 %v592, %v591
    %v594 = vld [vmem:[#allocation11] sm:$0xff]
    %v595 = vld [vmem:[#allocation11 + $0x8] sm:$0xff]
    %v596 = vld [vmem:[#allocation11 + $0x10] sm:$0xff]
    %v597 = vld [vmem:[#allocation11 + $0x18] sm:$0xff]
    %v598 = vld [vmem:[#allocation11 + $0x20] sm:$0xff]
    %v599 = vld [vmem:[#allocation11 + $0x28] sm:$0xff]
    %v600 = vld [vmem:[#allocation11 + $0x30] sm:$0xff]
    %v601 = vld [vmem:[#allocation11 + $0x38] sm:$0xff]
    %v602 = vld [vmem:[#allocation11 + $0x40] sm:$0xff]
    %v603 = vld [vmem:[#allocation11 + $0x48] sm:$0xff]
    %v604 = vld [vmem:[#allocation11 + $0x50] sm:$0xff]
    %v605 = vld [vmem:[#allocation11 + $0x58] sm:$0xff]
    %v606 = vld [vmem:[#allocation11 + $0x60] sm:$0xff]
    %v607 = vld [vmem:[#allocation11 + $0x68] sm:$0xff]
    %v608 = vld [vmem:[#allocation11 + $0x70] sm:$0xff]
    %v609 = vld [vmem:[#allocation11 + $0x78] sm:$0xff]
    %v610 = vld [vmem:[#allocation11 + $0x80] sm:$0xff]
    %v611 = vld [vmem:[#allocation11 + $0x88] sm:$0xff]
    %v612 = vld [vmem:[#allocation11 + $0x90] sm:$0xff]
    %v613 = vld [vmem:[#allocation11 + $0x98] sm:$0xff]
    %v614 = vld [vmem:[#allocation11 + $0xa0] sm:$0xff]
    %v615 = vld [vmem:[#allocation11 + $0xa8] sm:$0xff]
    %v616 = vld [vmem:[#allocation11 + $0xb0] sm:$0xff]
    %v617 = vld [vmem:[#allocation11 + $0xb8] sm:$0xff]
    %v618 = vld [vmem:[#allocation11 + $0xc0] sm:$0xff]
    %v619 = vld [vmem:[#allocation11 + $0xc8] sm:$0xff]
    %v620 = vld [vmem:[#allocation11 + $0xd0] sm:$0xff]
    %v621 = vld [vmem:[#allocation11 + $0xd8] sm:$0xff]
    %v622 = vld [vmem:[#allocation11 + $0xe0] sm:$0xff]
    %v623 = vld [vmem:[#allocation11 + $0xe8] sm:$0xff]
    %v624 = vld [vmem:[#allocation11 + $0xf0] sm:$0xff]
    %v625 = vld [vmem:[#allocation11 + $0xf8] sm:$0xff]
    %v626 = vld [vmem:[%s4] sm:$0xf]
    %v628 = vperm.slane %v626, 0
    %v629 = vperm.slane %v626, 1
    %v630 = vperm.slane %v626, 2
    %v631 = vperm.slane %v626, 3
    %v668 = vunpack.c.l.b16 %v594
    %v669 = vunpack.c.h.b16 %v594
    %v670 = vunpack.c.l.b16 %v595
    %v671 = vunpack.c.h.b16 %v595
    %v672 = vunpack.c.l.b16 %v596
    %v673 = vunpack.c.h.b16 %v596
    %v674 = vunpack.c.l.b16 %v597
    %v675 = vunpack.c.h.b16 %v597
    %v676 = vunpack.c.l.b16 %v598
    %v677 = vunpack.c.h.b16 %v598
    %v678 = vunpack.c.l.b16 %v599
    %v679 = vunpack.c.h.b16 %v599
    %v680 = vunpack.c.l.b16 %v600
    %v681 = vunpack.c.h.b16 %v600
    %v682 = vunpack.c.l.b16 %v601
    %v683 = vunpack.c.h.b16 %v601
    %v684 = vunpack.c.l.b16 %v602
    %v685 = vunpack.c.h.b16 %v602
    %v686 = vunpack.c.l.b16 %v603
    %v687 = vunpack.c.h.b16 %v603
    %v688 = vunpack.c.l.b16 %v604
    %v689 = vunpack.c.h.b16 %v604
    %v690 = vunpack.c.l.b16 %v605
    %v691 = vunpack.c.h.b16 %v605
    %v692 = vunpack.c.l.b16 %v606
    %v693 = vunpack.c.h.b16 %v606
    %v694 = vunpack.c.l.b16 %v607
    %v695 = vunpack.c.h.b16 %v607
    %v696 = vunpack.c.l.b16 %v608
    %v697 = vunpack.c.h.b16 %v608
    %v698 = vunpack.c.l.b16 %v609
    %v699 = vunpack.c.h.b16 %v609
    %v700 = vunpack.c.l.b16 %v610
    %v701 = vunpack.c.h.b16 %v610
    %v702 = vunpack.c.l.b16 %v611
    %v703 = vunpack.c.h.b16 %v611
    %v704 = vunpack.c.l.b16 %v612
    %v705 = vunpack.c.h.b16 %v612
    %v706 = vunpack.c.l.b16 %v613
    %v707 = vunpack.c.h.b16 %v613
    %v708 = vunpack.c.l.b16 %v614
    %v709 = vunpack.c.h.b16 %v614
    %v710 = vunpack.c.l.b16 %v615
    %v711 = vunpack.c.h.b16 %v615
    %v712 = vunpack.c.l.b16 %v616
    %v713 = vunpack.c.h.b16 %v616
    %v714 = vunpack.c.l.b16 %v617
    %v715 = vunpack.c.h.b16 %v617
    %v716 = vunpack.c.l.b16 %v618
    %v717 = vunpack.c.h.b16 %v618
    %v718 = vunpack.c.l.b16 %v619
    %v719 = vunpack.c.h.b16 %v619
    %v720 = vunpack.c.l.b16 %v620
    %v721 = vunpack.c.h.b16 %v620
    %v722 = vunpack.c.l.b16 %v621
    %v723 = vunpack.c.h.b16 %v621
    %v724 = vunpack.c.l.b16 %v622
    %v725 = vunpack.c.h.b16 %v622
    %v726 = vunpack.c.l.b16 %v623
    %v727 = vunpack.c.h.b16 %v623
    %v728 = vunpack.c.l.b16 %v624
    %v729 = vunpack.c.h.b16 %v624
    %v730 = vunpack.c.l.b16 %v625
    %v731 = vunpack.c.h.b16 %v625
    %v732 = vpack.c.b16 %v672, %v668
    %v733 = vpack.c.b16 %v673, %v669
    %v734 = vpack.c.b16 %v674, %v670
    %v735 = vpack.c.b16 %v675, %v671
    %v736 = vpack.c.b16 %v680, %v676
    %v737 = vpack.c.b16 %v681, %v677
    %v738 = vpack.c.b16 %v682, %v678
    %v739 = vpack.c.b16 %v683, %v679
    %v740 = vpack.c.b16 %v688, %v684
    %v741 = vpack.c.b16 %v689, %v685
    %v742 = vpack.c.b16 %v690, %v686
    %v743 = vpack.c.b16 %v691, %v687
    %v744 = vpack.c.b16 %v696, %v692
    %v745 = vpack.c.b16 %v697, %v693
    %v746 = vpack.c.b16 %v698, %v694
    %v747 = vpack.c.b16 %v699, %v695
    %v748 = vpack.c.b16 %v704, %v700
    %v749 = vpack.c.b16 %v705, %v701
    %v750 = vpack.c.b16 %v706, %v702
    %v751 = vpack.c.b16 %v707, %v703
    %v752 = vpack.c.b16 %v712, %v708
    %v753 = vpack.c.b16 %v713, %v709
    %v754 = vpack.c.b16 %v714, %v710
    %v755 = vpack.c.b16 %v715, %v711
    %v756 = vpack.c.b16 %v720, %v716
    %v757 = vpack.c.b16 %v721, %v717
    %v758 = vpack.c.b16 %v722, %v718
    %v759 = vpack.c.b16 %v723, %v719
    %v760 = vpack.c.b16 %v728, %v724
    %v761 = vpack.c.b16 %v729, %v725
    %v762 = vpack.c.b16 %v730, %v726
    %v763 = vpack.c.b16 %v731, %v727
    %796 = vmatpush.bf16.msra.mxu0 %v760
    %797 = vmatpush.bf16.msra.mxu0 %v756
    %798 = vmatpush.bf16.msra.mxu0 %v752
    %799 = vmatpush.bf16.msra.mxu0 %v748
    %800 = vmatpush.bf16.msra.mxu0 %v744
    %801 = vmatpush.bf16.msra.mxu0 %v740
    %802 = vmatpush.bf16.msra.mxu0 %v736
    %803 = vmatpush.bf16.msra.mxu0 %v732
    %804 = vmatmul.bf16.gmra.mxu0 %v593
    %v805 = vpop.f32.mrf.mxu0
    %v806 = vadd.f32 %v628, %v805
    %v807 = vpop.f32.mrf.mxu0
    %v808 = vadd.f32 %v628, %v807
    %809 = vdwg.mxu0
    %810 = vmatpush.bf16.msra.mxu0 %v761
    %811 = vmatpush.bf16.msra.mxu0 %v757
    %812 = vmatpush.bf16.msra.mxu0 %v753
    %813 = vmatpush.bf16.msra.mxu0 %v749
    %814 = vmatpush.bf16.msra.mxu0 %v745
    %815 = vmatpush.bf16.msra.mxu0 %v741
    %816 = vmatpush.bf16.msra.mxu0 %v737
    %817 = vmatpush.bf16.msra.mxu0 %v733
    %818 = vmatmul.bf16.gmra.mxu0 %v593
    %v819 = vpop.f32.mrf.mxu0
    %v820 = vadd.f32 %v629, %v819
    %v821 = vpop.f32.mrf.mxu0
    %v822 = vadd.f32 %v629, %v821
    %823 = vdwg.mxu0
    %824 = vmatpush.bf16.msra.mxu0 %v762
    %825 = vmatpush.bf16.msra.mxu0 %v758
    %826 = vmatpush.bf16.msra.mxu0 %v754
    %827 = vmatpush.bf16.msra.mxu0 %v750
    %828 = vmatpush.bf16.msra.mxu0 %v746
    %829 = vmatpush.bf16.msra.mxu0 %v742
    %830 = vmatpush.bf16.msra.mxu0 %v738
    %831 = vmatpush.bf16.msra.mxu0 %v734
    %832 = vmatmul.bf16.gmra.mxu0 %v593
    %v833 = vpop.f32.mrf.mxu0
    %v834 = vadd.f32 %v630, %v833
    %v835 = vpop.f32.mrf.mxu0
    %v836 = vadd.f32 %v630, %v835
    %837 = vdwg.mxu0
    %838 = vmatpush.bf16.msra.mxu0 %v763
    %839 = vmatpush.bf16.msra.mxu0 %v759
    %840 = vmatpush.bf16.msra.mxu0 %v755
    %841 = vmatpush.bf16.msra.mxu0 %v751
    %842 = vmatpush.bf16.msra.mxu0 %v747
    %843 = vmatpush.bf16.msra.mxu0 %v743
    %844 = vmatpush.bf16.msra.mxu0 %v739
    %845 = vmatpush.bf16.msra.mxu0 %v735
    %846 = vmatmul.bf16.gmra.mxu0 %v593
    %v847 = vpop.f32.mrf.mxu0
    %v848 = vadd.f32 %v631, %v847
    %v849 = vpop.f32.mrf.mxu0
    %v850 = vadd.f32 %v631, %v849
    %851 = vdwg.mxu0
    %852 = vst [vmem:[#allocation2] sm:$0xff] %v806
    %853 = vst [vmem:[#allocation2 + $0x8] sm:$0xff] %v820
    %854 = vst [vmem:[#allocation2 + $0x10] sm:$0xff] %v834
    %855 = vst [vmem:[#allocation2 + $0x18] sm:$0xff] %v848
    %856 = vst [vmem:[#allocation2 + $0x20] sm:$0xff] %v808
    %857 = vst [vmem:[#allocation2 + $0x28] sm:$0xff] %v822
    %858 = vst [vmem:[#allocation2 + $0x30] sm:$0xff] %v836
    %859 = vst [vmem:[#allocation2 + $0x38] sm:$0xff] %v850
    %v860 = vld [vmem:[#allocation3] sm:$0x3]
    %v861 = vld [vmem:[#allocation4] sm:$0x3]
    %v862 = vld [vmem:[#allocation5] sm:$0x3]
    %v863 = vld [vmem:[#allocation12] sm:$0xff]
    %v864 = vld [vmem:[#allocation12 + $0x8] sm:$0xff]
    %v865 = vld [vmem:[#allocation12 + $0x10] sm:$0xff]
    %v866 = vld [vmem:[#allocation12 + $0x18] sm:$0xff]
    %v867 = vld [vmem:[#allocation12 + $0x20] sm:$0xff]
    %v868 = vld [vmem:[#allocation12 + $0x28] sm:$0xff]
    %v869 = vld [vmem:[#allocation12 + $0x30] sm:$0xff]
    %v870 = vld [vmem:[#allocation12 + $0x38] sm:$0xff]
    %v871 = vld [vmem:[#allocation12 + $0x40] sm:$0xff]
    %v872 = vld [vmem:[#allocation12 + $0x48] sm:$0xff]
    %v873 = vld [vmem:[#allocation12 + $0x50] sm:$0xff]
    %v874 = vld [vmem:[#allocation12 + $0x58] sm:$0xff]
    %v875 = vld [vmem:[#allocation12 + $0x60] sm:$0xff]
    %v876 = vld [vmem:[#allocation12 + $0x68] sm:$0xff]
    %v877 = vld [vmem:[#allocation12 + $0x70] sm:$0xff]
    %v878 = vld [vmem:[#allocation12 + $0x78] sm:$0xff]
    %v879 = vld [vmem:[#allocation12 + $0x80] sm:$0xff]
    %v880 = vld [vmem:[#allocation12 + $0x88] sm:$0xff]
    %v881 = vld [vmem:[#allocation12 + $0x90] sm:$0xff]
    %v882 = vld [vmem:[#allocation12 + $0x98] sm:$0xff]
    %v883 = vld [vmem:[#allocation12 + $0xa0] sm:$0xff]
    %v884 = vld [vmem:[#allocation12 + $0xa8] sm:$0xff]
    %v885 = vld [vmem:[#allocation12 + $0xb0] sm:$0xff]
    %v886 = vld [vmem:[#allocation12 + $0xb8] sm:$0xff]
    %v887 = vld [vmem:[#allocation12 + $0xc0] sm:$0xff]
    %v888 = vld [vmem:[#allocation12 + $0xc8] sm:$0xff]
    %v889 = vld [vmem:[#allocation12 + $0xd0] sm:$0xff]
    %v890 = vld [vmem:[#allocation12 + $0xd8] sm:$0xff]
    %v891 = vld [vmem:[#allocation12 + $0xe0] sm:$0xff]
    %v892 = vld [vmem:[#allocation12 + $0xe8] sm:$0xff]
    %v893 = vld [vmem:[#allocation12 + $0xf0] sm:$0xff]
    %v894 = vld [vmem:[#allocation12 + $0xf8] sm:$0xff]
    %v895 = vld [vmem:[#allocation12 + $0x100] sm:$0xff]
    %v896 = vld [vmem:[#allocation12 + $0x108] sm:$0xff]
    %v897 = vld [vmem:[#allocation12 + $0x110] sm:$0xff]
    %v898 = vld [vmem:[#allocation12 + $0x118] sm:$0xff]
    %v899 = vld [vmem:[#allocation12 + $0x120] sm:$0xff]
    %v900 = vld [vmem:[#allocation12 + $0x128] sm:$0xff]
    %v901 = vld [vmem:[#allocation12 + $0x130] sm:$0xff]
    %v902 = vld [vmem:[#allocation12 + $0x138] sm:$0xff]
    %v903 = vld [vmem:[#allocation12 + $0x140] sm:$0xff]
    %v904 = vld [vmem:[#allocation12 + $0x148] sm:$0xff]
    %v905 = vld [vmem:[#allocation12 + $0x150] sm:$0xff]
    %v906 = vld [vmem:[#allocation12 + $0x158] sm:$0xff]
    %v907 = vld [vmem:[#allocation12 + $0x160] sm:$0xff]
    %v908 = vld [vmem:[#allocation12 + $0x168] sm:$0xff]
    %v909 = vld [vmem:[#allocation12 + $0x170] sm:$0xff]
    %v910 = vld [vmem:[#allocation12 + $0x178] sm:$0xff]
    %v911 = vld [vmem:[#allocation12 + $0x180] sm:$0xff]
    %v912 = vld [vmem:[#allocation12 + $0x188] sm:$0xff]
    %v913 = vld [vmem:[#allocation12 + $0x190] sm:$0xff]
    %v914 = vld [vmem:[#allocation12 + $0x198] sm:$0xff]
    %v915 = vld [vmem:[#allocation12 + $0x1a0] sm:$0xff]
    %v916 = vld [vmem:[#allocation12 + $0x1a8] sm:$0xff]
    %v917 = vld [vmem:[#allocation12 + $0x1b0] sm:$0xff]
    %v918 = vld [vmem:[#allocation12 + $0x1b8] sm:$0xff]
    %v919 = vld [vmem:[#allocation12 + $0x1c0] sm:$0xff]
    %v920 = vld [vmem:[#allocation12 + $0x1c8] sm:$0xff]
    %v921 = vld [vmem:[#allocation12 + $0x1d0] sm:$0xff]
    %v922 = vld [vmem:[#allocation12 + $0x1d8] sm:$0xff]
    %v923 = vld [vmem:[#allocation12 + $0x1e0] sm:$0xff]
    %v924 = vld [vmem:[#allocation12 + $0x1e8] sm:$0xff]
    %v925 = vld [vmem:[#allocation12 + $0x1f0] sm:$0xff]
    %v926 = vld [vmem:[#allocation12 + $0x1f8] sm:$0xff]
    %v927 = vld [vmem:[#allocation2] ss:$8 sm:$0xf]
    %s928 = scalar_lea.vmem [#allocation2], 32
    %v929 = vld [vmem:[%s928] ss:$8 sm:$0xf]
    %930 = vmatpush.msra.mxu0 %v923
    %931 = vmatpush.msra.mxu0 %v919
    %932 = vmatpush.msra.mxu0 %v915
    %933 = vmatpush.msra.mxu0 %v911
    %934 = vmatpush.msra.mxu0 %v907
    %935 = vmatpush.msra.mxu0 %v903
    %936 = vmatpush.msra.mxu0 %v899
    %937 = vmatpush.msra.mxu0 %v895
    %938 = vmatpush.msra.mxu0 %v891
    %939 = vmatpush.msra.mxu0 %v887
    %940 = vmatpush.msra.mxu0 %v883
    %941 = vmatpush.msra.mxu0 %v879
    %942 = vmatpush.msra.mxu0 %v875
    %943 = vmatpush.msra.mxu0 %v871
    %944 = vmatpush.msra.mxu0 %v867
    %945 = vmatpush.msra.mxu0 %v863
    %946 = vmatmul.f32.gmra.mxu0 %v860
    %v947 = vpop.f32.mrf.mxu0
    %v948 = vadd.f32 0.0, %v947
    %949 = vdwg.mxu0
    %950 = vmatpush.msra.mxu0 %v924
    %951 = vmatpush.msra.mxu0 %v920
    %952 = vmatpush.msra.mxu0 %v916
    %953 = vmatpush.msra.mxu0 %v912
    %954 = vmatpush.msra.mxu0 %v908
    %955 = vmatpush.msra.mxu0 %v904
    %956 = vmatpush.msra.mxu0 %v900
    %957 = vmatpush.msra.mxu0 %v896
    %958 = vmatpush.msra.mxu0 %v892
    %959 = vmatpush.msra.mxu0 %v888
    %960 = vmatpush.msra.mxu0 %v884
    %961 = vmatpush.msra.mxu0 %v880
    %962 = vmatpush.msra.mxu0 %v876
    %963 = vmatpush.msra.mxu0 %v872
    %964 = vmatpush.msra.mxu0 %v868
    %965 = vmatpush.msra.mxu0 %v864
    %966 = vmatmul.f32.gmra.mxu0 %v860
    %v967 = vpop.f32.mrf.mxu0
    %v968 = vadd.f32 0.0, %v967
    %969 = vdwg.mxu0
    %970 = vmatpush.msra.mxu0 %v925
    %971 = vmatpush.msra.mxu0 %v921
    %972 = vmatpush.msra.mxu0 %v917
    %973 = vmatpush.msra.mxu0 %v913
    %974 = vmatpush.msra.mxu0 %v909
    %975 = vmatpush.msra.mxu0 %v905
    %976 = vmatpush.msra.mxu0 %v901
    %977 = vmatpush.msra.mxu0 %v897
    %978 = vmatpush.msra.mxu0 %v893
    %979 = vmatpush.msra.mxu0 %v889
    %980 = vmatpush.msra.mxu0 %v885
    %981 = vmatpush.msra.mxu0 %v881
    %982 = vmatpush.msra.mxu0 %v877
    %983 = vmatpush.msra.mxu0 %v873
    %984 = vmatpush.msra.mxu0 %v869
    %985 = vmatpush.msra.mxu0 %v865
    %986 = vmatmul.f32.gmra.mxu0 %v860
    %v987 = vpop.f32.mrf.mxu0
    %v988 = vadd.f32 0.0, %v987
    %989 = vdwg.mxu0
    %990 = vmatpush.msra.mxu0 %v926
    %991 = vmatpush.msra.mxu0 %v922
    %992 = vmatpush.msra.mxu0 %v918
    %993 = vmatpush.msra.mxu0 %v914
    %994 = vmatpush.msra.mxu0 %v910
    %995 = vmatpush.msra.mxu0 %v906
    %996 = vmatpush.msra.mxu0 %v902
    %997 = vmatpush.msra.mxu0 %v898
    %998 = vmatpush.msra.mxu0 %v894
    %999 = vmatpush.msra.mxu0 %v890
    %1000 = vmatpush.msra.mxu0 %v886
    %1001 = vmatpush.msra.mxu0 %v882
    %1002 = vmatpush.msra.mxu0 %v878
    %1003 = vmatpush.msra.mxu0 %v874
    %1004 = vmatpush.msra.mxu0 %v870
    %1005 = vmatpush.msra.mxu0 %v866
    %1006 = vmatmul.f32.gmra.mxu0 %v860
    %v1007 = vpop.f32.mrf.mxu0
    %v1008 = vadd.f32 0.0, %v1007
    %1009 = vdwg.mxu0
    %v1014 = vrot.slane %v968, 7
    %v1015 = vrot.slane %v988, 6
    %v1016 = vrot.slane %v1008, 5
    %vm1017 = vcmask 1040384
    %v1018 = vsel %vm1017, %v948, %v1014
    %vm1019 = vcmask 1042434
    %v1020 = vsel %vm1019, %v1015, %v1016
    %vm1021 = vcmask 1041408
    %v1022 = vsel %vm1021, %v1018, %v1020
    %vm1023 = vcmask 1041409
    %v1024 = vsel %vm1023, %v948, %v1014
    %vm1025 = vcmask 1043459
    %v1026 = vsel %vm1025, %v1015, %v1016
    %vm1027 = vcmask 1042433
    %v1028 = vsel %vm1027, %v1024, %v1026
    %v1029 = vrot.slane %v1028, 1
    %v1032 = vadd.f32 %v927, %v1022
    %v1033 = vadd.f32 %v929, %v1029
    %v1034 = vxor.u32 %v1032, 2147483648
    %v1035 = vxor.u32 %v1033, 2147483648
    %v1036 = vmul.f32 %v1034, 1.442695
    %v1037 = vpow.pop %v1036
    %v1038 = vmul.f32 %v1035, 1.442695
    %v1039 = vpow.pop %v1038
    %v1040 = vadd.f32 %v1037, 1.0
    %v1041 = vadd.f32 %v1039, 1.0
    %v1042 = vrcp.pop %v1040
    %v1043 = vmul.f32 %v1040, %v1042
    %v1044 = vsub.f32 1.0, %v1043
    %v1045 = vmul.f32 %v1042, %v1044
    %v1046 = vadd.f32 %v1042, %v1045
    %vm1047 = vweird.f32 %v1040
    %vm1048 = vweird.f32 %v1042
    %vm1049 = vmor %vm1047, %vm1048
    %v1050 = vsel %vm1049, %v1042, %v1046
    %v1051 = vand.u32 2147483647, %v1040
    %vm1052 = vcmp.eq.f32.partialorder %v1051, 8.507059e+37
    %v1053 = vand.u32 %v1040, 2147483648
    %v1054 = vor.u32 1.1754944e-38, %v1053
    %v1055 = vsel %vm1052, %v1054, %v1050
    %v1056 = vmul.f32 1.0, %v1055
    %v1057 = vrcp.pop %v1041
    %v1058 = vmul.f32 %v1041, %v1057
    %v1059 = vsub.f32 1.0, %v1058
    %v1060 = vmul.f32 %v1057, %v1059
    %v1061 = vadd.f32 %v1057, %v1060
    %vm1062 = vweird.f32 %v1041
    %vm1063 = vweird.f32 %v1057
    %vm1064 = vmor %vm1062, %vm1063
    %v1065 = vsel %vm1064, %v1057, %v1061
    %v1066 = vand.u32 2147483647, %v1041
    %vm1067 = vcmp.eq.f32.partialorder %v1066, 8.507059e+37
    %v1068 = vand.u32 %v1041, 2147483648
    %v1069 = vor.u32 1.1754944e-38, %v1068
    %v1070 = vsel %vm1067, %v1069, %v1065
    %v1071 = vmul.f32 1.0, %v1070
    %v1074 = vrot.slane %v1032, 1
    %v1075 = vrot.slane %v1033, 1
    %v1078 = vxor.u32 %v1074, 2147483648
    %v1079 = vxor.u32 %v1075, 2147483648
    %v1080 = vmul.f32 %v1078, 1.442695
    %v1081 = vpow.pop %v1080
    %v1082 = vmul.f32 %v1079, 1.442695
    %v1083 = vpow.pop %v1082
    %v1084 = vadd.f32 %v1081, 1.0
    %v1085 = vadd.f32 %v1083, 1.0
    %v1086 = vrcp.pop %v1084
    %v1087 = vmul.f32 %v1084, %v1086
    %v1088 = vsub.f32 1.0, %v1087
    %v1089 = vmul.f32 %v1086, %v1088
    %v1090 = vadd.f32 %v1086, %v1089
    %vm1091 = vweird.f32 %v1084
    %vm1092 = vweird.f32 %v1086
    %vm1093 = vmor %vm1091, %vm1092
    %v1094 = vsel %vm1093, %v1086, %v1090
    %v1095 = vand.u32 2147483647, %v1084
    %vm1096 = vcmp.eq.f32.partialorder %v1095, 8.507059e+37
    %v1097 = vand.u32 %v1084, 2147483648
    %v1098 = vor.u32 1.1754944e-38, %v1097
    %v1099 = vsel %vm1096, %v1098, %v1094
    %v1100 = vmul.f32 1.0, %v1099
    %v1101 = vrcp.pop %v1085
    %v1102 = vmul.f32 %v1085, %v1101
    %v1103 = vsub.f32 1.0, %v1102
    %v1104 = vmul.f32 %v1101, %v1103
    %v1105 = vadd.f32 %v1101, %v1104
    %vm1106 = vweird.f32 %v1085
    %vm1107 = vweird.f32 %v1101
    %vm1108 = vmor %vm1106, %vm1107
    %v1109 = vsel %vm1108, %v1101, %v1105
    %v1110 = vand.u32 2147483647, %v1085
    %vm1111 = vcmp.eq.f32.partialorder %v1110, 8.507059e+37
    %v1112 = vand.u32 %v1085, 2147483648
    %v1113 = vor.u32 1.1754944e-38, %v1112
    %v1114 = vsel %vm1111, %v1113, %v1109
    %v1115 = vmul.f32 1.0, %v1114
    %v1116 = vrot.slane %v1032, 2
    %v1117 = vrot.slane %v1033, 2
    %v1120 = vtanh.pop %v1116
    %v1121 = vtanh.pop %v1117
    %v1122 = vrot.slane %v1032, 3
    %v1123 = vrot.slane %v1033, 3
    %v1126 = vxor.u32 %v1122, 2147483648
    %v1127 = vxor.u32 %v1123, 2147483648
    %v1128 = vmul.f32 %v1126, 1.442695
    %v1129 = vpow.pop %v1128
    %v1130 = vmul.f32 %v1127, 1.442695
    %v1131 = vpow.pop %v1130
    %v1132 = vadd.f32 %v1129, 1.0
    %v1133 = vadd.f32 %v1131, 1.0
    %v1134 = vrcp.pop %v1132
    %v1135 = vmul.f32 %v1132, %v1134
    %v1136 = vsub.f32 1.0, %v1135
    %v1137 = vmul.f32 %v1134, %v1136
    %v1138 = vadd.f32 %v1134, %v1137
    %vm1139 = vweird.f32 %v1132
    %vm1140 = vweird.f32 %v1134
    %vm1141 = vmor %vm1139, %vm1140
    %v1142 = vsel %vm1141, %v1134, %v1138
    %v1143 = vand.u32 2147483647, %v1132
    %vm1144 = vcmp.eq.f32.partialorder %v1143, 8.507059e+37
    %v1145 = vand.u32 %v1132, 2147483648
    %v1146 = vor.u32 1.1754944e-38, %v1145
    %v1147 = vsel %vm1144, %v1146, %v1142
    %v1148 = vmul.f32 1.0, %v1147
    %v1149 = vrcp.pop %v1133
    %v1150 = vmul.f32 %v1133, %v1149
    %v1151 = vsub.f32 1.0, %v1150
    %v1152 = vmul.f32 %v1149, %v1151
    %v1153 = vadd.f32 %v1149, %v1152
    %vm1154 = vweird.f32 %v1133
    %vm1155 = vweird.f32 %v1149
    %vm1156 = vmor %vm1154, %vm1155
    %v1157 = vsel %vm1156, %v1149, %v1153
    %v1158 = vand.u32 2147483647, %v1133
    %vm1159 = vcmp.eq.f32.partialorder %v1158, 8.507059e+37
    %v1160 = vand.u32 %v1133, 2147483648
    %v1161 = vor.u32 1.1754944e-38, %v1160
    %v1162 = vsel %vm1159, %v1161, %v1157
    %v1163 = vmul.f32 1.0, %v1162
    %v1165 = vrot.slane %v861, 1
    %v1167 = vmul.f32 %v1100, %v861
    %v1168 = vmul.f32 %v1115, %v1165
    %v1169 = vmul.f32 %v1056, %v1120
    %v1170 = vmul.f32 %v1071, %v1121
    %v1171 = vadd.f32 %v1167, %v1169
    %v1172 = vadd.f32 %v1168, %v1170
    %v1173 = vtanh.pop %v1171
    %v1174 = vtanh.pop %v1172
    %v1175 = vmul.f32 %v1148, %v1173
    %v1176 = vmul.f32 %v1163, %v1174
    %1179 = vst [vmem:[#allocation1] ss:$9 sm:$0xff] %v1175
    %s1180 = scalar_lea.vmem [#allocation1], 1
    %1181 = vst [vmem:[%s1180] ss:$9 sm:$0xff] %v1176
    %v1182 = vld [vmem:[#allocation1] sm:$0xff]
    %v1184 = vmax.f32 %v862, %v1182
    %s1185 = scalar_lea.vmem [#allocation2], 1
    %v1186 = vld [vmem:[%s1185] ss:$8 sm:$0xf]
    %s1187 = scalar_lea.vmem [#allocation2], 33
    %v1188 = vld [vmem:[%s1187] ss:$8 sm:$0xf]
    %1189 = vst [vmem:[#allocation1] ss:$9 sm:$0xff] %v1175
    %s1190 = scalar_lea.vmem [#allocation1], 1
    %1191 = vst [vmem:[%s1190] ss:$9 sm:$0xff] %v1176
    %v1192 = vld [vmem:[#allocation1] sm:$0xff]
    %1194 = vmatpush.msra.mxu0 %v923
    %1195 = vmatpush.msra.mxu0 %v919
    %1196 = vmatpush.msra.mxu0 %v915
    %1197 = vmatpush.msra.mxu0 %v911
    %1198 = vmatpush.msra.mxu0 %v907
    %1199 = vmatpush.msra.mxu0 %v903
    %1200 = vmatpush.msra.mxu0 %v899
    %1201 = vmatpush.msra.mxu0 %v895
    %1202 = vmatpush.msra.mxu0 %v891
    %1203 = vmatpush.msra.mxu0 %v887
    %1204 = vmatpush.msra.mxu0 %v883
    %1205 = vmatpush.msra.mxu0 %v879
    %1206 = vmatpush.msra.mxu0 %v875
    %1207 = vmatpush.msra.mxu0 %v871
    %1208 = vmatpush.msra.mxu0 %v867
    %1209 = vmatpush.msra.mxu0 %v863
    %1210 = vmatmul.f32.gmra.mxu0 %v1192
    %v1211 = vpop.f32.mrf.mxu0
    %v1212 = vadd.f32 0.0, %v1211
    %1213 = vdwg.mxu0
    %1214 = vmatpush.msra.mxu0 %v924
    %1215 = vmatpush.msra.mxu0 %v920
    %1216 = vmatpush.msra.mxu0 %v916
    %1217 = vmatpush.msra.mxu0 %v912
    %1218 = vmatpush.msra.mxu0 %v908
    %1219 = vmatpush.msra.mxu0 %v904
    %1220 = vmatpush.msra.mxu0 %v900
    %1221 = vmatpush.msra.mxu0 %v896
    %1222 = vmatpush.msra.mxu0 %v892
    %1223 = vmatpush.msra.mxu0 %v888
    %1224 = vmatpush.msra.mxu0 %v884
    %1225 = vmatpush.msra.mxu0 %v880
    %1226 = vmatpush.msra.mxu0 %v876
    %1227 = vmatpush.msra.mxu0 %v872
    %1228 = vmatpush.msra.mxu0 %v868
    %1229 = vmatpush.msra.mxu0 %v864
    %1230 = vmatmul.f32.gmra.mxu0 %v1192
    %v1231 = vpop.f32.mrf.mxu0
    %v1232 = vadd.f32 0.0, %v1231
    %1233 = vdwg.mxu0
    %1234 = vmatpush.msra.mxu0 %v925
    %1235 = vmatpush.msra.mxu0 %v921
    %1236 = vmatpush.msra.mxu0 %v917
    %1237 = vmatpush.msra.mxu0 %v913
    %1238 = vmatpush.msra.mxu0 %v909
    %1239 = vmatpush.msra.mxu0 %v905
    %1240 = vmatpush.msra.mxu0 %v901
    %1241 = vmatpush.msra.mxu0 %v897
    %1242 = vmatpush.msra.mxu0 %v893
    %1243 = vmatpush.msra.mxu0 %v889
    %1244 = vmatpush.msra.mxu0 %v885
    %1245 = vmatpush.msra.mxu0 %v881
    %1246 = vmatpush.msra.mxu0 %v877
    %1247 = vmatpush.msra.mxu0 %v873
    %1248 = vmatpush.msra.mxu0 %v869
    %1249 = vmatpush.msra.mxu0 %v865
    %1250 = vmatmul.f32.gmra.mxu0 %v1192
    %v1251 = vpop.f32.mrf.mxu0
    %v1252 = vadd.f32 0.0, %v1251
    %1253 = vdwg.mxu0
    %1254 = vmatpush.msra.mxu0 %v926
    %1255 = vmatpush.msra.mxu0 %v922
    %1256 = vmatpush.msra.mxu0 %v918
    %1257 = vmatpush.msra.mxu0 %v914
    %1258 = vmatpush.msra.mxu0 %v910
    %1259 = vmatpush.msra.mxu0 %v906
    %1260 = vmatpush.msra.mxu0 %v902
    %1261 = vmatpush.msra.mxu0 %v898
    %1262 = vmatpush.msra.mxu0 %v894
    %1263 = vmatpush.msra.mxu0 %v890
    %1264 = vmatpush.msra.mxu0 %v886
    %1265 = vmatpush.msra.mxu0 %v882
    %1266 = vmatpush.msra.mxu0 %v878
    %1267 = vmatpush.msra.mxu0 %v874
    %1268 = vmatpush.msra.mxu0 %v870
    %1269 = vmatpush.msra.mxu0 %v866
    %1270 = vmatmul.f32.gmra.mxu0 %v1192
    %v1271 = vpop.f32.mrf.mxu0
    %v1272 = vadd.f32 0.0, %v1271
    %1273 = vdwg.mxu0
    %v1278 = vrot.slane %v1232, 7
    %v1279 = vrot.slane %v1252, 6
    %v1280 = vrot.slane %v1272, 5
    %v1281 = vsel %vm1017, %v1212, %v1278
    %v1282 = vsel %vm1019, %v1279, %v1280
    %v1283 = vsel %vm1021, %v1281, %v1282
    %v1284 = vsel %vm1023, %v1212, %v1278
    %v1285 = vsel %vm1025, %v1279, %v1280
    %v1286 = vsel %vm1027, %v1284, %v1285
    %v1287 = vrot.slane %v1286, 1
    %v1290 = vadd.f32 %v1186, %v1283
    %v1291 = vadd.f32 %v1188, %v1287
    %v1292 = vxor.u32 %v1290, 2147483648
    %v1293 = vxor.u32 %v1291, 2147483648
    %v1294 = vmul.f32 %v1292, 1.442695
    %v1295 = vpow.pop %v1294
    %v1296 = vmul.f32 %v1293, 1.442695
    %v1297 = vpow.pop %v1296
    %v1298 = vadd.f32 %v1295, 1.0
    %v1299 = vadd.f32 %v1297, 1.0
    %v1300 = vrcp.pop %v1298
    %v1301 = vmul.f32 %v1298, %v1300
    %v1302 = vsub.f32 1.0, %v1301
    %v1303 = vmul.f32 %v1300, %v1302
    %v1304 = vadd.f32 %v1300, %v1303
    %vm1305 = vweird.f32 %v1298
    %vm1306 = vweird.f32 %v1300
    %vm1307 = vmor %vm1305, %vm1306
    %v1308 = vsel %vm1307, %v1300, %v1304
    %v1309 = vand.u32 2147483647, %v1298
    %vm1310 = vcmp.eq.f32.partialorder %v1309, 8.507059e+37
    %v1311 = vand.u32 %v1298, 2147483648
    %v1312 = vor.u32 1.1754944e-38, %v1311
    %v1313 = vsel %vm1310, %v1312, %v1308
    %v1314 = vmul.f32 1.0, %v1313
    %v1315 = vrcp.pop %v1299
    %v1316 = vmul.f32 %v1299, %v1315
    %v1317 = vsub.f32 1.0, %v1316
    %v1318 = vmul.f32 %v1315, %v1317
    %v1319 = vadd.f32 %v1315, %v1318
    %vm1320 = vweird.f32 %v1299
    %vm1321 = vweird.f32 %v1315
    %vm1322 = vmor %vm1320, %vm1321
    %v1323 = vsel %vm1322, %v1315, %v1319
    %v1324 = vand.u32 2147483647, %v1299
    %vm1325 = vcmp.eq.f32.partialorder %v1324, 8.507059e+37
    %v1326 = vand.u32 %v1299, 2147483648
    %v1327 = vor.u32 1.1754944e-38, %v1326
    %v1328 = vsel %vm1325, %v1327, %v1323
    %v1329 = vmul.f32 1.0, %v1328
    %v1332 = vrot.slane %v1290, 1
    %v1333 = vrot.slane %v1291, 1
    %v1336 = vxor.u32 %v1332, 2147483648
    %v1337 = vxor.u32 %v1333, 2147483648
    %v1338 = vmul.f32 %v1336, 1.442695
    %v1339 = vpow.pop %v1338
    %v1340 = vmul.f32 %v1337, 1.442695
    %v1341 = vpow.pop %v1340
    %v1342 = vadd.f32 %v1339, 1.0
    %v1343 = vadd.f32 %v1341, 1.0
    %v1344 = vrcp.pop %v1342
    %v1345 = vmul.f32 %v1342, %v1344
    %v1346 = vsub.f32 1.0, %v1345
    %v1347 = vmul.f32 %v1344, %v1346
    %v1348 = vadd.f32 %v1344, %v1347
    %vm1349 = vweird.f32 %v1342
    %vm1350 = vweird.f32 %v1344
    %vm1351 = vmor %vm1349, %vm1350
    %v1352 = vsel %vm1351, %v1344, %v1348
    %v1353 = vand.u32 2147483647, %v1342
    %vm1354 = vcmp.eq.f32.partialorder %v1353, 8.507059e+37
    %v1355 = vand.u32 %v1342, 2147483648
    %v1356 = vor.u32 1.1754944e-38, %v1355
    %v1357 = vsel %vm1354, %v1356, %v1352
    %v1358 = vmul.f32 1.0, %v1357
    %v1359 = vrcp.pop %v1343
    %v1360 = vmul.f32 %v1343, %v1359
    %v1361 = vsub.f32 1.0, %v1360
    %v1362 = vmul.f32 %v1359, %v1361
    %v1363 = vadd.f32 %v1359, %v1362
    %vm1364 = vweird.f32 %v1343
    %vm1365 = vweird.f32 %v1359
    %vm1366 = vmor %vm1364, %vm1365
    %v1367 = vsel %vm1366, %v1359, %v1363
    %v1368 = vand.u32 2147483647, %v1343
    %vm1369 = vcmp.eq.f32.partialorder %v1368, 8.507059e+37
    %v1370 = vand.u32 %v1343, 2147483648
    %v1371 = vor.u32 1.1754944e-38, %v1370
    %v1372 = vsel %vm1369, %v1371, %v1367
    %v1373 = vmul.f32 1.0, %v1372
    %v1374 = vrot.slane %v1290, 2
    %v1375 = vrot.slane %v1291, 2
    %v1378 = vtanh.pop %v1374
    %v1379 = vtanh.pop %v1375
    %v1380 = vrot.slane %v1290, 3
    %v1381 = vrot.slane %v1291, 3
    %v1384 = vxor.u32 %v1380, 2147483648
    %v1385 = vxor.u32 %v1381, 2147483648
    %v1386 = vmul.f32 %v1384, 1.442695
    %v1387 = vpow.pop %v1386
    %v1388 = vmul.f32 %v1385, 1.442695
    %v1389 = vpow.pop %v1388
    %v1390 = vadd.f32 %v1387, 1.0
    %v1391 = vadd.f32 %v1389, 1.0
    %v1392 = vrcp.pop %v1390
    %v1393 = vmul.f32 %v1390, %v1392
    %v1394 = vsub.f32 1.0, %v1393
    %v1395 = vmul.f32 %v1392, %v1394
    %v1396 = vadd.f32 %v1392, %v1395
    %vm1397 = vweird.f32 %v1390
    %vm1398 = vweird.f32 %v1392
    %vm1399 = vmor %vm1397, %vm1398
    %v1400 = vsel %vm1399, %v1392, %v1396
    %v1401 = vand.u32 2147483647, %v1390
    %vm1402 = vcmp.eq.f32.partialorder %v1401, 8.507059e+37
    %v1403 = vand.u32 %v1390, 2147483648
    %v1404 = vor.u32 1.1754944e-38, %v1403
    %v1405 = vsel %vm1402, %v1404, %v1400
    %v1406 = vmul.f32 1.0, %v1405
    %v1407 = vrcp.pop %v1391
    %v1408 = vmul.f32 %v1391, %v1407
    %v1409 = vsub.f32 1.0, %v1408
    %v1410 = vmul.f32 %v1407, %v1409
    %v1411 = vadd.f32 %v1407, %v1410
    %vm1412 = vweird.f32 %v1391
    %vm1413 = vweird.f32 %v1407
    %vm1414 = vmor %vm1412, %vm1413
    %v1415 = vsel %vm1414, %v1407, %v1411
    %v1416 = vand.u32 2147483647, %v1391
    %vm1417 = vcmp.eq.f32.partialorder %v1416, 8.507059e+37
    %v1418 = vand.u32 %v1391, 2147483648
    %v1419 = vor.u32 1.1754944e-38, %v1418
    %v1420 = vsel %vm1417, %v1419, %v1415
    %v1421 = vmul.f32 1.0, %v1420
    %v1422 = vmul.f32 %v1358, %v1171
    %v1423 = vmul.f32 %v1373, %v1172
    %v1424 = vmul.f32 %v1314, %v1378
    %v1425 = vmul.f32 %v1329, %v1379
    %v1426 = vadd.f32 %v1422, %v1424
    %v1427 = vadd.f32 %v1423, %v1425
    %v1428 = vtanh.pop %v1426
    %v1429 = vtanh.pop %v1427
    %v1430 = vmul.f32 %v1406, %v1428
    %v1431 = vmul.f32 %v1421, %v1429
    %1434 = vst [vmem:[#allocation1] ss:$9 sm:$0xff] %v1430
    %s1435 = scalar_lea.vmem [#allocation1], 1
    %1436 = vst [vmem:[%s1435] ss:$9 sm:$0xff] %v1431
    %v1437 = vld [vmem:[#allocation1] sm:$0xff]
    %v1439 = vmax.f32 %v1184, %v1437
    %s1440 = scalar_lea.vmem [#allocation2], 2
    %v1441 = vld [vmem:[%s1440] ss:$8 sm:$0xf]
    %s1442 = scalar_lea.vmem [#allocation2], 34
    %v1443 = vld [vmem:[%s1442] ss:$8 sm:$0xf]
    %1444 = vst [vmem:[#allocation1] ss:$9 sm:$0xff] %v1430
    %s1445 = scalar_lea.vmem [#allocation1], 1
    %1446 = vst [vmem:[%s1445] ss:$9 sm:$0xff] %v1431
    %v1447 = vld [vmem:[#allocation1] sm:$0xff]
    %1449 = vmatpush.msra.mxu0 %v923
    %1450 = vmatpush.msra.mxu0 %v919
    %1451 = vmatpush.msra.mxu0 %v915
    %1452 = vmatpush.msra.mxu0 %v911
    %1453 = vmatpush.msra.mxu0 %v907
    %1454 = vmatpush.msra.mxu0 %v903
    %1455 = vmatpush.msra.mxu0 %v899
    %1456 = vmatpush.msra.mxu0 %v895
    %1457 = vmatpush.msra.mxu0 %v891
    %1458 = vmatpush.msra.mxu0 %v887
    %1459 = vmatpush.msra.mxu0 %v883
    %1460 = vmatpush.msra.mxu0 %v879
    %1461 = vmatpush.msra.mxu0 %v875
    %1462 = vmatpush.msra.mxu0 %v871
    %1463 = vmatpush.msra.mxu0 %v867
    %1464 = vmatpush.msra.mxu0 %v863
    %1465 = vmatmul.f32.gmra.mxu0 %v1447
    %v1466 = vpop.f32.mrf.mxu0
    %v1467 = vadd.f32 0.0, %v1466
    %1468 = vdwg.mxu0
    %1469 = vmatpush.msra.mxu0 %v924
    %1470 = vmatpush.msra.mxu0 %v920
    %1471 = vmatpush.msra.mxu0 %v916
    %1472 = vmatpush.msra.mxu0 %v912
    %1473 = vmatpush.msra.mxu0 %v908
    %1474 = vmatpush.msra.mxu0 %v904
    %1475 = vmatpush.msra.mxu0 %v900
    %1476 = vmatpush.msra.mxu0 %v896
    %1477 = vmatpush.msra.mxu0 %v892
    %1478 = vmatpush.msra.mxu0 %v888
    %1479 = vmatpush.msra.mxu0 %v884
    %1480 = vmatpush.msra.mxu0 %v880
    %1481 = vmatpush.msra.mxu0 %v876
    %1482 = vmatpush.msra.mxu0 %v872
    %1483 = vmatpush.msra.mxu0 %v868
    %1484 = vmatpush.msra.mxu0 %v864
    %1485 = vmatmul.f32.gmra.mxu0 %v1447
    %v1486 = vpop.f32.mrf.mxu0
    %v1487 = vadd.f32 0.0, %v1486
    %1488 = vdwg.mxu0
    %1489 = vmatpush.msra.mxu0 %v925
    %1490 = vmatpush.msra.mxu0 %v921
    %1491 = vmatpush.msra.mxu0 %v917
    %1492 = vmatpush.msra.mxu0 %v913
    %1493 = vmatpush.msra.mxu0 %v909
    %1494 = vmatpush.msra.mxu0 %v905
    %1495 = vmatpush.msra.mxu0 %v901
    %1496 = vmatpush.msra.mxu0 %v897
    %1497 = vmatpush.msra.mxu0 %v893
    %1498 = vmatpush.msra.mxu0 %v889
    %1499 = vmatpush.msra.mxu0 %v885
    %1500 = vmatpush.msra.mxu0 %v881
    %1501 = vmatpush.msra.mxu0 %v877
    %1502 = vmatpush.msra.mxu0 %v873
    %1503 = vmatpush.msra.mxu0 %v869
    %1504 = vmatpush.msra.mxu0 %v865
    %1505 = vmatmul.f32.gmra.mxu0 %v1447
    %v1506 = vpop.f32.mrf.mxu0
    %v1507 = vadd.f32 0.0, %v1506
    %1508 = vdwg.mxu0
    %1509 = vmatpush.msra.mxu0 %v926
    %1510 = vmatpush.msra.mxu0 %v922
    %1511 = vmatpush.msra.mxu0 %v918
    %1512 = vmatpush.msra.mxu0 %v914
    %1513 = vmatpush.msra.mxu0 %v910
    %1514 = vmatpush.msra.mxu0 %v906
    %1515 = vmatpush.msra.mxu0 %v902
    %1516 = vmatpush.msra.mxu0 %v898
    %1517 = vmatpush.msra.mxu0 %v894
    %1518 = vmatpush.msra.mxu0 %v890
    %1519 = vmatpush.msra.mxu0 %v886
    %1520 = vmatpush.msra.mxu0 %v882
    %1521 = vmatpush.msra.mxu0 %v878
    %1522 = vmatpush.msra.mxu0 %v874
    %1523 = vmatpush.msra.mxu0 %v870
    %1524 = vmatpush.msra.mxu0 %v866
    %1525 = vmatmul.f32.gmra.mxu0 %v1447
    %v1526 = vpop.f32.mrf.mxu0
    %v1527 = vadd.f32 0.0, %v1526
    %1528 = vdwg.mxu0
    %v1533 = vrot.slane %v1487, 7
    %v1534 = vrot.slane %v1507, 6
    %v1535 = vrot.slane %v1527, 5
    %v1536 = vsel %vm1017, %v1467, %v1533
    %v1537 = vsel %vm1019, %v1534, %v1535
    %v1538 = vsel %vm1021, %v1536, %v1537
    %v1539 = vsel %vm1023, %v1467, %v1533
    %v1540 = vsel %vm1025, %v1534, %v1535
    %v1541 = vsel %vm1027, %v1539, %v1540
    %v1542 = vrot.slane %v1541, 1
    %v1545 = vadd.f32 %v1441, %v1538
    %v1546 = vadd.f32 %v1443, %v1542
    %v1547 = vxor.u32 %v1545, 2147483648
    %v1548 = vxor.u32 %v1546, 2147483648
    %v1549 = vmul.f32 %v1547, 1.442695
    %v1550 = vpow.pop %v1549
    %v1551 = vmul.f32 %v1548, 1.442695
    %v1552 = vpow.pop %v1551
    %v1553 = vadd.f32 %v1550, 1.0
    %v1554 = vadd.f32 %v1552, 1.0
    %v1555 = vrcp.pop %v1553
    %v1556 = vmul.f32 %v1553, %v1555
    %v1557 = vsub.f32 1.0, %v1556
    %v1558 = vmul.f32 %v1555, %v1557
    %v1559 = vadd.f32 %v1555, %v1558
    %vm1560 = vweird.f32 %v1553
    %vm1561 = vweird.f32 %v1555
    %vm1562 = vmor %vm1560, %vm1561
    %v1563 = vsel %vm1562, %v1555, %v1559
    %v1564 = vand.u32 2147483647, %v1553
    %vm1565 = vcmp.eq.f32.partialorder %v1564, 8.507059e+37
    %v1566 = vand.u32 %v1553, 2147483648
    %v1567 = vor.u32 1.1754944e-38, %v1566
    %v1568 = vsel %vm1565, %v1567, %v1563
    %v1569 = vmul.f32 1.0, %v1568
    %v1570 = vrcp.pop %v1554
    %v1571 = vmul.f32 %v1554, %v1570
    %v1572 = vsub.f32 1.0, %v1571
    %v1573 = vmul.f32 %v1570, %v1572
    %v1574 = vadd.f32 %v1570, %v1573
    %vm1575 = vweird.f32 %v1554
    %vm1576 = vweird.f32 %v1570
    %vm1577 = vmor %vm1575, %vm1576
    %v1578 = vsel %vm1577, %v1570, %v1574
    %v1579 = vand.u32 2147483647, %v1554
    %vm1580 = vcmp.eq.f32.partialorder %v1579, 8.507059e+37
    %v1581 = vand.u32 %v1554, 2147483648
    %v1582 = vor.u32 1.1754944e-38, %v1581
    %v1583 = vsel %vm1580, %v1582, %v1578
    %v1584 = vmul.f32 1.0, %v1583
    %v1587 = vrot.slane %v1545, 1
    %v1588 = vrot.slane %v1546, 1
    %v1591 = vxor.u32 %v1587, 2147483648
    %v1592 = vxor.u32 %v1588, 2147483648
    %v1593 = vmul.f32 %v1591, 1.442695
    %v1594 = vpow.pop %v1593
    %v1595 = vmul.f32 %v1592, 1.442695
    %v1596 = vpow.pop %v1595
    %v1597 = vadd.f32 %v1594, 1.0
    %v1598 = vadd.f32 %v1596, 1.0
    %v1599 = vrcp.pop %v1597
    %v1600 = vmul.f32 %v1597, %v1599
    %v1601 = vsub.f32 1.0, %v1600
    %v1602 = vmul.f32 %v1599, %v1601
    %v1603 = vadd.f32 %v1599, %v1602
    %vm1604 = vweird.f32 %v1597
    %vm1605 = vweird.f32 %v1599
    %vm1606 = vmor %vm1604, %vm1605
    %v1607 = vsel %vm1606, %v1599, %v1603
    %v1608 = vand.u32 2147483647, %v1597
    %vm1609 = vcmp.eq.f32.partialorder %v1608, 8.507059e+37
    %v1610 = vand.u32 %v1597, 2147483648
    %v1611 = vor.u32 1.1754944e-38, %v1610
    %v1612 = vsel %vm1609, %v1611, %v1607
    %v1613 = vmul.f32 1.0, %v1612
    %v1614 = vrcp.pop %v1598
    %v1615 = vmul.f32 %v1598, %v1614
    %v1616 = vsub.f32 1.0, %v1615
    %v1617 = vmul.f32 %v1614, %v1616
    %v1618 = vadd.f32 %v1614, %v1617
    %vm1619 = vweird.f32 %v1598
    %vm1620 = vweird.f32 %v1614
    %vm1621 = vmor %vm1619, %vm1620
    %v1622 = vsel %vm1621, %v1614, %v1618
    %v1623 = vand.u32 2147483647, %v1598
    %vm1624 = vcmp.eq.f32.partialorder %v1623, 8.507059e+37
    %v1625 = vand.u32 %v1598, 2147483648
    %v1626 = vor.u32 1.1754944e-38, %v1625
    %v1627 = vsel %vm1624, %v1626, %v1622
    %v1628 = vmul.f32 1.0, %v1627
    %v1629 = vrot.slane %v1545, 2
    %v1630 = vrot.slane %v1546, 2
    %v1633 = vtanh.pop %v1629
    %v1634 = vtanh.pop %v1630
    %v1635 = vrot.slane %v1545, 3
    %v1636 = vrot.slane %v1546, 3
    %v1639 = vxor.u32 %v1635, 2147483648
    %v1640 = vxor.u32 %v1636, 2147483648
    %v1641 = vmul.f32 %v1639, 1.442695
    %v1642 = vpow.pop %v1641
    %v1643 = vmul.f32 %v1640, 1.442695
    %v1644 = vpow.pop %v1643
    %v1645 = vadd.f32 %v1642, 1.0
    %v1646 = vadd.f32 %v1644, 1.0
    %v1647 = vrcp.pop %v1645
    %v1648 = vmul.f32 %v1645, %v1647
    %v1649 = vsub.f32 1.0, %v1648
    %v1650 = vmul.f32 %v1647, %v1649
    %v1651 = vadd.f32 %v1647, %v1650
    %vm1652 = vweird.f32 %v1645
    %vm1653 = vweird.f32 %v1647
    %vm1654 = vmor %vm1652, %vm1653
    %v1655 = vsel %vm1654, %v1647, %v1651
    %v1656 = vand.u32 2147483647, %v1645
    %vm1657 = vcmp.eq.f32.partialorder %v1656, 8.507059e+37
    %v1658 = vand.u32 %v1645, 2147483648
    %v1659 = vor.u32 1.1754944e-38, %v1658
    %v1660 = vsel %vm1657, %v1659, %v1655
    %v1661 = vmul.f32 1.0, %v1660
    %v1662 = vrcp.pop %v1646
    %v1663 = vmul.f32 %v1646, %v1662
    %v1664 = vsub.f32 1.0, %v1663
    %v1665 = vmul.f32 %v1662, %v1664
    %v1666 = vadd.f32 %v1662, %v1665
    %vm1667 = vweird.f32 %v1646
    %vm1668 = vweird.f32 %v1662
    %vm1669 = vmor %vm1667, %vm1668
    %v1670 = vsel %vm1669, %v1662, %v1666
    %v1671 = vand.u32 2147483647, %v1646
    %vm1672 = vcmp.eq.f32.partialorder %v1671, 8.507059e+37
    %v1673 = vand.u32 %v1646, 2147483648
    %v1674 = vor.u32 1.1754944e-38, %v1673
    %v1675 = vsel %vm1672, %v1674, %v1670
    %v1676 = vmul.f32 1.0, %v1675
    %v1677 = vmul.f32 %v1613, %v1426
    %v1678 = vmul.f32 %v1628, %v1427
    %v1679 = vmul.f32 %v1569, %v1633
    %v1680 = vmul.f32 %v1584, %v1634
    %v1681 = vadd.f32 %v1677, %v1679
    %v1682 = vadd.f32 %v1678, %v1680
    %v1683 = vtanh.pop %v1681
    %v1684 = vtanh.pop %v1682
    %v1685 = vmul.f32 %v1661, %v1683
    %v1686 = vmul.f32 %v1676, %v1684
    %1689 = vst [vmem:[#allocation1] ss:$9 sm:$0xff] %v1685
    %s1690 = scalar_lea.vmem [#allocation1], 1
    %1691 = vst [vmem:[%s1690] ss:$9 sm:$0xff] %v1686
    %v1692 = vld [vmem:[#allocation1] sm:$0xff]
    %v1694 = vmax.f32 %v1439, %v1692
    %s1695 = scalar_lea.vmem [#allocation2], 3
    %v1696 = vld [vmem:[%s1695] ss:$8 sm:$0xf]
    %s1697 = scalar_lea.vmem [#allocation2], 35
    %v1698 = vld [vmem:[%s1697] ss:$8 sm:$0xf]
    %1699 = vst [vmem:[#allocation1] ss:$9 sm:$0xff] %v1685
    %s1700 = scalar_lea.vmem [#allocation1], 1
    %1701 = vst [vmem:[%s1700] ss:$9 sm:$0xff] %v1686
    %v1702 = vld [vmem:[#allocation1] sm:$0xff]
    %1704 = vmatpush.msra.mxu0 %v923
    %1705 = vmatpush.msra.mxu0 %v919
    %1706 = vmatpush.msra.mxu0 %v915
    %1707 = vmatpush.msra.mxu0 %v911
    %1708 = vmatpush.msra.mxu0 %v907
    %1709 = vmatpush.msra.mxu0 %v903
    %1710 = vmatpush.msra.mxu0 %v899
    %1711 = vmatpush.msra.mxu0 %v895
    %1712 = vmatpush.msra.mxu0 %v891
    %1713 = vmatpush.msra.mxu0 %v887
    %1714 = vmatpush.msra.mxu0 %v883
    %1715 = vmatpush.msra.mxu0 %v879
    %1716 = vmatpush.msra.mxu0 %v875
    %1717 = vmatpush.msra.mxu0 %v871
    %1718 = vmatpush.msra.mxu0 %v867
    %1719 = vmatpush.msra.mxu0 %v863
    %1720 = vmatmul.f32.gmra.mxu0 %v1702
    %v1721 = vpop.f32.mrf.mxu0
    %v1722 = vadd.f32 0.0, %v1721
    %1723 = vdwg.mxu0
    %1724 = vmatpush.msra.mxu0 %v924
    %1725 = vmatpush.msra.mxu0 %v920
    %1726 = vmatpush.msra.mxu0 %v916
    %1727 = vmatpush.msra.mxu0 %v912
    %1728 = vmatpush.msra.mxu0 %v908
    %1729 = vmatpush.msra.mxu0 %v904
    %1730 = vmatpush.msra.mxu0 %v900
    %1731 = vmatpush.msra.mxu0 %v896
    %1732 = vmatpush.msra.mxu0 %v892
    %1733 = vmatpush.msra.mxu0 %v888
    %1734 = vmatpush.msra.mxu0 %v884
    %1735 = vmatpush.msra.mxu0 %v880
    %1736 = vmatpush.msra.mxu0 %v876
    %1737 = vmatpush.msra.mxu0 %v872
    %1738 = vmatpush.msra.mxu0 %v868
    %1739 = vmatpush.msra.mxu0 %v864
    %1740 = vmatmul.f32.gmra.mxu0 %v1702
    %v1741 = vpop.f32.mrf.mxu0
    %v1742 = vadd.f32 0.0, %v1741
    %1743 = vdwg.mxu0
    %1744 = vmatpush.msra.mxu0 %v925
    %1745 = vmatpush.msra.mxu0 %v921
    %1746 = vmatpush.msra.mxu0 %v917
    %1747 = vmatpush.msra.mxu0 %v913
    %1748 = vmatpush.msra.mxu0 %v909
    %1749 = vmatpush.msra.mxu0 %v905
    %1750 = vmatpush.msra.mxu0 %v901
    %1751 = vmatpush.msra.mxu0 %v897
    %1752 = vmatpush.msra.mxu0 %v893
    %1753 = vmatpush.msra.mxu0 %v889
    %1754 = vmatpush.msra.mxu0 %v885
    %1755 = vmatpush.msra.mxu0 %v881
    %1756 = vmatpush.msra.mxu0 %v877
    %1757 = vmatpush.msra.mxu0 %v873
    %1758 = vmatpush.msra.mxu0 %v869
    %1759 = vmatpush.msra.mxu0 %v865
    %1760 = vmatmul.f32.gmra.mxu0 %v1702
    %v1761 = vpop.f32.mrf.mxu0
    %v1762 = vadd.f32 0.0, %v1761
    %1763 = vdwg.mxu0
    %1764 = vmatpush.msra.mxu0 %v926
    %1765 = vmatpush.msra.mxu0 %v922
    %1766 = vmatpush.msra.mxu0 %v918
    %1767 = vmatpush.msra.mxu0 %v914
    %1768 = vmatpush.msra.mxu0 %v910
    %1769 = vmatpush.msra.mxu0 %v906
    %1770 = vmatpush.msra.mxu0 %v902
    %1771 = vmatpush.msra.mxu0 %v898
    %1772 = vmatpush.msra.mxu0 %v894
    %1773 = vmatpush.msra.mxu0 %v890
    %1774 = vmatpush.msra.mxu0 %v886
    %1775 = vmatpush.msra.mxu0 %v882
    %1776 = vmatpush.msra.mxu0 %v878
    %1777 = vmatpush.msra.mxu0 %v874
    %1778 = vmatpush.msra.mxu0 %v870
    %1779 = vmatpush.msra.mxu0 %v866
    %1780 = vmatmul.f32.gmra.mxu0 %v1702
    %v1781 = vpop.f32.mrf.mxu0
    %v1782 = vadd.f32 0.0, %v1781
    %1783 = vdwg.mxu0
    %v1788 = vrot.slane %v1742, 7
    %v1789 = vrot.slane %v1762, 6
    %v1790 = vrot.slane %v1782, 5
    %v1791 = vsel %vm1017, %v1722, %v1788
    %v1792 = vsel %vm1019, %v1789, %v1790
    %v1793 = vsel %vm1021, %v1791, %v1792
    %v1794 = vsel %vm1023, %v1722, %v1788
    %v1795 = vsel %vm1025, %v1789, %v1790
    %v1796 = vsel %vm1027, %v1794, %v1795
    %v1797 = vrot.slane %v1796, 1
    %v1800 = vadd.f32 %v1696, %v1793
    %v1801 = vadd.f32 %v1698, %v1797
    %v1802 = vxor.u32 %v1800, 2147483648
    %v1803 = vxor.u32 %v1801, 2147483648
    %v1804 = vmul.f32 %v1802, 1.442695
    %v1805 = vpow.pop %v1804
    %v1806 = vmul.f32 %v1803, 1.442695
    %v1807 = vpow.pop %v1806
    %v1808 = vadd.f32 %v1805, 1.0
    %v1809 = vadd.f32 %v1807, 1.0
    %v1810 = vrcp.pop %v1808
    %v1811 = vmul.f32 %v1808, %v1810
    %v1812 = vsub.f32 1.0, %v1811
    %v1813 = vmul.f32 %v1810, %v1812
    %v1814 = vadd.f32 %v1810, %v1813
    %vm1815 = vweird.f32 %v1808
    %vm1816 = vweird.f32 %v1810
    %vm1817 = vmor %vm1815, %vm1816
    %v1818 = vsel %vm1817, %v1810, %v1814
    %v1819 = vand.u32 2147483647, %v1808
    %vm1820 = vcmp.eq.f32.partialorder %v1819, 8.507059e+37
    %v1821 = vand.u32 %v1808, 2147483648
    %v1822 = vor.u32 1.1754944e-38, %v1821
    %v1823 = vsel %vm1820, %v1822, %v1818
    %v1824 = vmul.f32 1.0, %v1823
    %v1825 = vrcp.pop %v1809
    %v1826 = vmul.f32 %v1809, %v1825
    %v1827 = vsub.f32 1.0, %v1826
    %v1828 = vmul.f32 %v1825, %v1827
    %v1829 = vadd.f32 %v1825, %v1828
    %vm1830 = vweird.f32 %v1809
    %vm1831 = vweird.f32 %v1825
    %vm1832 = vmor %vm1830, %vm1831
    %v1833 = vsel %vm1832, %v1825, %v1829
    %v1834 = vand.u32 2147483647, %v1809
    %vm1835 = vcmp.eq.f32.partialorder %v1834, 8.507059e+37
    %v1836 = vand.u32 %v1809, 2147483648
    %v1837 = vor.u32 1.1754944e-38, %v1836
    %v1838 = vsel %vm1835, %v1837, %v1833
    %v1839 = vmul.f32 1.0, %v1838
    %v1842 = vrot.slane %v1800, 1
    %v1843 = vrot.slane %v1801, 1
    %v1846 = vxor.u32 %v1842, 2147483648
    %v1847 = vxor.u32 %v1843, 2147483648
    %v1848 = vmul.f32 %v1846, 1.442695
    %v1849 = vpow.pop %v1848
    %v1850 = vmul.f32 %v1847, 1.442695
    %v1851 = vpow.pop %v1850
    %v1852 = vadd.f32 %v1849, 1.0
    %v1853 = vadd.f32 %v1851, 1.0
    %v1854 = vrcp.pop %v1852
    %v1855 = vmul.f32 %v1852, %v1854
    %v1856 = vsub.f32 1.0, %v1855
    %v1857 = vmul.f32 %v1854, %v1856
    %v1858 = vadd.f32 %v1854, %v1857
    %vm1859 = vweird.f32 %v1852
    %vm1860 = vweird.f32 %v1854
    %vm1861 = vmor %vm1859, %vm1860
    %v1862 = vsel %vm1861, %v1854, %v1858
    %v1863 = vand.u32 2147483647, %v1852
    %vm1864 = vcmp.eq.f32.partialorder %v1863, 8.507059e+37
    %v1865 = vand.u32 %v1852, 2147483648
    %v1866 = vor.u32 1.1754944e-38, %v1865
    %v1867 = vsel %vm1864, %v1866, %v1862
    %v1868 = vmul.f32 1.0, %v1867
    %v1869 = vrcp.pop %v1853
    %v1870 = vmul.f32 %v1853, %v1869
    %v1871 = vsub.f32 1.0, %v1870
    %v1872 = vmul.f32 %v1869, %v1871
    %v1873 = vadd.f32 %v1869, %v1872
    %vm1874 = vweird.f32 %v1853
    %vm1875 = vweird.f32 %v1869
    %vm1876 = vmor %vm1874, %vm1875
    %v1877 = vsel %vm1876, %v1869, %v1873
    %v1878 = vand.u32 2147483647, %v1853
    %vm1879 = vcmp.eq.f32.partialorder %v1878, 8.507059e+37
    %v1880 = vand.u32 %v1853, 2147483648
    %v1881 = vor.u32 1.1754944e-38, %v1880
    %v1882 = vsel %vm1879, %v1881, %v1877
    %v1883 = vmul.f32 1.0, %v1882
    %v1884 = vrot.slane %v1800, 2
    %v1885 = vrot.slane %v1801, 2
    %v1888 = vtanh.pop %v1884
    %v1889 = vtanh.pop %v1885
    %v1890 = vrot.slane %v1800, 3
    %v1891 = vrot.slane %v1801, 3
    %v1894 = vxor.u32 %v1890, 2147483648
    %v1895 = vxor.u32 %v1891, 2147483648
    %v1896 = vmul.f32 %v1894, 1.442695
    %v1897 = vpow.pop %v1896
    %v1898 = vmul.f32 %v1895, 1.442695
    %v1899 = vpow.pop %v1898
    %v1900 = vadd.f32 %v1897, 1.0
    %v1901 = vadd.f32 %v1899, 1.0
    %v1902 = vrcp.pop %v1900
    %v1903 = vmul.f32 %v1900, %v1902
    %v1904 = vsub.f32 1.0, %v1903
    %v1905 = vmul.f32 %v1902, %v1904
    %v1906 = vadd.f32 %v1902, %v1905
    %vm1907 = vweird.f32 %v1900
    %vm1908 = vweird.f32 %v1902
    %vm1909 = vmor %vm1907, %vm1908
    %v1910 = vsel %vm1909, %v1902, %v1906
    %v1911 = vand.u32 2147483647, %v1900
    %vm1912 = vcmp.eq.f32.partialorder %v1911, 8.507059e+37
    %v1913 = vand.u32 %v1900, 2147483648
    %v1914 = vor.u32 1.1754944e-38, %v1913
    %v1915 = vsel %vm1912, %v1914, %v1910
    %v1916 = vmul.f32 1.0, %v1915
    %v1917 = vrcp.pop %v1901
    %v1918 = vmul.f32 %v1901, %v1917
    %v1919 = vsub.f32 1.0, %v1918
    %v1920 = vmul.f32 %v1917, %v1919
    %v1921 = vadd.f32 %v1917, %v1920
    %vm1922 = vweird.f32 %v1901
    %vm1923 = vweird.f32 %v1917
    %vm1924 = vmor %vm1922, %vm1923
    %v1925 = vsel %vm1924, %v1917, %v1921
    %v1926 = vand.u32 2147483647, %v1901
    %vm1927 = vcmp.eq.f32.partialorder %v1926, 8.507059e+37
    %v1928 = vand.u32 %v1901, 2147483648
    %v1929 = vor.u32 1.1754944e-38, %v1928
    %v1930 = vsel %vm1927, %v1929, %v1925
    %v1931 = vmul.f32 1.0, %v1930
    %v1932 = vmul.f32 %v1868, %v1681
    %v1933 = vmul.f32 %v1883, %v1682
    %v1934 = vmul.f32 %v1824, %v1888
    %v1935 = vmul.f32 %v1839, %v1889
    %v1936 = vadd.f32 %v1932, %v1934
    %v1937 = vadd.f32 %v1933, %v1935
    %v1938 = vtanh.pop %v1936
    %v1939 = vtanh.pop %v1937
    %v1940 = vmul.f32 %v1916, %v1938
    %v1941 = vmul.f32 %v1931, %v1939
    %1944 = vst [vmem:[#allocation1] ss:$9 sm:$0xff] %v1940
    %s1945 = scalar_lea.vmem [#allocation1], 1
    %1946 = vst [vmem:[%s1945] ss:$9 sm:$0xff] %v1941
    %v1947 = vld [vmem:[#allocation1] sm:$0xff]
    %v1949 = vmax.f32 %v1694, %v1947
    %s1950 = scalar_lea.vmem [#allocation2], 4
    %v1951 = vld [vmem:[%s1950] ss:$8 sm:$0xf]
    %s1952 = scalar_lea.vmem [#allocation2], 36
    %v1953 = vld [vmem:[%s1952] ss:$8 sm:$0xf]
    %1954 = vst [vmem:[#allocation1] ss:$9 sm:$0xff] %v1940
    %s1955 = scalar_lea.vmem [#allocation1], 1
    %1956 = vst [vmem:[%s1955] ss:$9 sm:$0xff] %v1941
    %v1957 = vld [vmem:[#allocation1] sm:$0xff]
    %1959 = vmatpush.msra.mxu0 %v923
    %1960 = vmatpush.msra.mxu0 %v919
    %1961 = vmatpush.msra.mxu0 %v915
    %1962 = vmatpush.msra.mxu0 %v911
    %1963 = vmatpush.msra.mxu0 %v907
    %1964 = vmatpush.msra.mxu0 %v903
    %1965 = vmatpush.msra.mxu0 %v899
    %1966 = vmatpush.msra.mxu0 %v895
    %1967 = vmatpush.msra.mxu0 %v891
    %1968 = vmatpush.msra.mxu0 %v887
    %1969 = vmatpush.msra.mxu0 %v883
    %1970 = vmatpush.msra.mxu0 %v879
    %1971 = vmatpush.msra.mxu0 %v875
    %1972 = vmatpush.msra.mxu0 %v871
    %1973 = vmatpush.msra.mxu0 %v867
    %1974 = vmatpush.msra.mxu0 %v863
    %1975 = vmatmul.f32.gmra.mxu0 %v1957
    %v1976 = vpop.f32.mrf.mxu0
    %v1977 = vadd.f32 0.0, %v1976
    %1978 = vdwg.mxu0
    %1979 = vmatpush.msra.mxu0 %v924
    %1980 = vmatpush.msra.mxu0 %v920
    %1981 = vmatpush.msra.mxu0 %v916
    %1982 = vmatpush.msra.mxu0 %v912
    %1983 = vmatpush.msra.mxu0 %v908
    %1984 = vmatpush.msra.mxu0 %v904
    %1985 = vmatpush.msra.mxu0 %v900
    %1986 = vmatpush.msra.mxu0 %v896
    %1987 = vmatpush.msra.mxu0 %v892
    %1988 = vmatpush.msra.mxu0 %v888
    %1989 = vmatpush.msra.mxu0 %v884
    %1990 = vmatpush.msra.mxu0 %v880
    %1991 = vmatpush.msra.mxu0 %v876
    %1992 = vmatpush.msra.mxu0 %v872
    %1993 = vmatpush.msra.mxu0 %v868
    %1994 = vmatpush.msra.mxu0 %v864
    %1995 = vmatmul.f32.gmra.mxu0 %v1957
    %v1996 = vpop.f32.mrf.mxu0
    %v1997 = vadd.f32 0.0, %v1996
    %1998 = vdwg.mxu0
    %1999 = vmatpush.msra.mxu0 %v925
    %2000 = vmatpush.msra.mxu0 %v921
    %2001 = vmatpush.msra.mxu0 %v917
    %2002 = vmatpush.msra.mxu0 %v913
    %2003 = vmatpush.msra.mxu0 %v909
    %2004 = vmatpush.msra.mxu0 %v905
    %2005 = vmatpush.msra.mxu0 %v901
    %2006 = vmatpush.msra.mxu0 %v897
    %2007 = vmatpush.msra.mxu0 %v893
    %2008 = vmatpush.msra.mxu0 %v889
    %2009 = vmatpush.msra.mxu0 %v885
    %2010 = vmatpush.msra.mxu0 %v881
    %2011 = vmatpush.msra.mxu0 %v877
    %2012 = vmatpush.msra.mxu0 %v873
    %2013 = vmatpush.msra.mxu0 %v869
    %2014 = vmatpush.msra.mxu0 %v865
    %2015 = vmatmul.f32.gmra.mxu0 %v1957
    %v2016 = vpop.f32.mrf.mxu0
    %v2017 = vadd.f32 0.0, %v2016
    %2018 = vdwg.mxu0
    %2019 = vmatpush.msra.mxu0 %v926
    %2020 = vmatpush.msra.mxu0 %v922
    %2021 = vmatpush.msra.mxu0 %v918
    %2022 = vmatpush.msra.mxu0 %v914
    %2023 = vmatpush.msra.mxu0 %v910
    %2024 = vmatpush.msra.mxu0 %v906
    %2025 = vmatpush.msra.mxu0 %v902
    %2026 = vmatpush.msra.mxu0 %v898
    %2027 = vmatpush.msra.mxu0 %v894
    %2028 = vmatpush.msra.mxu0 %v890
    %2029 = vmatpush.msra.mxu0 %v886
    %2030 = vmatpush.msra.mxu0 %v882
    %2031 = vmatpush.msra.mxu0 %v878
    %2032 = vmatpush.msra.mxu0 %v874
    %2033 = vmatpush.msra.mxu0 %v870
    %2034 = vmatpush.msra.mxu0 %v866
    %2035 = vmatmul.f32.gmra.mxu0 %v1957
    %v2036 = vpop.f32.mrf.mxu0
    %v2037 = vadd.f32 0.0, %v2036
    %2038 = vdwg.mxu0
    %v2043 = vrot.slane %v1997, 7
    %v2044 = vrot.slane %v2017, 6
    %v2045 = vrot.slane %v2037, 5
    %v2046 = vsel %vm1017, %v1977, %v2043
    %v2047 = vsel %vm1019, %v2044, %v2045
    %v2048 = vsel %vm1021, %v2046, %v2047
    %v2049 = vsel %vm1023, %v1977, %v2043
    %v2050 = vsel %vm1025, %v2044, %v2045
    %v2051 = vsel %vm1027, %v2049, %v2050
    %v2052 = vrot.slane %v2051, 1
    %v2055 = vadd.f32 %v1951, %v2048
    %v2056 = vadd.f32 %v1953, %v2052
    %v2057 = vxor.u32 %v2055, 2147483648
    %v2058 = vxor.u32 %v2056, 2147483648
    %v2059 = vmul.f32 %v2057, 1.442695
    %v2060 = vpow.pop %v2059
    %v2061 = vmul.f32 %v2058, 1.442695
    %v2062 = vpow.pop %v2061
    %v2063 = vadd.f32 %v2060, 1.0
    %v2064 = vadd.f32 %v2062, 1.0
    %v2065 = vrcp.pop %v2063
    %v2066 = vmul.f32 %v2063, %v2065
    %v2067 = vsub.f32 1.0, %v2066
    %v2068 = vmul.f32 %v2065, %v2067
    %v2069 = vadd.f32 %v2065, %v2068
    %vm2070 = vweird.f32 %v2063
    %vm2071 = vweird.f32 %v2065
    %vm2072 = vmor %vm2070, %vm2071
    %v2073 = vsel %vm2072, %v2065, %v2069
    %v2074 = vand.u32 2147483647, %v2063
    %vm2075 = vcmp.eq.f32.partialorder %v2074, 8.507059e+37
    %v2076 = vand.u32 %v2063, 2147483648
    %v2077 = vor.u32 1.1754944e-38, %v2076
    %v2078 = vsel %vm2075, %v2077, %v2073
    %v2079 = vmul.f32 1.0, %v2078
    %v2080 = vrcp.pop %v2064
    %v2081 = vmul.f32 %v2064, %v2080
    %v2082 = vsub.f32 1.0, %v2081
    %v2083 = vmul.f32 %v2080, %v2082
    %v2084 = vadd.f32 %v2080, %v2083
    %vm2085 = vweird.f32 %v2064
    %vm2086 = vweird.f32 %v2080
    %vm2087 = vmor %vm2085, %vm2086
    %v2088 = vsel %vm2087, %v2080, %v2084
    %v2089 = vand.u32 2147483647, %v2064
    %vm2090 = vcmp.eq.f32.partialorder %v2089, 8.507059e+37
    %v2091 = vand.u32 %v2064, 2147483648
    %v2092 = vor.u32 1.1754944e-38, %v2091
    %v2093 = vsel %vm2090, %v2092, %v2088
    %v2094 = vmul.f32 1.0, %v2093
    %v2097 = vrot.slane %v2055, 1
    %v2098 = vrot.slane %v2056, 1
    %v2101 = vxor.u32 %v2097, 2147483648
    %v2102 = vxor.u32 %v2098, 2147483648
    %v2103 = vmul.f32 %v2101, 1.442695
    %v2104 = vpow.pop %v2103
    %v2105 = vmul.f32 %v2102, 1.442695
    %v2106 = vpow.pop %v2105
    %v2107 = vadd.f32 %v2104, 1.0
    %v2108 = vadd.f32 %v2106, 1.0
    %v2109 = vrcp.pop %v2107
    %v2110 = vmul.f32 %v2107, %v2109
    %v2111 = vsub.f32 1.0, %v2110
    %v2112 = vmul.f32 %v2109, %v2111
    %v2113 = vadd.f32 %v2109, %v2112
    %vm2114 = vweird.f32 %v2107
    %vm2115 = vweird.f32 %v2109
    %vm2116 = vmor %vm2114, %vm2115
    %v2117 = vsel %vm2116, %v2109, %v2113
    %v2118 = vand.u32 2147483647, %v2107
    %vm2119 = vcmp.eq.f32.partialorder %v2118, 8.507059e+37
    %v2120 = vand.u32 %v2107, 2147483648
    %v2121 = vor.u32 1.1754944e-38, %v2120
    %v2122 = vsel %vm2119, %v2121, %v2117
    %v2123 = vmul.f32 1.0, %v2122
    %v2124 = vrcp.pop %v2108
    %v2125 = vmul.f32 %v2108, %v2124
    %v2126 = vsub.f32 1.0, %v2125
    %v2127 = vmul.f32 %v2124, %v2126
    %v2128 = vadd.f32 %v2124, %v2127
    %vm2129 = vweird.f32 %v2108
    %vm2130 = vweird.f32 %v2124
    %vm2131 = vmor %vm2129, %vm2130
    %v2132 = vsel %vm2131, %v2124, %v2128
    %v2133 = vand.u32 2147483647, %v2108
    %vm2134 = vcmp.eq.f32.partialorder %v2133, 8.507059e+37
    %v2135 = vand.u32 %v2108, 2147483648
    %v2136 = vor.u32 1.1754944e-38, %v2135
    %v2137 = vsel %vm2134, %v2136, %v2132
    %v2138 = vmul.f32 1.0, %v2137
    %v2139 = vrot.slane %v2055, 2
    %v2140 = vrot.slane %v2056, 2
    %v2143 = vtanh.pop %v2139
    %v2144 = vtanh.pop %v2140
    %v2145 = vrot.slane %v2055, 3
    %v2146 = vrot.slane %v2056, 3
    %v2149 = vxor.u32 %v2145, 2147483648
    %v2150 = vxor.u32 %v2146, 2147483648
    %v2151 = vmul.f32 %v2149, 1.442695
    %v2152 = vpow.pop %v2151
    %v2153 = vmul.f32 %v2150, 1.442695
    %v2154 = vpow.pop %v2153
    %v2155 = vadd.f32 %v2152, 1.0
    %v2156 = vadd.f32 %v2154, 1.0
    %v2157 = vrcp.pop %v2155
    %v2158 = vmul.f32 %v2155, %v2157
    %v2159 = vsub.f32 1.0, %v2158
    %v2160 = vmul.f32 %v2157, %v2159
    %v2161 = vadd.f32 %v2157, %v2160
    %vm2162 = vweird.f32 %v2155
    %vm2163 = vweird.f32 %v2157
    %vm2164 = vmor %vm2162, %vm2163
    %v2165 = vsel %vm2164, %v2157, %v2161
    %v2166 = vand.u32 2147483647, %v2155
    %vm2167 = vcmp.eq.f32.partialorder %v2166, 8.507059e+37
    %v2168 = vand.u32 %v2155, 2147483648
    %v2169 = vor.u32 1.1754944e-38, %v2168
    %v2170 = vsel %vm2167, %v2169, %v2165
    %v2171 = vmul.f32 1.0, %v2170
    %v2172 = vrcp.pop %v2156
    %v2173 = vmul.f32 %v2156, %v2172
    %v2174 = vsub.f32 1.0, %v2173
    %v2175 = vmul.f32 %v2172, %v2174
    %v2176 = vadd.f32 %v2172, %v2175
    %vm2177 = vweird.f32 %v2156
    %vm2178 = vweird.f32 %v2172
    %vm2179 = vmor %vm2177, %vm2178
    %v2180 = vsel %vm2179, %v2172, %v2176
    %v2181 = vand.u32 2147483647, %v2156
    %vm2182 = vcmp.eq.f32.partialorder %v2181, 8.507059e+37
    %v2183 = vand.u32 %v2156, 2147483648
    %v2184 = vor.u32 1.1754944e-38, %v2183
    %v2185 = vsel %vm2182, %v2184, %v2180
    %v2186 = vmul.f32 1.0, %v2185
    %v2187 = vmul.f32 %v2123, %v1936
    %v2188 = vmul.f32 %v2138, %v1937
    %v2189 = vmul.f32 %v2079, %v2143
    %v2190 = vmul.f32 %v2094, %v2144
    %v2191 = vadd.f32 %v2187, %v2189
    %v2192 = vadd.f32 %v2188, %v2190
    %v2193 = vtanh.pop %v2191
    %v2194 = vtanh.pop %v2192
    %v2195 = vmul.f32 %v2171, %v2193
    %v2196 = vmul.f32 %v2186, %v2194
    %2199 = vst [vmem:[#allocation1] ss:$9 sm:$0xff] %v2195
    %s2200 = scalar_lea.vmem [#allocation1], 1
    %2201 = vst [vmem:[%s2200] ss:$9 sm:$0xff] %v2196
    %v2202 = vld [vmem:[#allocation1] sm:$0xff]
    %v2204 = vmax.f32 %v1949, %v2202
    %s2205 = scalar_lea.vmem [#allocation2], 5
    %v2206 = vld [vmem:[%s2205] ss:$8 sm:$0xf]
    %s2207 = scalar_lea.vmem [#allocation2], 37
    %v2208 = vld [vmem:[%s2207] ss:$8 sm:$0xf]
    %2209 = vst [vmem:[#allocation1] ss:$9 sm:$0xff] %v2195
    %s2210 = scalar_lea.vmem [#allocation1], 1
    %2211 = vst [vmem:[%s2210] ss:$9 sm:$0xff] %v2196
    %v2212 = vld [vmem:[#allocation1] sm:$0xff]
    %2214 = vmatpush.msra.mxu0 %v923
    %2215 = vmatpush.msra.mxu0 %v919
    %2216 = vmatpush.msra.mxu0 %v915
    %2217 = vmatpush.msra.mxu0 %v911
    %2218 = vmatpush.msra.mxu0 %v907
    %2219 = vmatpush.msra.mxu0 %v903
    %2220 = vmatpush.msra.mxu0 %v899
    %2221 = vmatpush.msra.mxu0 %v895
    %2222 = vmatpush.msra.mxu0 %v891
    %2223 = vmatpush.msra.mxu0 %v887
    %2224 = vmatpush.msra.mxu0 %v883
    %2225 = vmatpush.msra.mxu0 %v879
    %2226 = vmatpush.msra.mxu0 %v875
    %2227 = vmatpush.msra.mxu0 %v871
    %2228 = vmatpush.msra.mxu0 %v867
    %2229 = vmatpush.msra.mxu0 %v863
    %2230 = vmatmul.f32.gmra.mxu0 %v2212
    %v2231 = vpop.f32.mrf.mxu0
    %v2232 = vadd.f32 0.0, %v2231
    %2233 = vdwg.mxu0
    %2234 = vmatpush.msra.mxu0 %v924
    %2235 = vmatpush.msra.mxu0 %v920
    %2236 = vmatpush.msra.mxu0 %v916
    %2237 = vmatpush.msra.mxu0 %v912
    %2238 = vmatpush.msra.mxu0 %v908
    %2239 = vmatpush.msra.mxu0 %v904
    %2240 = vmatpush.msra.mxu0 %v900
    %2241 = vmatpush.msra.mxu0 %v896
    %2242 = vmatpush.msra.mxu0 %v892
    %2243 = vmatpush.msra.mxu0 %v888
    %2244 = vmatpush.msra.mxu0 %v884
    %2245 = vmatpush.msra.mxu0 %v880
    %2246 = vmatpush.msra.mxu0 %v876
    %2247 = vmatpush.msra.mxu0 %v872
    %2248 = vmatpush.msra.mxu0 %v868
    %2249 = vmatpush.msra.mxu0 %v864
    %2250 = vmatmul.f32.gmra.mxu0 %v2212
    %v2251 = vpop.f32.mrf.mxu0
    %v2252 = vadd.f32 0.0, %v2251
    %2253 = vdwg.mxu0
    %2254 = vmatpush.msra.mxu0 %v925
    %2255 = vmatpush.msra.mxu0 %v921
    %2256 = vmatpush.msra.mxu0 %v917
    %2257 = vmatpush.msra.mxu0 %v913
    %2258 = vmatpush.msra.mxu0 %v909
    %2259 = vmatpush.msra.mxu0 %v905
    %2260 = vmatpush.msra.mxu0 %v901
    %2261 = vmatpush.msra.mxu0 %v897
    %2262 = vmatpush.msra.mxu0 %v893
    %2263 = vmatpush.msra.mxu0 %v889
    %2264 = vmatpush.msra.mxu0 %v885
    %2265 = vmatpush.msra.mxu0 %v881
    %2266 = vmatpush.msra.mxu0 %v877
    %2267 = vmatpush.msra.mxu0 %v873
    %2268 = vmatpush.msra.mxu0 %v869
    %2269 = vmatpush.msra.mxu0 %v865
    %2270 = vmatmul.f32.gmra.mxu0 %v2212
    %v2271 = vpop.f32.mrf.mxu0
    %v2272 = vadd.f32 0.0, %v2271
    %2273 = vdwg.mxu0
    %2274 = vmatpush.msra.mxu0 %v926
    %2275 = vmatpush.msra.mxu0 %v922
    %2276 = vmatpush.msra.mxu0 %v918
    %2277 = vmatpush.msra.mxu0 %v914
    %2278 = vmatpush.msra.mxu0 %v910
    %2279 = vmatpush.msra.mxu0 %v906
    %2280 = vmatpush.msra.mxu0 %v902
    %2281 = vmatpush.msra.mxu0 %v898
    %2282 = vmatpush.msra.mxu0 %v894
    %2283 = vmatpush.msra.mxu0 %v890
    %2284 = vmatpush.msra.mxu0 %v886
    %2285 = vmatpush.msra.mxu0 %v882
    %2286 = vmatpush.msra.mxu0 %v878
    %2287 = vmatpush.msra.mxu0 %v874
    %2288 = vmatpush.msra.mxu0 %v870
    %2289 = vmatpush.msra.mxu0 %v866
    %2290 = vmatmul.f32.gmra.mxu0 %v2212
    %v2291 = vpop.f32.mrf.mxu0
    %v2292 = vadd.f32 0.0, %v2291
    %2293 = vdwg.mxu0
    %v2298 = vrot.slane %v2252, 7
    %v2299 = vrot.slane %v2272, 6
    %v2300 = vrot.slane %v2292, 5
    %v2301 = vsel %vm1017, %v2232, %v2298
    %v2302 = vsel %vm1019, %v2299, %v2300
    %v2303 = vsel %vm1021, %v2301, %v2302
    %v2304 = vsel %vm1023, %v2232, %v2298
    %v2305 = vsel %vm1025, %v2299, %v2300
    %v2306 = vsel %vm1027, %v2304, %v2305
    %v2307 = vrot.slane %v2306, 1
    %v2310 = vadd.f32 %v2206, %v2303
    %v2311 = vadd.f32 %v2208, %v2307
    %v2312 = vxor.u32 %v2310, 2147483648
    %v2313 = vxor.u32 %v2311, 2147483648
    %v2314 = vmul.f32 %v2312, 1.442695
    %v2315 = vpow.pop %v2314
    %v2316 = vmul.f32 %v2313, 1.442695
    %v2317 = vpow.pop %v2316
    %v2318 = vadd.f32 %v2315, 1.0
    %v2319 = vadd.f32 %v2317, 1.0
    %v2320 = vrcp.pop %v2318
    %v2321 = vmul.f32 %v2318, %v2320
    %v2322 = vsub.f32 1.0, %v2321
    %v2323 = vmul.f32 %v2320, %v2322
    %v2324 = vadd.f32 %v2320, %v2323
    %vm2325 = vweird.f32 %v2318
    %vm2326 = vweird.f32 %v2320
    %vm2327 = vmor %vm2325, %vm2326
    %v2328 = vsel %vm2327, %v2320, %v2324
    %v2329 = vand.u32 2147483647, %v2318
    %vm2330 = vcmp.eq.f32.partialorder %v2329, 8.507059e+37
    %v2331 = vand.u32 %v2318, 2147483648
    %v2332 = vor.u32 1.1754944e-38, %v2331
    %v2333 = vsel %vm2330, %v2332, %v2328
    %v2334 = vmul.f32 1.0, %v2333
    %v2335 = vrcp.pop %v2319
    %v2336 = vmul.f32 %v2319, %v2335
    %v2337 = vsub.f32 1.0, %v2336
    %v2338 = vmul.f32 %v2335, %v2337
    %v2339 = vadd.f32 %v2335, %v2338
    %vm2340 = vweird.f32 %v2319
    %vm2341 = vweird.f32 %v2335
    %vm2342 = vmor %vm2340, %vm2341
    %v2343 = vsel %vm2342, %v2335, %v2339
    %v2344 = vand.u32 2147483647, %v2319
    %vm2345 = vcmp.eq.f32.partialorder %v2344, 8.507059e+37
    %v2346 = vand.u32 %v2319, 2147483648
    %v2347 = vor.u32 1.1754944e-38, %v2346
    %v2348 = vsel %vm2345, %v2347, %v2343
    %v2349 = vmul.f32 1.0, %v2348
    %v2352 = vrot.slane %v2310, 1
    %v2353 = vrot.slane %v2311, 1
    %v2356 = vxor.u32 %v2352, 2147483648
    %v2357 = vxor.u32 %v2353, 2147483648
    %v2358 = vmul.f32 %v2356, 1.442695
    %v2359 = vpow.pop %v2358
    %v2360 = vmul.f32 %v2357, 1.442695
    %v2361 = vpow.pop %v2360
    %v2362 = vadd.f32 %v2359, 1.0
    %v2363 = vadd.f32 %v2361, 1.0
    %v2364 = vrcp.pop %v2362
    %v2365 = vmul.f32 %v2362, %v2364
    %v2366 = vsub.f32 1.0, %v2365
    %v2367 = vmul.f32 %v2364, %v2366
    %v2368 = vadd.f32 %v2364, %v2367
    %vm2369 = vweird.f32 %v2362
    %vm2370 = vweird.f32 %v2364
    %vm2371 = vmor %vm2369, %vm2370
    %v2372 = vsel %vm2371, %v2364, %v2368
    %v2373 = vand.u32 2147483647, %v2362
    %vm2374 = vcmp.eq.f32.partialorder %v2373, 8.507059e+37
    %v2375 = vand.u32 %v2362, 2147483648
    %v2376 = vor.u32 1.1754944e-38, %v2375
    %v2377 = vsel %vm2374, %v2376, %v2372
    %v2378 = vmul.f32 1.0, %v2377
    %v2379 = vrcp.pop %v2363
    %v2380 = vmul.f32 %v2363, %v2379
    %v2381 = vsub.f32 1.0, %v2380
    %v2382 = vmul.f32 %v2379, %v2381
    %v2383 = vadd.f32 %v2379, %v2382
    %vm2384 = vweird.f32 %v2363
    %vm2385 = vweird.f32 %v2379
    %vm2386 = vmor %vm2384, %vm2385
    %v2387 = vsel %vm2386, %v2379, %v2383
    %v2388 = vand.u32 2147483647, %v2363
    %vm2389 = vcmp.eq.f32.partialorder %v2388, 8.507059e+37
    %v2390 = vand.u32 %v2363, 2147483648
    %v2391 = vor.u32 1.1754944e-38, %v2390
    %v2392 = vsel %vm2389, %v2391, %v2387
    %v2393 = vmul.f32 1.0, %v2392
    %v2394 = vrot.slane %v2310, 2
    %v2395 = vrot.slane %v2311, 2
    %v2398 = vtanh.pop %v2394
    %v2399 = vtanh.pop %v2395
    %v2400 = vrot.slane %v2310, 3
    %v2401 = vrot.slane %v2311, 3
    %v2404 = vxor.u32 %v2400, 2147483648
    %v2405 = vxor.u32 %v2401, 2147483648
    %v2406 = vmul.f32 %v2404, 1.442695
    %v2407 = vpow.pop %v2406
    %v2408 = vmul.f32 %v2405, 1.442695
    %v2409 = vpow.pop %v2408
    %v2410 = vadd.f32 %v2407, 1.0
    %v2411 = vadd.f32 %v2409, 1.0
    %v2412 = vrcp.pop %v2410
    %v2413 = vmul.f32 %v2410, %v2412
    %v2414 = vsub.f32 1.0, %v2413
    %v2415 = vmul.f32 %v2412, %v2414
    %v2416 = vadd.f32 %v2412, %v2415
    %vm2417 = vweird.f32 %v2410
    %vm2418 = vweird.f32 %v2412
    %vm2419 = vmor %vm2417, %vm2418
    %v2420 = vsel %vm2419, %v2412, %v2416
    %v2421 = vand.u32 2147483647, %v2410
    %vm2422 = vcmp.eq.f32.partialorder %v2421, 8.507059e+37
    %v2423 = vand.u32 %v2410, 2147483648
    %v2424 = vor.u32 1.1754944e-38, %v2423
    %v2425 = vsel %vm2422, %v2424, %v2420
    %v2426 = vmul.f32 1.0, %v2425
    %v2427 = vrcp.pop %v2411
    %v2428 = vmul.f32 %v2411, %v2427
    %v2429 = vsub.f32 1.0, %v2428
    %v2430 = vmul.f32 %v2427, %v2429
    %v2431 = vadd.f32 %v2427, %v2430
    %vm2432 = vweird.f32 %v2411
    %vm2433 = vweird.f32 %v2427
    %vm2434 = vmor %vm2432, %vm2433
    %v2435 = vsel %vm2434, %v2427, %v2431
    %v2436 = vand.u32 2147483647, %v2411
    %vm2437 = vcmp.eq.f32.partialorder %v2436, 8.507059e+37
    %v2438 = vand.u32 %v2411, 2147483648
    %v2439 = vor.u32 1.1754944e-38, %v2438
    %v2440 = vsel %vm2437, %v2439, %v2435
    %v2441 = vmul.f32 1.0, %v2440
    %v2442 = vmul.f32 %v2378, %v2191
    %v2443 = vmul.f32 %v2393, %v2192
    %v2444 = vmul.f32 %v2334, %v2398
    %v2445 = vmul.f32 %v2349, %v2399
    %v2446 = vadd.f32 %v2442, %v2444
    %v2447 = vadd.f32 %v2443, %v2445
    %v2448 = vtanh.pop %v2446
    %v2449 = vtanh.pop %v2447
    %v2450 = vmul.f32 %v2426, %v2448
    %v2451 = vmul.f32 %v2441, %v2449
    %2454 = vst [vmem:[#allocation1] ss:$9 sm:$0xff] %v2450
    %s2455 = scalar_lea.vmem [#allocation1], 1
    %2456 = vst [vmem:[%s2455] ss:$9 sm:$0xff] %v2451
    %v2457 = vld [vmem:[#allocation1] sm:$0xff]
    %v2459 = vmax.f32 %v2204, %v2457
    %s2460 = scalar_lea.vmem [#allocation2], 6
    %v2461 = vld [vmem:[%s2460] ss:$8 sm:$0xf]
    %s2462 = scalar_lea.vmem [#allocation2], 38
    %v2463 = vld [vmem:[%s2462] ss:$8 sm:$0xf]
    %2464 = vst [vmem:[#allocation1] ss:$9 sm:$0xff] %v2450
    %s2465 = scalar_lea.vmem [#allocation1], 1
    %2466 = vst [vmem:[%s2465] ss:$9 sm:$0xff] %v2451
    %v2467 = vld [vmem:[#allocation1] sm:$0xff]
    %2469 = vmatpush.msra.mxu0 %v923
    %2470 = vmatpush.msra.mxu0 %v919
    %2471 = vmatpush.msra.mxu0 %v915
    %2472 = vmatpush.msra.mxu0 %v911
    %2473 = vmatpush.msra.mxu0 %v907
    %2474 = vmatpush.msra.mxu0 %v903
    %2475 = vmatpush.msra.mxu0 %v899
    %2476 = vmatpush.msra.mxu0 %v895
    %2477 = vmatpush.msra.mxu0 %v891
    %2478 = vmatpush.msra.mxu0 %v887
    %2479 = vmatpush.msra.mxu0 %v883
    %2480 = vmatpush.msra.mxu0 %v879
    %2481 = vmatpush.msra.mxu0 %v875
    %2482 = vmatpush.msra.mxu0 %v871
    %2483 = vmatpush.msra.mxu0 %v867
    %2484 = vmatpush.msra.mxu0 %v863
    %2485 = vmatmul.f32.gmra.mxu0 %v2467
    %v2486 = vpop.f32.mrf.mxu0
    %v2487 = vadd.f32 0.0, %v2486
    %2488 = vdwg.mxu0
    %2489 = vmatpush.msra.mxu0 %v924
    %2490 = vmatpush.msra.mxu0 %v920
    %2491 = vmatpush.msra.mxu0 %v916
    %2492 = vmatpush.msra.mxu0 %v912
    %2493 = vmatpush.msra.mxu0 %v908
    %2494 = vmatpush.msra.mxu0 %v904
    %2495 = vmatpush.msra.mxu0 %v900
    %2496 = vmatpush.msra.mxu0 %v896
    %2497 = vmatpush.msra.mxu0 %v892
    %2498 = vmatpush.msra.mxu0 %v888
    %2499 = vmatpush.msra.mxu0 %v884
    %2500 = vmatpush.msra.mxu0 %v880
    %2501 = vmatpush.msra.mxu0 %v876
    %2502 = vmatpush.msra.mxu0 %v872
    %2503 = vmatpush.msra.mxu0 %v868
    %2504 = vmatpush.msra.mxu0 %v864
    %2505 = vmatmul.f32.gmra.mxu0 %v2467
    %v2506 = vpop.f32.mrf.mxu0
    %v2507 = vadd.f32 0.0, %v2506
    %2508 = vdwg.mxu0
    %2509 = vmatpush.msra.mxu0 %v925
    %2510 = vmatpush.msra.mxu0 %v921
    %2511 = vmatpush.msra.mxu0 %v917
    %2512 = vmatpush.msra.mxu0 %v913
    %2513 = vmatpush.msra.mxu0 %v909
    %2514 = vmatpush.msra.mxu0 %v905
    %2515 = vmatpush.msra.mxu0 %v901
    %2516 = vmatpush.msra.mxu0 %v897
    %2517 = vmatpush.msra.mxu0 %v893
    %2518 = vmatpush.msra.mxu0 %v889
    %2519 = vmatpush.msra.mxu0 %v885
    %2520 = vmatpush.msra.mxu0 %v881
    %2521 = vmatpush.msra.mxu0 %v877
    %2522 = vmatpush.msra.mxu0 %v873
    %2523 = vmatpush.msra.mxu0 %v869
    %2524 = vmatpush.msra.mxu0 %v865
    %2525 = vmatmul.f32.gmra.mxu0 %v2467
    %v2526 = vpop.f32.mrf.mxu0
    %v2527 = vadd.f32 0.0, %v2526
    %2528 = vdwg.mxu0
    %2529 = vmatpush.msra.mxu0 %v926
    %2530 = vmatpush.msra.mxu0 %v922
    %2531 = vmatpush.msra.mxu0 %v918
    %2532 = vmatpush.msra.mxu0 %v914
    %2533 = vmatpush.msra.mxu0 %v910
    %2534 = vmatpush.msra.mxu0 %v906
    %2535 = vmatpush.msra.mxu0 %v902
    %2536 = vmatpush.msra.mxu0 %v898
    %2537 = vmatpush.msra.mxu0 %v894
    %2538 = vmatpush.msra.mxu0 %v890
    %2539 = vmatpush.msra.mxu0 %v886
    %2540 = vmatpush.msra.mxu0 %v882
    %2541 = vmatpush.msra.mxu0 %v878
    %2542 = vmatpush.msra.mxu0 %v874
    %2543 = vmatpush.msra.mxu0 %v870
    %2544 = vmatpush.msra.mxu0 %v866
    %2545 = vmatmul.f32.gmra.mxu0 %v2467
    %v2546 = vpop.f32.mrf.mxu0
    %v2547 = vadd.f32 0.0, %v2546
    %2548 = vdwg.mxu0
    %v2553 = vrot.slane %v2507, 7
    %v2554 = vrot.slane %v2527, 6
    %v2555 = vrot.slane %v2547, 5
    %v2556 = vsel %vm1017, %v2487, %v2553
    %v2557 = vsel %vm1019, %v2554, %v2555
    %v2558 = vsel %vm1021, %v2556, %v2557
    %v2559 = vsel %vm1023, %v2487, %v2553
    %v2560 = vsel %vm1025, %v2554, %v2555
    %v2561 = vsel %vm1027, %v2559, %v2560
    %v2562 = vrot.slane %v2561, 1
    %v2565 = vadd.f32 %v2461, %v2558
    %v2566 = vadd.f32 %v2463, %v2562
    %v2567 = vxor.u32 %v2565, 2147483648
    %v2568 = vxor.u32 %v2566, 2147483648
    %v2569 = vmul.f32 %v2567, 1.442695
    %v2570 = vpow.pop %v2569
    %v2571 = vmul.f32 %v2568, 1.442695
    %v2572 = vpow.pop %v2571
    %v2573 = vadd.f32 %v2570, 1.0
    %v2574 = vadd.f32 %v2572, 1.0
    %v2575 = vrcp.pop %v2573
    %v2576 = vmul.f32 %v2573, %v2575
    %v2577 = vsub.f32 1.0, %v2576
    %v2578 = vmul.f32 %v2575, %v2577
    %v2579 = vadd.f32 %v2575, %v2578
    %vm2580 = vweird.f32 %v2573
    %vm2581 = vweird.f32 %v2575
    %vm2582 = vmor %vm2580, %vm2581
    %v2583 = vsel %vm2582, %v2575, %v2579
    %v2584 = vand.u32 2147483647, %v2573
    %vm2585 = vcmp.eq.f32.partialorder %v2584, 8.507059e+37
    %v2586 = vand.u32 %v2573, 2147483648
    %v2587 = vor.u32 1.1754944e-38, %v2586
    %v2588 = vsel %vm2585, %v2587, %v2583
    %v2589 = vmul.f32 1.0, %v2588
    %v2590 = vrcp.pop %v2574
    %v2591 = vmul.f32 %v2574, %v2590
    %v2592 = vsub.f32 1.0, %v2591
    %v2593 = vmul.f32 %v2590, %v2592
    %v2594 = vadd.f32 %v2590, %v2593
    %vm2595 = vweird.f32 %v2574
    %vm2596 = vweird.f32 %v2590
    %vm2597 = vmor %vm2595, %vm2596
    %v2598 = vsel %vm2597, %v2590, %v2594
    %v2599 = vand.u32 2147483647, %v2574
    %vm2600 = vcmp.eq.f32.partialorder %v2599, 8.507059e+37
    %v2601 = vand.u32 %v2574, 2147483648
    %v2602 = vor.u32 1.1754944e-38, %v2601
    %v2603 = vsel %vm2600, %v2602, %v2598
    %v2604 = vmul.f32 1.0, %v2603
    %v2607 = vrot.slane %v2565, 1
    %v2608 = vrot.slane %v2566, 1
    %v2611 = vxor.u32 %v2607, 2147483648
    %v2612 = vxor.u32 %v2608, 2147483648
    %v2613 = vmul.f32 %v2611, 1.442695
    %v2614 = vpow.pop %v2613
    %v2615 = vmul.f32 %v2612, 1.442695
    %v2616 = vpow.pop %v2615
    %v2617 = vadd.f32 %v2614, 1.0
    %v2618 = vadd.f32 %v2616, 1.0
    %v2619 = vrcp.pop %v2617
    %v2620 = vmul.f32 %v2617, %v2619
    %v2621 = vsub.f32 1.0, %v2620
    %v2622 = vmul.f32 %v2619, %v2621
    %v2623 = vadd.f32 %v2619, %v2622
    %vm2624 = vweird.f32 %v2617
    %vm2625 = vweird.f32 %v2619
    %vm2626 = vmor %vm2624, %vm2625
    %v2627 = vsel %vm2626, %v2619, %v2623
    %v2628 = vand.u32 2147483647, %v2617
    %vm2629 = vcmp.eq.f32.partialorder %v2628, 8.507059e+37
    %v2630 = vand.u32 %v2617, 2147483648
    %v2631 = vor.u32 1.1754944e-38, %v2630
    %v2632 = vsel %vm2629, %v2631, %v2627
    %v2633 = vmul.f32 1.0, %v2632
    %v2634 = vrcp.pop %v2618
    %v2635 = vmul.f32 %v2618, %v2634
    %v2636 = vsub.f32 1.0, %v2635
    %v2637 = vmul.f32 %v2634, %v2636
    %v2638 = vadd.f32 %v2634, %v2637
    %vm2639 = vweird.f32 %v2618
    %vm2640 = vweird.f32 %v2634
    %vm2641 = vmor %vm2639, %vm2640
    %v2642 = vsel %vm2641, %v2634, %v2638
    %v2643 = vand.u32 2147483647, %v2618
    %vm2644 = vcmp.eq.f32.partialorder %v2643, 8.507059e+37
    %v2645 = vand.u32 %v2618, 2147483648
    %v2646 = vor.u32 1.1754944e-38, %v2645
    %v2647 = vsel %vm2644, %v2646, %v2642
    %v2648 = vmul.f32 1.0, %v2647
    %v2649 = vrot.slane %v2565, 2
    %v2650 = vrot.slane %v2566, 2
    %v2653 = vtanh.pop %v2649
    %v2654 = vtanh.pop %v2650
    %v2655 = vrot.slane %v2565, 3
    %v2656 = vrot.slane %v2566, 3
    %v2659 = vxor.u32 %v2655, 2147483648
    %v2660 = vxor.u32 %v2656, 2147483648
    %v2661 = vmul.f32 %v2659, 1.442695
    %v2662 = vpow.pop %v2661
    %v2663 = vmul.f32 %v2660, 1.442695
    %v2664 = vpow.pop %v2663
    %v2665 = vadd.f32 %v2662, 1.0
    %v2666 = vadd.f32 %v2664, 1.0
    %v2667 = vrcp.pop %v2665
    %v2668 = vmul.f32 %v2665, %v2667
    %v2669 = vsub.f32 1.0, %v2668
    %v2670 = vmul.f32 %v2667, %v2669
    %v2671 = vadd.f32 %v2667, %v2670
    %vm2672 = vweird.f32 %v2665
    %vm2673 = vweird.f32 %v2667
    %vm2674 = vmor %vm2672, %vm2673
    %v2675 = vsel %vm2674, %v2667, %v2671
    %v2676 = vand.u32 2147483647, %v2665
    %vm2677 = vcmp.eq.f32.partialorder %v2676, 8.507059e+37
    %v2678 = vand.u32 %v2665, 2147483648
    %v2679 = vor.u32 1.1754944e-38, %v2678
    %v2680 = vsel %vm2677, %v2679, %v2675
    %v2681 = vmul.f32 1.0, %v2680
    %v2682 = vrcp.pop %v2666
    %v2683 = vmul.f32 %v2666, %v2682
    %v2684 = vsub.f32 1.0, %v2683
    %v2685 = vmul.f32 %v2682, %v2684
    %v2686 = vadd.f32 %v2682, %v2685
    %vm2687 = vweird.f32 %v2666
    %vm2688 = vweird.f32 %v2682
    %vm2689 = vmor %vm2687, %vm2688
    %v2690 = vsel %vm2689, %v2682, %v2686
    %v2691 = vand.u32 2147483647, %v2666
    %vm2692 = vcmp.eq.f32.partialorder %v2691, 8.507059e+37
    %v2693 = vand.u32 %v2666, 2147483648
    %v2694 = vor.u32 1.1754944e-38, %v2693
    %v2695 = vsel %vm2692, %v2694, %v2690
    %v2696 = vmul.f32 1.0, %v2695
    %v2697 = vmul.f32 %v2633, %v2446
    %v2698 = vmul.f32 %v2648, %v2447
    %v2699 = vmul.f32 %v2589, %v2653
    %v2700 = vmul.f32 %v2604, %v2654
    %v2701 = vadd.f32 %v2697, %v2699
    %v2702 = vadd.f32 %v2698, %v2700
    %v2703 = vtanh.pop %v2701
    %v2704 = vtanh.pop %v2702
    %v2705 = vmul.f32 %v2681, %v2703
    %v2706 = vmul.f32 %v2696, %v2704
    %2709 = vst [vmem:[#allocation1] ss:$9 sm:$0xff] %v2705
    %s2710 = scalar_lea.vmem [#allocation1], 1
    %2711 = vst [vmem:[%s2710] ss:$9 sm:$0xff] %v2706
    %v2712 = vld [vmem:[#allocation1] sm:$0xff]
    %v2714 = vmax.f32 %v2459, %v2712
    %s2715 = scalar_lea.vmem [#allocation2], 7
    %v2716 = vld [vmem:[%s2715] ss:$8 sm:$0xf]
    %s2717 = scalar_lea.vmem [#allocation2], 39
    %v2718 = vld [vmem:[%s2717] ss:$8 sm:$0xf]
    %2719 = vst [vmem:[#allocation1] ss:$9 sm:$0xff] %v2705
    %s2720 = scalar_lea.vmem [#allocation1], 1
    %2721 = vst [vmem:[%s2720] ss:$9 sm:$0xff] %v2706
    %v2722 = vld [vmem:[#allocation1] sm:$0xff]
    %2724 = vmatpush.msra.mxu0 %v923
    %2725 = vmatpush.msra.mxu0 %v919
    %2726 = vmatpush.msra.mxu0 %v915
    %2727 = vmatpush.msra.mxu0 %v911
    %2728 = vmatpush.msra.mxu0 %v907
    %2729 = vmatpush.msra.mxu0 %v903
    %2730 = vmatpush.msra.mxu0 %v899
    %2731 = vmatpush.msra.mxu0 %v895
    %2732 = vmatpush.msra.mxu0 %v891
    %2733 = vmatpush.msra.mxu0 %v887
    %2734 = vmatpush.msra.mxu0 %v883
    %2735 = vmatpush.msra.mxu0 %v879
    %2736 = vmatpush.msra.mxu0 %v875
    %2737 = vmatpush.msra.mxu0 %v871
    %2738 = vmatpush.msra.mxu0 %v867
    %2739 = vmatpush.msra.mxu0 %v863
    %2740 = vmatmul.f32.gmra.mxu0 %v2722
    %v2741 = vpop.f32.mrf.mxu0
    %v2742 = vadd.f32 0.0, %v2741
    %2743 = vdwg.mxu0
    %2744 = vmatpush.msra.mxu0 %v924
    %2745 = vmatpush.msra.mxu0 %v920
    %2746 = vmatpush.msra.mxu0 %v916
    %2747 = vmatpush.msra.mxu0 %v912
    %2748 = vmatpush.msra.mxu0 %v908
    %2749 = vmatpush.msra.mxu0 %v904
    %2750 = vmatpush.msra.mxu0 %v900
    %2751 = vmatpush.msra.mxu0 %v896
    %2752 = vmatpush.msra.mxu0 %v892
    %2753 = vmatpush.msra.mxu0 %v888
    %2754 = vmatpush.msra.mxu0 %v884
    %2755 = vmatpush.msra.mxu0 %v880
    %2756 = vmatpush.msra.mxu0 %v876
    %2757 = vmatpush.msra.mxu0 %v872
    %2758 = vmatpush.msra.mxu0 %v868
    %2759 = vmatpush.msra.mxu0 %v864
    %2760 = vmatmul.f32.gmra.mxu0 %v2722
    %v2761 = vpop.f32.mrf.mxu0
    %v2762 = vadd.f32 0.0, %v2761
    %2763 = vdwg.mxu0
    %2764 = vmatpush.msra.mxu0 %v925
    %2765 = vmatpush.msra.mxu0 %v921
    %2766 = vmatpush.msra.mxu0 %v917
    %2767 = vmatpush.msra.mxu0 %v913
    %2768 = vmatpush.msra.mxu0 %v909
    %2769 = vmatpush.msra.mxu0 %v905
    %2770 = vmatpush.msra.mxu0 %v901
    %2771 = vmatpush.msra.mxu0 %v897
    %2772 = vmatpush.msra.mxu0 %v893
    %2773 = vmatpush.msra.mxu0 %v889
    %2774 = vmatpush.msra.mxu0 %v885
    %2775 = vmatpush.msra.mxu0 %v881
    %2776 = vmatpush.msra.mxu0 %v877
    %2777 = vmatpush.msra.mxu0 %v873
    %2778 = vmatpush.msra.mxu0 %v869
    %2779 = vmatpush.msra.mxu0 %v865
    %2780 = vmatmul.f32.gmra.mxu0 %v2722
    %v2781 = vpop.f32.mrf.mxu0
    %v2782 = vadd.f32 0.0, %v2781
    %2783 = vdwg.mxu0
    %2784 = vmatpush.msra.mxu0 %v926
    %2785 = vmatpush.msra.mxu0 %v922
    %2786 = vmatpush.msra.mxu0 %v918
    %2787 = vmatpush.msra.mxu0 %v914
    %2788 = vmatpush.msra.mxu0 %v910
    %2789 = vmatpush.msra.mxu0 %v906
    %2790 = vmatpush.msra.mxu0 %v902
    %2791 = vmatpush.msra.mxu0 %v898
    %2792 = vmatpush.msra.mxu0 %v894
    %2793 = vmatpush.msra.mxu0 %v890
    %2794 = vmatpush.msra.mxu0 %v886
    %2795 = vmatpush.msra.mxu0 %v882
    %2796 = vmatpush.msra.mxu0 %v878
    %2797 = vmatpush.msra.mxu0 %v874
    %2798 = vmatpush.msra.mxu0 %v870
    %2799 = vmatpush.msra.mxu0 %v866
    %2800 = vmatmul.f32.gmra.mxu0 %v2722
    %v2801 = vpop.f32.mrf.mxu0
    %v2802 = vadd.f32 0.0, %v2801
    %2803 = vdwg.mxu0
    %v2808 = vrot.slane %v2762, 7
    %v2809 = vrot.slane %v2782, 6
    %v2810 = vrot.slane %v2802, 5
    %v2811 = vsel %vm1017, %v2742, %v2808
    %v2812 = vsel %vm1019, %v2809, %v2810
    %v2813 = vsel %vm1021, %v2811, %v2812
    %v2814 = vsel %vm1023, %v2742, %v2808
    %v2815 = vsel %vm1025, %v2809, %v2810
    %v2816 = vsel %vm1027, %v2814, %v2815
    %v2817 = vrot.slane %v2816, 1
    %v2820 = vadd.f32 %v2716, %v2813
    %v2821 = vadd.f32 %v2718, %v2817
    %v2822 = vxor.u32 %v2820, 2147483648
    %v2823 = vxor.u32 %v2821, 2147483648
    %v2824 = vmul.f32 %v2822, 1.442695
    %v2825 = vpow.pop %v2824
    %v2826 = vmul.f32 %v2823, 1.442695
    %v2827 = vpow.pop %v2826
    %v2828 = vadd.f32 %v2825, 1.0
    %v2829 = vadd.f32 %v2827, 1.0
    %v2830 = vrcp.pop %v2828
    %v2831 = vmul.f32 %v2828, %v2830
    %v2832 = vsub.f32 1.0, %v2831
    %v2833 = vmul.f32 %v2830, %v2832
    %v2834 = vadd.f32 %v2830, %v2833
    %vm2835 = vweird.f32 %v2828
    %vm2836 = vweird.f32 %v2830
    %vm2837 = vmor %vm2835, %vm2836
    %v2838 = vsel %vm2837, %v2830, %v2834
    %v2839 = vand.u32 2147483647, %v2828
    %vm2840 = vcmp.eq.f32.partialorder %v2839, 8.507059e+37
    %v2841 = vand.u32 %v2828, 2147483648
    %v2842 = vor.u32 1.1754944e-38, %v2841
    %v2843 = vsel %vm2840, %v2842, %v2838
    %v2844 = vmul.f32 1.0, %v2843
    %v2845 = vrcp.pop %v2829
    %v2846 = vmul.f32 %v2829, %v2845
    %v2847 = vsub.f32 1.0, %v2846
    %v2848 = vmul.f32 %v2845, %v2847
    %v2849 = vadd.f32 %v2845, %v2848
    %vm2850 = vweird.f32 %v2829
    %vm2851 = vweird.f32 %v2845
    %vm2852 = vmor %vm2850, %vm2851
    %v2853 = vsel %vm2852, %v2845, %v2849
    %v2854 = vand.u32 2147483647, %v2829
    %vm2855 = vcmp.eq.f32.partialorder %v2854, 8.507059e+37
    %v2856 = vand.u32 %v2829, 2147483648
    %v2857 = vor.u32 1.1754944e-38, %v2856
    %v2858 = vsel %vm2855, %v2857, %v2853
    %v2859 = vmul.f32 1.0, %v2858
    %v2862 = vrot.slane %v2820, 1
    %v2863 = vrot.slane %v2821, 1
    %v2866 = vxor.u32 %v2862, 2147483648
    %v2867 = vxor.u32 %v2863, 2147483648
    %v2868 = vmul.f32 %v2866, 1.442695
    %v2869 = vpow.pop %v2868
    %v2870 = vmul.f32 %v2867, 1.442695
    %v2871 = vpow.pop %v2870
    %v2872 = vadd.f32 %v2869, 1.0
    %v2873 = vadd.f32 %v2871, 1.0
    %v2874 = vrcp.pop %v2872
    %v2875 = vmul.f32 %v2872, %v2874
    %v2876 = vsub.f32 1.0, %v2875
    %v2877 = vmul.f32 %v2874, %v2876
    %v2878 = vadd.f32 %v2874, %v2877
    %vm2879 = vweird.f32 %v2872
    %vm2880 = vweird.f32 %v2874
    %vm2881 = vmor %vm2879, %vm2880
    %v2882 = vsel %vm2881, %v2874, %v2878
    %v2883 = vand.u32 2147483647, %v2872
    %vm2884 = vcmp.eq.f32.partialorder %v2883, 8.507059e+37
    %v2885 = vand.u32 %v2872, 2147483648
    %v2886 = vor.u32 1.1754944e-38, %v2885
    %v2887 = vsel %vm2884, %v2886, %v2882
    %v2888 = vmul.f32 1.0, %v2887
    %v2889 = vrcp.pop %v2873
    %v2890 = vmul.f32 %v2873, %v2889
    %v2891 = vsub.f32 1.0, %v2890
    %v2892 = vmul.f32 %v2889, %v2891
    %v2893 = vadd.f32 %v2889, %v2892
    %vm2894 = vweird.f32 %v2873
    %vm2895 = vweird.f32 %v2889
    %vm2896 = vmor %vm2894, %vm2895
    %v2897 = vsel %vm2896, %v2889, %v2893
    %v2898 = vand.u32 2147483647, %v2873
    %vm2899 = vcmp.eq.f32.partialorder %v2898, 8.507059e+37
    %v2900 = vand.u32 %v2873, 2147483648
    %v2901 = vor.u32 1.1754944e-38, %v2900
    %v2902 = vsel %vm2899, %v2901, %v2897
    %v2903 = vmul.f32 1.0, %v2902
    %v2904 = vrot.slane %v2820, 2
    %v2905 = vrot.slane %v2821, 2
    %v2908 = vtanh.pop %v2904
    %v2909 = vtanh.pop %v2905
    %v2910 = vrot.slane %v2820, 3
    %v2911 = vrot.slane %v2821, 3
    %v2914 = vxor.u32 %v2910, 2147483648
    %v2915 = vxor.u32 %v2911, 2147483648
    %v2916 = vmul.f32 %v2914, 1.442695
    %v2917 = vpow.pop %v2916
    %v2918 = vmul.f32 %v2915, 1.442695
    %v2919 = vpow.pop %v2918
    %v2920 = vadd.f32 %v2917, 1.0
    %v2921 = vadd.f32 %v2919, 1.0
    %v2922 = vrcp.pop %v2920
    %v2923 = vmul.f32 %v2920, %v2922
    %v2924 = vsub.f32 1.0, %v2923
    %v2925 = vmul.f32 %v2922, %v2924
    %v2926 = vadd.f32 %v2922, %v2925
    %vm2927 = vweird.f32 %v2920
    %vm2928 = vweird.f32 %v2922
    %vm2929 = vmor %vm2927, %vm2928
    %v2930 = vsel %vm2929, %v2922, %v2926
    %v2931 = vand.u32 2147483647, %v2920
    %vm2932 = vcmp.eq.f32.partialorder %v2931, 8.507059e+37
    %v2933 = vand.u32 %v2920, 2147483648
    %v2934 = vor.u32 1.1754944e-38, %v2933
    %v2935 = vsel %vm2932, %v2934, %v2930
    %v2936 = vmul.f32 1.0, %v2935
    %v2937 = vrcp.pop %v2921
    %v2938 = vmul.f32 %v2921, %v2937
    %v2939 = vsub.f32 1.0, %v2938
    %v2940 = vmul.f32 %v2937, %v2939
    %v2941 = vadd.f32 %v2937, %v2940
    %vm2942 = vweird.f32 %v2921
    %vm2943 = vweird.f32 %v2937
    %vm2944 = vmor %vm2942, %vm2943
    %v2945 = vsel %vm2944, %v2937, %v2941
    %v2946 = vand.u32 2147483647, %v2921
    %vm2947 = vcmp.eq.f32.partialorder %v2946, 8.507059e+37
    %v2948 = vand.u32 %v2921, 2147483648
    %v2949 = vor.u32 1.1754944e-38, %v2948
    %v2950 = vsel %vm2947, %v2949, %v2945
    %v2951 = vmul.f32 1.0, %v2950
    %v2952 = vmul.f32 %v2888, %v2701
    %v2953 = vmul.f32 %v2903, %v2702
    %v2954 = vmul.f32 %v2844, %v2908
    %v2955 = vmul.f32 %v2859, %v2909
    %v2956 = vadd.f32 %v2952, %v2954
    %v2957 = vadd.f32 %v2953, %v2955
    %v2958 = vtanh.pop %v2956
    %v2959 = vtanh.pop %v2957
    %v2960 = vmul.f32 %v2936, %v2958
    %v2961 = vmul.f32 %v2951, %v2959
    %2964 = vst [vmem:[#allocation1] ss:$9 sm:$0xff] %v2960
    %s2965 = scalar_lea.vmem [#allocation1], 1
    %2966 = vst [vmem:[%s2965] ss:$9 sm:$0xff] %v2961
    %v2967 = vld [vmem:[#allocation1] sm:$0xff]
    %v2969 = vmax.f32 %v2714, %v2967
    %2970 = vst [vmem:[#allocation1] ss:$9 sm:$0xff] %v2960
    %s2971 = scalar_lea.vmem [#allocation1], 1
    %2972 = vst [vmem:[%s2971] ss:$9 sm:$0xff] %v2961
    %v2973 = vld [vmem:[#allocation1] sm:$0xff]
    %2975 = vst [vmem:[#allocation3] sm:$0x3] %v2973
    %2978 = vst [vmem:[#allocation1] ss:$9 sm:$0xff] %v2956
    %s2979 = scalar_lea.vmem [#allocation1], 1
    %2980 = vst [vmem:[%s2979] ss:$9 sm:$0xff] %v2957
    %v2981 = vld [vmem:[#allocation1] sm:$0xff]
    %2983 = vst [vmem:[#allocation4] sm:$0x3] %v2981
    %2984 = vst [vmem:[#allocation5] sm:$0x3] %v2969
    // Predicated region
    $region54: #{tpu_custom_call.1} parent=1 // pred_check
      %p2985 = pneg %p94
    $region55: #{tpu_custom_call.1} parent=1 // pred_check_branch
      %2987 = sbr.rel (%p2985) target = $region57
    $region56: #{tpu_custom_call.1} parent=1 // pred_region
      %v2988 = vld [vmem:[#allocation5] sm:$0x3]
      %v2989 = vld [vmem:[%s6] sm:$0x1]
      %v2991 = vperm.slane %v2989, 0
      %v2993 = vmul.f32 %v2988, %v2991
      %v2994 = vsel %vm1021, %v2993, 0.0
      %2995 = vadd.xlane.f32.xlu0 %v2994
      %v2996 = vpop.xlane.xlu0 %2995
      %v2997 = vld [vmem:[#allocation6] sm:$0x1]
      %v2999 = vperm.slane %v2997, 0
      %v3001 = vadd.f32 %v2996, %v2999
      %v3002 = vxor.u32 %v3001, 2147483648
      %v3003 = vmul.f32 %v3002, 1.442695
      %v3004 = vpow.pop %v3003
      %v3005 = vadd.f32 %v3004, 1.0
      %v3006 = vrcp.pop %v3005
      %v3007 = vmul.f32 %v3005, %v3006
      %v3008 = vsub.f32 1.0, %v3007
      %v3009 = vmul.f32 %v3006, %v3008
      %v3010 = vadd.f32 %v3006, %v3009
      %vm3011 = vweird.f32 %v3005
      %vm3012 = vweird.f32 %v3006
      %vm3013 = vmor %vm3011, %vm3012
      %v3014 = vsel %vm3013, %v3006, %v3010
      %v3015 = vand.u32 2147483647, %v3005
      %vm3016 = vcmp.eq.f32.partialorder %v3015, 8.507059e+37
      %v3017 = vand.u32 %v3005, 2147483648
      %v3018 = vor.u32 1.1754944e-38, %v3017
      %v3019 = vsel %vm3016, %v3018, %v3014
      %v3020 = vmul.f32 1.0, %v3019
      %vm3021 = vcmask 1024
      %3022 = vst.msk [vmem:[%s8] sm:$0x3] %vm3021, %v3020
    $region57: #{tpu_custom_call.1} parent=1 // pred_fallthru
      _
    // Predicated region
    $region58: #{tpu_custom_call.1} parent=1 // pred_check
      _
    $region59: #{tpu_custom_call.1} parent=1 // pred_check_branch
      %3024 = sbr.rel (0) target = $region61
    $region60: #{tpu_custom_call.1} parent=1 // pred_region
      _
    $region61: #{tpu_custom_call.1} parent=1 // pred_fallthru
      _
    // Predicated region
    $region62: #{tpu_custom_call.1} parent=1 // pred_check
      _
    $region63: #{tpu_custom_call.1} parent=1 // pred_check_branch
      %3026 = sbr.rel (0) target = $region65
    $region64: #{tpu_custom_call.1} parent=1 // pred_region
      _
    $region65: #{tpu_custom_call.1} parent=1 // pred_fallthru
      _
    %3027 = vsyncpa [#allocation8], 1
    %3028 = vsyncpa [#allocation10], 1
    %3029 = vsyncpa [#allocation13], 1

</llo_original>
